<compile_context>
chip_gen: v5e
topology: v5e:2x2
jax: 0.10.0
libtpu: 0.0.40
codegen_flags: <defaults>
</compile_context>

<pallas_src>
import functools

import jax
import jax.numpy as jnp
from jax.experimental import pallas as pl
from jax.experimental.pallas import tpu as pltpu


# ----------------------------------------------------------------------------
# Pallas kernels: matmul with fused (scale * acc + shift) + activation
# ----------------------------------------------------------------------------
def _epilogue(acc, scale, shift, activation):
    y = acc * scale + shift
    if activation == "relu":
        y = jnp.maximum(y, 0.0)
    elif activation == "tanh":
        y = jnp.tanh(y)
    return y


def _gemm_single_k_kernel(a_ref, b_ref, scale_ref, shift_ref, o_ref, *,
                          activation):
    # Whole K reduction fits in one tile: no scratch accumulator needed.
    acc = jnp.dot(a_ref[...], b_ref[...], preferred_element_type=jnp.float32)
    o_ref[...] = _epilogue(acc, scale_ref[...], shift_ref[...],
                           activation).astype(o_ref.dtype)


def _gemm_multi_k_kernel(a_ref, b_ref, scale_ref, shift_ref, o_ref, acc_ref, *,
                         activation):
    @pl.when(pl.program_id(2) == 0)
    def _():
        acc_ref[...] = jnp.zeros_like(acc_ref)

    acc_ref[...] += jnp.dot(a_ref[...], b_ref[...],
                            preferred_element_type=jnp.float32)

    @pl.when(pl.program_id(2) == pl.num_programs(2) - 1)
    def _():
        o_ref[...] = _epilogue(acc_ref[...], scale_ref[...], shift_ref[...],
                               activation).astype(o_ref.dtype)


# ----------------------------------------------------------------------------
# GEMM wrapper
# ----------------------------------------------------------------------------
def _round_up(v, m):
    return ((v + m - 1) // m) * m


def _pad2d(x, rows, cols):
    pr, pc = rows - x.shape[0], cols - x.shape[1]
    if pr == 0 and pc == 0:
        return x
    return jnp.pad(x, ((0, pr), (0, pc)))


def _pick_tile(dim_p, cap, unit):
    """Largest tile <= cap (multiple of `unit`) that divides dim_p."""
    if dim_p <= cap:
        return dim_p
    for t in range(cap, 0, -unit):
        if dim_p % t == 0:
            return t
    return unit


def matmul_bn_act(a, b, scale, shift, activation, *, out_dtype=jnp.float32,
                  scale_rows=False):
    """act(scale * (a @ b) + shift).

    scale/shift broadcast over output columns (len == b.shape[1]) by default,
    or over output rows (len == a.shape[0]) when scale_rows=True.
    """
    M, K = a.shape
    K2, Nc = b.shape
    assert K == K2

    Mp = _round_up(M, 16)        # sublane (bf16 packs 16 rows)
    Kp = _round_up(K, 128)
    Np = _round_up(Nc, 128)      # lane

    # bf16 operands (MXU rate, halved HBM->VMEM DMA); f32 accumulation.
    a_p = _pad2d(a.astype(jnp.bfloat16), Mp, Kp)
    b_p = _pad2d(b.astype(jnp.bfloat16), Kp, Np)

    tm = _pick_tile(Mp, 512, 16)
    tk = _pick_tile(Kp, 2048, 128)   # every layer of this net => one K step
    tn = _pick_tile(Np, 2048, 128)
    if tn == Np and Np >= 256 and Np % 256 == 0:
        tn = Np // 2                 # expose >=2 parallel N blocks (megacore)

    if scale_rows:
        sc = _pad2d(scale.reshape(-1, 1).astype(jnp.float32), Mp, 1)
        sh = _pad2d(shift.reshape(-1, 1).astype(jnp.float32), Mp, 1)
        s_spec = pl.BlockSpec((tm, 1), lambda i, j, k: (i, 0))
    else:
        sc = _pad2d(scale.reshape(1, -1).astype(jnp.float32), 1, Np)
        sh = _pad2d(shift.reshape(1, -1).astype(jnp.float32), 1, Np)
        s_spec = pl.BlockSpec((1, tn), lambda i, j, k: (0, j))

    grid = (Mp // tm, Np // tn, Kp // tk)
    if grid[2] == 1:
        kernel = functools.partial(_gemm_single_k_kernel, activation=activation)
        scratch = []
    else:
        kernel = functools.partial(_gemm_multi_k_kernel, activation=activation)
        scratch = [pltpu.VMEM((tm, tn), jnp.float32)]

    out = pl.pallas_call(
        kernel,
        out_shape=jax.ShapeDtypeStruct((Mp, Np), out_dtype),
        grid_spec=pltpu.PrefetchScalarGridSpec(
            num_scalar_prefetch=0,
            grid=grid,
            in_specs=[
                pl.BlockSpec((tm, tk), lambda i, j, k: (i, k)),
                pl.BlockSpec((tk, tn), lambda i, j, k: (k, j)),
                s_spec,
                s_spec,
            ],
            out_specs=pl.BlockSpec((tm, tn), lambda i, j, k: (i, j)),
            scratch_shapes=scratch,
        ),
        compiler_params=pltpu.CompilerParams(
            dimension_semantics=("parallel", "parallel", "arbitrary")),
    )(a_p, b_p, sc, sh)
    return out[:M, :Nc]


# ----------------------------------------------------------------------------
# One-time weight packing (conv -> GEMM, fold bias + eval-mode BatchNorm)
# ----------------------------------------------------------------------------
def _fold_bn(bias, bn, cout):
    """Fold conv bias + eval-mode BatchNorm into per-channel scale/shift."""
    if bn is None:
        return jnp.ones((cout,), jnp.float32), bias.astype(jnp.float32)
    gamma, beta, mean, var, eps = bn
    s = gamma / jnp.sqrt(var + eps)
    return s.astype(jnp.float32), (beta + s * (bias - mean)).astype(jnp.float32)


# Tap ky used by (output phase py, 3x3 patch row dy); -1 == unused (zero).
_KY_MAP = ((3, 1, -1), (-1, 2, 0))


def _subpixel_weight_s2(w):
    """Phase-stacked dense weight for ConvTranspose2d(k=4, s=2, p=1).

    Returns (9*Cin, 4*Cout); column block p = 2*py + px holds the 2x2 taps of
    output phase (py, px) scattered into a 3x3 patch window.
    """
    Cin, Cout, k, _ = w.shape
    assert k == 4
    cols = []
    for py in range(2):
        for px in range(2):
            blk = jnp.zeros((3, 3, Cin, Cout), w.dtype)
            for dy in range(3):
                ky = _KY_MAP[py][dy]
                if ky < 0:
                    continue
                for dx in range(3):
                    kx = _KY_MAP[px][dx]
                    if kx < 0:
                        continue
                    blk = blk.at[dy, dx].set(w[:, :, ky, kx])
            cols.append(blk.reshape(9 * Cin, Cout))
    return jnp.concatenate(cols, axis=1)


def prepare_generator_params(params):
    """Pack weights into GEMM-ready form once (bf16 B-matrices, folded BN)."""
    def prep1(w, bias, bn):
        nz, cout, k, _ = w.shape
        # Columns ordered (ky, kx, co) so the GEMM output reshapes to NHWC.
        b = jnp.transpose(w, (0, 2, 3, 1)).reshape(nz, k * k * cout)
        scale, shift = _fold_bn(bias, bn, cout)
        return {"b": b.astype(jnp.bfloat16),
                "scale": jnp.tile(scale, k * k),
                "shift": jnp.tile(shift, k * k),
                "cout": cout, "k": k}

    def prep_s2(w, bias, bn):
        cin, cout = w.shape[0], w.shape[1]
        b = _subpixel_weight_s2(w)                 # (9*Cin, 4*Cout)
        scale, shift = _fold_bn(bias, bn, cout)
        return {"b": b.astype(jnp.bfloat16),
                "scale": jnp.tile(scale, 4),
                "shift": jnp.tile(shift, 4),
                "cin": cin, "cout": cout}

    return {
        "l1": prep1(params["w1"], params["b1"], params["bn1"]),
        "l2": prep_s2(params["w2"], params["b2"], params["bn2"]),
        "l3": prep_s2(params["w3"], params["b3"], params["bn3"]),
        "l4": prep_s2(params["w4"], params["b4"], None),
    }


# ----------------------------------------------------------------------------
# Layer lowerings
# ----------------------------------------------------------------------------
def ct1_bn_relu(noise_flat, prep, out_dtype):
    """ConvTranspose2d(k=4, s=1, p=0) on a 1x1 input == one GEMM."""
    N = noise_flat.shape[0]
    k, cout = prep["k"], prep["cout"]
    y = matmul_bn_act(noise_flat, prep["b"], prep["scale"], prep["shift"],
                      "relu", out_dtype=out_dtype)
    return y.reshape(N, k, k, cout)


def conv_t4x4_s2_p1_bn_act(x, prep, activation, out_dtype):
    """ConvTranspose2d(k=4, s=2, p=1) + BN + act via phase decomposition.

    x: (N, H, W, Cin) -> (N, 2H, 2W, Cout)
    """
    N, H, W, Cin = x.shape
    cout = prep["cout"]

    xp = jnp.pad(x, ((0, 0), (1, 1), (1, 1), (0, 0)))
    pats = jnp.stack([xp[:, dy:dy + H, dx:dx + W, :]
                      for dy in range(3) for dx in range(3)], axis=3)
    a = pats.reshape(N * H * W, 9 * Cin)                      # (M, 9*Cin)

    b, scale, shift = prep["b"], prep["scale"], prep["shift"]
    if 4 * cout >= 128 or a.shape[0] <= 4 * cout:
        y = matmul_bn_act(a, b, scale, shift, activation, out_dtype=out_dtype)
    else:
        # Lane-dense orientation: long spatial dim on lanes, Cout on sublanes.
        yt = matmul_bn_act(b.T, a.T, scale, shift, activation,
                           out_dtype=out_dtype, scale_rows=True)
        y = yt.T
    y = y.reshape(N, H, W, 2, 2, cout)                        # (n,h,w,py,px,co)
    y = jnp.transpose(y, (0, 1, 3, 2, 4, 5))
    return y.reshape(N, 2 * H, 2 * W, cout)


# ----------------------------------------------------------------------------
# Generator: parameter setup + forward + pure-XLA reference
# ----------------------------------------------------------------------------
def init_generator_params(key, nz=100, d=32, c=1):
    ks = jax.random.split(key, 11)

    def norm(k_, shape, std=0.02):
        return std * jax.random.normal(k_, shape, dtype=jnp.float32)

    def bn(k_, ch):
        k1, k2, k3, k4 = jax.random.split(k_, 4)
        gamma = 1.0 + 0.1 * jax.random.normal(k1, (ch,), jnp.float32)
        beta = 0.05 * jax.random.normal(k2, (ch,), jnp.float32)
        mean = 0.05 * jax.random.normal(k3, (ch,), jnp.float32)
        var = 0.5 + jax.random.uniform(k4, (ch,), jnp.float32)
        return (gamma, beta, mean, var, 1e-5)

    return {
        # nn.ConvTranspose2d weight layout: (in_ch, out_ch, kH, kW)
        "w1": norm(ks[0], (nz, d * 4, 4, 4)), "b1": norm(ks[1], (d * 4,)),
        "bn1": bn(ks[2], d * 4),
        "w2": norm(ks[3], (d * 4, d * 2, 4, 4)), "b2": norm(ks[4], (d * 2,)),
        "bn2": bn(ks[5], d * 2),
        "w3": norm(ks[6], (d * 2, d, 4, 4)), "b3": norm(ks[7], (d,)),
        "bn3": bn(ks[8], d),
        "w4": norm(ks[9], (d, c, 4, 4)), "b4": norm(ks[10], (c,)),
    }


def generator_forward(noise_nchw, prepped):
    # TODO(synk): BatchNorm is implemented in eval mode (running statistics);
    # training-mode batch statistics would need an extra reduction pass.
    N, nz = noise_nchw.shape[0], noise_nchw.shape[1]
    noise = noise_nchw.reshape(N, nz)                 # (N, nz, 1, 1) -> (N, nz)
    # ct1: 1x1 -> 4x4
    x = ct1_bn_relu(noise, prepped["l1"], jnp.bfloat16)
    # ct2: 4x4 -> 8x8
    x = conv_t4x4_s2_p1_bn_act(x, prepped["l2"], "relu", jnp.bfloat16)
    # ct3: 8x8 -> 16x16
    x = conv_t4x4_s2_p1_bn_act(x, prepped["l3"], "relu", jnp.bfloat16)
    # ct4: 16x16 -> 32x32, tanh, no BN
    x = conv_t4x4_s2_p1_bn_act(x, prepped["l4"], "tanh", jnp.float32)
    return jnp.transpose(x, (0, 3, 1, 2))             # NHWC -> NCHW


def _conv_transpose_ref(x, w, b, stride, pad):
    """Pure-XLA ConvTranspose2d (PyTorch semantics) for verification only."""
    k = w.shape[2]
    wt = jnp.flip(w, axis=(2, 3)).transpose(1, 0, 2, 3)   # (Cout, Cin, kh, kw)
    y = jax.lax.conv_general_dilated(
        x, wt, window_strides=(1, 1),
        padding=[(k - 1 - pad, k - 1 - pad)] * 2,
        lhs_dilation=(stride, stride),
        dimension_numbers=("NCHW", "OIHW", "NCHW"))
    return y + b.reshape(1, -1, 1, 1)


def _bn_ref(x, bn):
    gamma, beta, mean, var, eps = bn
    inv = (gamma / jnp.sqrt(var + eps)).reshape(1, -1, 1, 1)
    return (x - mean.reshape(1, -1, 1, 1)) * inv + beta.reshape(1, -1, 1, 1)


def reference_forward(noise, p):
    x = jax.nn.relu(_bn_ref(_conv_transpose_ref(noise, p["w1"], p["b1"], 1, 0),
                            p["bn1"]))
    x = jax.nn.relu(_bn_ref(_conv_transpose_ref(x, p["w2"], p["b2"], 2, 1),
                            p["bn2"]))
    x = jax.nn.relu(_bn_ref(_conv_transpose_ref(x, p["w3"], p["b3"], 2, 1),
                            p["bn3"]))
    return jnp.tanh(_conv_transpose_ref(x, p["w4"], p["b4"], 2, 1))


if __name__ == "__main__":
    key = jax.random.PRNGKey(0)
    k_param, k_noise = jax.random.split(key)

    d, c, nz, batch = 32, 1, 100, 2
    params = init_generator_params(k_param, nz=nz, d=d, c=c)
    prepped = prepare_generator_params(params)        # one-time weight packing
    noise = jax.random.normal(k_noise, (batch, nz, 1, 1), dtype=jnp.float32)

    fwd = jax.jit(lambda n: generator_forward(n, prepped))
    out = jax.block_until_ready(fwd(noise))

    assert out.shape == (batch, c, 32, 32), out.shape
    assert bool(jnp.all(jnp.isfinite(out)))
    assert bool(jnp.all(jnp.abs(out) <= 1.0 + 1e-6))  # tanh range

    # Verify against pure-XLA conv_transpose reference (bf16 GEMM tolerance).
    ref = jax.block_until_ready(reference_forward(noise, params))
    max_err = float(jnp.max(jnp.abs(out - ref)))
    ref_scale = float(jnp.max(jnp.abs(ref)))
    assert max_err <= 0.08 * ref_scale + 1e-4, (max_err, ref_scale)

    print("KERNEL_OK")
</pallas_src>

<mosaic_0001>
module attributes {stable_mosaic.version = 11 : i64} {
  func.func @_gemm_single_k_kernel(%arg0: i32, %arg1: i32, %arg2: i32, %arg3: memref<16x128xbf16, #tpu.memory_space<vmem>>, %arg4: memref<128x1024xbf16, #tpu.memory_space<vmem>>, %arg5: memref<1x1024xf32, #tpu.memory_space<vmem>>, %arg6: memref<1x1024xf32, #tpu.memory_space<vmem>>, %arg7: memref<16x1024xbf16, #tpu.memory_space<vmem>>) attributes {dimension_semantics = [#tpu.dimension_semantics<parallel>, #tpu.dimension_semantics<parallel>, #tpu.dimension_semantics<arbitrary>], iteration_bounds = array<i64: 1, 2, 1>, scalar_prefetch = 0 : i64, scratch_operands = 0 : i64, tpu.core_type = #tpu.core_type<tc>, window_params = [{transform_indices = @transform_0, window_bounds = array<i64: 16, 128>}, {transform_indices = @transform_1, window_bounds = array<i64: 128, 1024>}, {transform_indices = @transform_2, window_bounds = array<i64: 1, 1024>}, {transform_indices = @transform_3, window_bounds = array<i64: 1, 1024>}, {transform_indices = @transform_4, window_bounds = array<i64: 16, 1024>}]} {
    %c0 = arith.constant 0 : index
    %c0_0 = arith.constant 0 : index
    %0 = vector.load %arg3[%c0, %c0_0] : memref<16x128xbf16, #tpu.memory_space<vmem>>, vector<16x128xbf16>
    %c0_1 = arith.constant 0 : index
    %c0_2 = arith.constant 0 : index
    %1 = vector.load %arg4[%c0_1, %c0_2] : memref<128x1024xbf16, #tpu.memory_space<vmem>>, vector<128x1024xbf16>
    %cst = arith.constant dense<0.000000e+00> : vector<16x1024xf32>
    %2 = tpu.matmul %0, %1, %cst {dimension_numbers = #tpu.dot_dimension_numbers<[1], [0], [0], [1], [0, 0, 1, 1], [], []>} : vector<16x128xbf16>, vector<128x1024xbf16>, vector<16x1024xf32> -> vector<16x1024xf32>
    %c0_3 = arith.constant 0 : index
    %c0_4 = arith.constant 0 : index
    %3 = vector.load %arg5[%c0_3, %c0_4] : memref<1x1024xf32, #tpu.memory_space<vmem>>, vector<1x1024xf32>
    %c0_5 = arith.constant 0 : index
    %c0_6 = arith.constant 0 : index
    %4 = vector.load %arg6[%c0_5, %c0_6] : memref<1x1024xf32, #tpu.memory_space<vmem>>, vector<1x1024xf32>
    %5 = vector.broadcast %3 : vector<1x1024xf32> to vector<16x1024xf32>
    %6 = arith.mulf %2, %5 : vector<16x1024xf32>
    %7 = vector.broadcast %4 : vector<1x1024xf32> to vector<16x1024xf32>
    %8 = arith.addf %6, %7 : vector<16x1024xf32>
    %cst_7 = arith.constant 0.000000e+00 : f32
    %9 = vector.broadcast %cst_7 : f32 to vector<16x1024xf32>
    %10 = arith.maximumf %8, %9 : vector<16x1024xf32>
    %11 = arith.truncf %10 : vector<16x1024xf32> to vector<16x1024xbf16>
    %c0_8 = arith.constant 0 : index
    %c0_9 = arith.constant 0 : index
    %12 = vector.load %arg7[%c0_8, %c0_9] : memref<16x1024xbf16, #tpu.memory_space<vmem>>, vector<16x1024xbf16>
    tpu.vector_store %arg7[%c0_8, %c0_9], %11 {strides = array<i32>} : memref<16x1024xbf16, #tpu.memory_space<vmem>>, vector<16x1024xbf16>,
    return
  }
  func.func @transform_0(%arg0: i32, %arg1: i32, %arg2: i32) -> (i32, i32) {
    %c0_i32 = arith.constant 0 : i32
    return %arg0, %arg2 : i32, i32
  }
  func.func @transform_1(%arg0: i32, %arg1: i32, %arg2: i32) -> (i32, i32) {
    %c0_i32 = arith.constant 0 : i32
    return %arg2, %arg1 : i32, i32
  }
  func.func @transform_2(%arg0: i32, %arg1: i32, %arg2: i32) -> (i32, i32) {
    %c0_i32 = arith.constant 0 : i32
    %c0_i32_0 = arith.constant 0 : i32
    return %c0_i32, %arg1 : i32, i32
  }
  func.func @transform_3(%arg0: i32, %arg1: i32, %arg2: i32) -> (i32, i32) {
    %c0_i32 = arith.constant 0 : i32
    %c0_i32_0 = arith.constant 0 : i32
    return %c0_i32, %arg1 : i32, i32
  }
  func.func @transform_4(%arg0: i32, %arg1: i32, %arg2: i32) -> (i32, i32) {
    %c0_i32 = arith.constant 0 : i32
    return %arg0, %arg1 : i32, i32
  }
}

module attributes {stable_mosaic.version = 11 : i64} {
  func.func @_gemm_single_k_kernel(%arg0: i32, %arg1: i32, %arg2: i32, %arg3: memref<32x1152xbf16, #tpu.memory_space<vmem>>, %arg4: memref<1152x128xbf16, #tpu.memory_space<vmem>>, %arg5: memref<1x128xf32, #tpu.memory_space<vmem>>, %arg6: memref<1x128xf32, #tpu.memory_space<vmem>>, %arg7: memref<32x128xbf16, #tpu.memory_space<vmem>>) attributes {dimension_semantics = [#tpu.dimension_semantics<parallel>, #tpu.dimension_semantics<parallel>, #tpu.dimension_semantics<arbitrary>], iteration_bounds = array<i64: 1, 2, 1>, scalar_prefetch = 0 : i64, scratch_operands = 0 : i64, tpu.core_type = #tpu.core_type<tc>, window_params = [{transform_indices = @transform_0, window_bounds = array<i64: 32, 1152>}, {transform_indices = @transform_1, window_bounds = array<i64: 1152, 128>}, {transform_indices = @transform_2, window_bounds = array<i64: 1, 128>}, {transform_indices = @transform_3, window_bounds = array<i64: 1, 128>}, {transform_indices = @transform_4, window_bounds = array<i64: 32, 128>}]} {
    %c0 = arith.constant 0 : index
    %c0_0 = arith.constant 0 : index
    %0 = vector.load %arg3[%c0, %c0_0] : memref<32x1152xbf16, #tpu.memory_space<vmem>>, vector<32x1152xbf16>
    %c0_1 = arith.constant 0 : index
    %c0_2 = arith.constant 0 : index
    %1 = vector.load %arg4[%c0_1, %c0_2] : memref<1152x128xbf16, #tpu.memory_space<vmem>>, vector<1152x128xbf16>
    %cst = arith.constant dense<0.000000e+00> : vector<32x128xf32>
    %2 = tpu.matmul %0, %1, %cst {dimension_numbers = #tpu.dot_dimension_numbers<[1], [0], [0], [1], [0, 0, 1, 1], [], []>} : vector<32x1152xbf16>, vector<1152x128xbf16>, vector<32x128xf32> -> vector<32x128xf32>
    %c0_3 = arith.constant 0 : index
    %c0_4 = arith.constant 0 : index
    %3 = vector.load %arg5[%c0_3, %c0_4] : memref<1x128xf32, #tpu.memory_space<vmem>>, vector<1x128xf32>
    %c0_5 = arith.constant 0 : index
    %c0_6 = arith.constant 0 : index
    %4 = vector.load %arg6[%c0_5, %c0_6] : memref<1x128xf32, #tpu.memory_space<vmem>>, vector<1x128xf32>
    %5 = vector.broadcast %3 : vector<1x128xf32> to vector<32x128xf32>
    %6 = arith.mulf %2, %5 : vector<32x128xf32>
    %7 = vector.broadcast %4 : vector<1x128xf32> to vector<32x128xf32>
    %8 = arith.addf %6, %7 : vector<32x128xf32>
    %cst_7 = arith.constant 0.000000e+00 : f32
    %9 = vector.broadcast %cst_7 : f32 to vector<32x128xf32>
    %10 = arith.maximumf %8, %9 : vector<32x128xf32>
    %11 = arith.truncf %10 : vector<32x128xf32> to vector<32x128xbf16>
    %c0_8 = arith.constant 0 : index
    %c0_9 = arith.constant 0 : index
    %12 = vector.load %arg7[%c0_8, %c0_9] : memref<32x128xbf16, #tpu.memory_space<vmem>>, vector<32x128xbf16>
    tpu.vector_store %arg7[%c0_8, %c0_9], %11 {strides = array<i32>} : memref<32x128xbf16, #tpu.memory_space<vmem>>, vector<32x128xbf16>,
    return
  }
  func.func @transform_0(%arg0: i32, %arg1: i32, %arg2: i32) -> (i32, i32) {
    %c0_i32 = arith.constant 0 : i32
    return %arg0, %arg2 : i32, i32
  }
  func.func @transform_1(%arg0: i32, %arg1: i32, %arg2: i32) -> (i32, i32) {
    %c0_i32 = arith.constant 0 : i32
    return %arg2, %arg1 : i32, i32
  }
  func.func @transform_2(%arg0: i32, %arg1: i32, %arg2: i32) -> (i32, i32) {
    %c0_i32 = arith.constant 0 : i32
    %c0_i32_0 = arith.constant 0 : i32
    return %c0_i32, %arg1 : i32, i32
  }
  func.func @transform_3(%arg0: i32, %arg1: i32, %arg2: i32) -> (i32, i32) {
    %c0_i32 = arith.constant 0 : i32
    %c0_i32_0 = arith.constant 0 : i32
    return %c0_i32, %arg1 : i32, i32
  }
  func.func @transform_4(%arg0: i32, %arg1: i32, %arg2: i32) -> (i32, i32) {
    %c0_i32 = arith.constant 0 : i32
    return %arg0, %arg1 : i32, i32
  }
}

module attributes {stable_mosaic.version = 11 : i64} {
  func.func @_gemm_single_k_kernel(%arg0: i32, %arg1: i32, %arg2: i32, %arg3: memref<128x640xbf16, #tpu.memory_space<vmem>>, %arg4: memref<640x128xbf16, #tpu.memory_space<vmem>>, %arg5: memref<1x128xf32, #tpu.memory_space<vmem>>, %arg6: memref<1x128xf32, #tpu.memory_space<vmem>>, %arg7: memref<128x128xbf16, #tpu.memory_space<vmem>>) attributes {dimension_semantics = [#tpu.dimension_semantics<parallel>, #tpu.dimension_semantics<parallel>, #tpu.dimension_semantics<arbitrary>], iteration_bounds = array<i64: 1, 1, 1>, scalar_prefetch = 0 : i64, scratch_operands = 0 : i64, tpu.core_type = #tpu.core_type<tc>, window_params = [{transform_indices = @transform_0, window_bounds = array<i64: 128, 640>}, {transform_indices = @transform_1, window_bounds = array<i64: 640, 128>}, {transform_indices = @transform_2, window_bounds = array<i64: 1, 128>}, {transform_indices = @transform_3, window_bounds = array<i64: 1, 128>}, {transform_indices = @transform_4, window_bounds = array<i64: 128, 128>}]} {
    %c0 = arith.constant 0 : index
    %c0_0 = arith.constant 0 : index
    %0 = vector.load %arg3[%c0, %c0_0] : memref<128x640xbf16, #tpu.memory_space<vmem>>, vector<128x640xbf16>
    %c0_1 = arith.constant 0 : index
    %c0_2 = arith.constant 0 : index
    %1 = vector.load %arg4[%c0_1, %c0_2] : memref<640x128xbf16, #tpu.memory_space<vmem>>, vector<640x128xbf16>
    %cst = arith.constant dense<0.000000e+00> : vector<128x128xf32>
    %2 = tpu.matmul %0, %1, %cst {dimension_numbers = #tpu.dot_dimension_numbers<[1], [0], [0], [1], [0, 0, 1, 1], [], []>} : vector<128x640xbf16>, vector<640x128xbf16>, vector<128x128xf32> -> vector<128x128xf32>
    %c0_3 = arith.constant 0 : index
    %c0_4 = arith.constant 0 : index
    %3 = vector.load %arg5[%c0_3, %c0_4] : memref<1x128xf32, #tpu.memory_space<vmem>>, vector<1x128xf32>
    %c0_5 = arith.constant 0 : index
    %c0_6 = arith.constant 0 : index
    %4 = vector.load %arg6[%c0_5, %c0_6] : memref<1x128xf32, #tpu.memory_space<vmem>>, vector<1x128xf32>
    %5 = vector.broadcast %3 : vector<1x128xf32> to vector<128x128xf32>
    %6 = arith.mulf %2, %5 : vector<128x128xf32>
    %7 = vector.broadcast %4 : vector<1x128xf32> to vector<128x128xf32>
    %8 = arith.addf %6, %7 : vector<128x128xf32>
    %cst_7 = arith.constant 0.000000e+00 : f32
    %9 = vector.broadcast %cst_7 : f32 to vector<128x128xf32>
    %10 = arith.maximumf %8, %9 : vector<128x128xf32>
    %11 = arith.truncf %10 : vector<128x128xf32> to vector<128x128xbf16>
    %c0_8 = arith.constant 0 : index
    %c0_9 = arith.constant 0 : index
    %12 = vector.load %arg7[%c0_8, %c0_9] : memref<128x128xbf16, #tpu.memory_space<vmem>>, vector<128x128xbf16>
    tpu.vector_store %arg7[%c0_8, %c0_9], %11 {strides = array<i32>} : memref<128x128xbf16, #tpu.memory_space<vmem>>, vector<128x128xbf16>,
    return
  }
  func.func @transform_0(%arg0: i32, %arg1: i32, %arg2: i32) -> (i32, i32) {
    %c0_i32 = arith.constant 0 : i32
    return %arg0, %arg2 : i32, i32
  }
  func.func @transform_1(%arg0: i32, %arg1: i32, %arg2: i32) -> (i32, i32) {
    %c0_i32 = arith.constant 0 : i32
    return %arg2, %arg1 : i32, i32
  }
  func.func @transform_2(%arg0: i32, %arg1: i32, %arg2: i32) -> (i32, i32) {
    %c0_i32 = arith.constant 0 : i32
    %c0_i32_0 = arith.constant 0 : i32
    return %c0_i32, %arg1 : i32, i32
  }
  func.func @transform_3(%arg0: i32, %arg1: i32, %arg2: i32) -> (i32, i32) {
    %c0_i32 = arith.constant 0 : i32
    %c0_i32_0 = arith.constant 0 : i32
    return %c0_i32, %arg1 : i32, i32
  }
  func.func @transform_4(%arg0: i32, %arg1: i32, %arg2: i32) -> (i32, i32) {
    %c0_i32 = arith.constant 0 : i32
    return %arg0, %arg1 : i32, i32
  }
}

module attributes {stable_mosaic.version = 11 : i64} {
  func.func @_gemm_single_k_kernel(%arg0: i32, %arg1: i32, %arg2: i32, %arg3: memref<16x384xbf16, #tpu.memory_space<vmem>>, %arg4: memref<384x256xbf16, #tpu.memory_space<vmem>>, %arg5: memref<16x1xf32, #tpu.memory_space<vmem>>, %arg6: memref<16x1xf32, #tpu.memory_space<vmem>>, %arg7: memref<16x256xf32, #tpu.memory_space<vmem>>) attributes {dimension_semantics = [#tpu.dimension_semantics<parallel>, #tpu.dimension_semantics<parallel>, #tpu.dimension_semantics<arbitrary>], iteration_bounds = array<i64: 1, 2, 1>, scalar_prefetch = 0 : i64, scratch_operands = 0 : i64, tpu.core_type = #tpu.core_type<tc>, window_params = [{transform_indices = @transform_0, window_bounds = array<i64: 16, 384>}, {transform_indices = @transform_1, window_bounds = array<i64: 384, 256>}, {transform_indices = @transform_2, window_bounds = array<i64: 16, 1>}, {transform_indices = @transform_3, window_bounds = array<i64: 16, 1>}, {transform_indices = @transform_4, window_bounds = array<i64: 16, 256>}]} {
    %c0 = arith.constant 0 : index
    %c0_0 = arith.constant 0 : index
    %0 = vector.load %arg3[%c0, %c0_0] : memref<16x384xbf16, #tpu.memory_space<vmem>>, vector<16x384xbf16>
    %c0_1 = arith.constant 0 : index
    %c0_2 = arith.constant 0 : index
    %1 = vector.load %arg4[%c0_1, %c0_2] : memref<384x256xbf16, #tpu.memory_space<vmem>>, vector<384x256xbf16>
    %cst = arith.constant dense<0.000000e+00> : vector<16x256xf32>
    %2 = tpu.matmul %0, %1, %cst {dimension_numbers = #tpu.dot_dimension_numbers<[1], [0], [0], [1], [0, 0, 1, 1], [], []>} : vector<16x384xbf16>, vector<384x256xbf16>, vector<16x256xf32> -> vector<16x256xf32>
    %c0_3 = arith.constant 0 : index
    %c0_4 = arith.constant 0 : index
    %3 = vector.load %arg5[%c0_3, %c0_4] : memref<16x1xf32, #tpu.memory_space<vmem>>, vector<16x1xf32>
    %c0_5 = arith.constant 0 : index
    %c0_6 = arith.constant 0 : index
    %4 = vector.load %arg6[%c0_5, %c0_6] : memref<16x1xf32, #tpu.memory_space<vmem>>, vector<16x1xf32>
    %5 = vector.broadcast %3 : vector<16x1xf32> to vector<16x256xf32>
    %6 = arith.mulf %2, %5 : vector<16x256xf32>
    %7 = vector.broadcast %4 : vector<16x1xf32> to vector<16x256xf32>
    %8 = arith.addf %6, %7 : vector<16x256xf32>
    %9 = math.tanh %8 : vector<16x256xf32>
    %c0_7 = arith.constant 0 : index
    %c0_8 = arith.constant 0 : index
    %10 = vector.load %arg7[%c0_7, %c0_8] : memref<16x256xf32, #tpu.memory_space<vmem>>, vector<16x256xf32>
    tpu.vector_store %arg7[%c0_7, %c0_8], %9 {strides = array<i32>} : memref<16x256xf32, #tpu.memory_space<vmem>>, vector<16x256xf32>,
    return
  }
  func.func @transform_0(%arg0: i32, %arg1: i32, %arg2: i32) -> (i32, i32) {
    %c0_i32 = arith.constant 0 : i32
    return %arg0, %arg2 : i32, i32
  }
  func.func @transform_1(%arg0: i32, %arg1: i32, %arg2: i32) -> (i32, i32) {
    %c0_i32 = arith.constant 0 : i32
    return %arg2, %arg1 : i32, i32
  }
  func.func @transform_2(%arg0: i32, %arg1: i32, %arg2: i32) -> (i32, i32) {
    %c0_i32 = arith.constant 0 : i32
    %c0_i32_0 = arith.constant 0 : i32
    return %arg0, %c0_i32 : i32, i32
  }
  func.func @transform_3(%arg0: i32, %arg1: i32, %arg2: i32) -> (i32, i32) {
    %c0_i32 = arith.constant 0 : i32
    %c0_i32_0 = arith.constant 0 : i32
    return %arg0, %c0_i32 : i32, i32
  }
  func.func @transform_4(%arg0: i32, %arg1: i32, %arg2: i32) -> (i32, i32) {
    %c0_i32 = arith.constant 0 : i32
    return %arg0, %arg1 : i32, i32
  }
}

</mosaic_0001>

<llo_original>
// kernel: _lambda_.4
$region0: #{_lambda_.4}
  #allocation0 [shape = 'u32[]', space=smem, size = 0x4, offset = 0x4, fixed_abs, tag = 'smem constant byte address 0x4 - core index']
  #allocation1 [shape = 'u32[72,128]{1,0:T(1,128)}', space=vmem, size = 0x9000, scoped, tag = 'internal scratch']
  %s0 = inlined_call_operand.vmem [shape: bf16[16,128], index: 0, kind: input, shape index: {}]
  %s1 = inlined_call_operand.hbm [shape: bf16[128,2048], index: 1, kind: input, shape index: {}]
  %s2 = inlined_call_operand.hbm [shape: f32[1,2048], index: 2, kind: input, shape index: {}]
  %s3 = inlined_call_operand.hbm [shape: f32[1,2048], index: 3, kind: input, shape index: {}]
  %s4 = inlined_call_operand.vmem [shape: bf16[16,2048], index: 4, kind: output, shape index: {}]
  %s5 = sld [smem:[#allocation0]]
  $region80: #{_lambda_.4} parent=0
    _
  %s7 = ssub.s32 1, %s5
  %s8 = scalar_select 0, %s7, %s5
  $region1: #{_lambda_.4} parent=0
    #allocation2 [shape = 'u8[524288]{0}', space=vmem, size = 0x80000, scoped, tag = 'input window, operand 1']
    #allocation3 [shape = 's32[2]{0}', space=sflag, size = 0x8, scoped, tag = 'scoped memory for _lambda_.4']
    #allocation4 [shape = 'u8[8192]{0}', space=vmem, size = 0x2000, scoped, tag = 'input window, operand 2']
    #allocation5 [shape = 's32[2]{0}', space=sflag, size = 0x8, scoped, tag = 'scoped memory for _lambda_.4']
    #allocation6 [shape = 'u8[8192]{0}', space=vmem, size = 0x2000, scoped, tag = 'input window, operand 3']
    #allocation7 [shape = 'u8[65536]{0}', space=vmem, size = 0x10000, scoped, tag = 'output window, operand 0']
    %9 = vsyncpa [#allocation3], 0
    %s10 = scalar_lea.sflag [#allocation3], 1
    %11 = vsyncpa %s10, 0
    %12 = vsyncpa [#allocation5], 0
    %s13 = scalar_lea.sflag [#allocation5], 1
    %14 = vsyncpa %s13, 0
    loop: start=0, step=1, limit=4
    $region2: #{_lambda_.4} parent=1 // loop_pre_header
      _
    $region3: #{_lambda_.4} parent=1 // loop_header
      %s16 = sphi 0, %s20
      %p17 = scmp.ge.s32.totalorder %s16, 4
      %s23 = sphi 0, %s42
      %s24 = sphi 0, %s38
      %s25 = sphi 0, %s34
      %s26 = sphi 0, %s23
      %s27 = sphi 0, %s24
      %s28 = sphi 0, %s25
      %s29 = sphi 0, %s26
      %s30 = sphi 0, %s27
      %s31 = sphi 0, %s28
      %s47 = sphi 0, %s49
      %s50 = sphi 0, %s47
      %s51 = sphi 0, %s50
      %s67 = sphi 0, %s51
      %s75 = sphi 0, %s77
      %s78 = sphi 0, %s75
      %s79 = sphi 0, %s78
      %s95 = sphi 0, %s79
      %s101 = sphi 0, %s103
      %s104 = sphi 0, %s101
      %s105 = sphi 0, %s104
      %s121 = sphi 0, %s105
      %s127 = sphi 0, %s129
      %s130 = sphi 0, %s127
      %s131 = sphi 0, %s130
      %s147 = sphi 0, %s131
      %s155 = sphi 0, %s157
      %s158 = sphi 0, %s155
      %s159 = sphi 0, %s158
      %s175 = sphi 0, %s159
    $region4: #{_lambda_.4} parent=1 // loop_header_branch
      %19 = sbr.rel (%p17) target = $region8
    $region5: #{_lambda_.4} parent=1 // loop_body
      %s21 = ssub.s32 %s16, 1
      %s22 = ssub.s32 %s16, 2
      %s32 = sadd.s32 1, %s25
      %p33 = scmp.ge.s32.totalorder %s32, 1
      %s34 = scalar_select %p33, 0, %s32
      %s35 = sadd.s32 1, %s24
      %s36 = scalar_select %p33, %s35, %s24
      %p37 = scmp.ge.s32.totalorder %s36, 2
      %s38 = scalar_select %p37, 0, %s36
      %s39 = sadd.s32 1, %s23
      %s40 = scalar_select %p37, %s39, %s23
      %p41 = scmp.ge.s32.totalorder %s40, 1
      %s42 = scalar_select %p41, 0, %s40
      %s43 = ssub.s32 %s23, %s42
      %s44 = ssub.s32 %s25, %s34
      %s45 = sor.u32 %s43, %s44
      %p46 = scmp.eq.s32.totalorder %s45, 0
      %s48 = sadd.s32 %s47, 1
      %s49 = scalar_select %p46, %s47, %s48
      %p52 = pneg %p46
      %p53 = scmp.eq.s32.totalorder %s16, 1
      %p54 = por %p52, %p53
      %p55 = scmp.ne.s32.totalorder %s47, %s50
      %p56 = scmp.eq.s32.totalorder %s16, 0
      %p57 = por %p55, %p56
      %p58 = scmp.ne.s32.totalorder %s47, %s50
      %p59 = scmp.eq.s32.totalorder %s21, 1
      %p60 = por %p58, %p59
      %p61 = scmp.ne.s32.totalorder %s50, %s51
      %p62 = scmp.eq.s32.totalorder %s21, 0
      %p63 = por %p61, %p62
      %p64 = scmp.ne.s32.totalorder %s50, %s51
      %p65 = scmp.eq.s32.totalorder %s22, 1
      %p66 = por %p64, %p65
      %p68 = scmp.ne.s32.totalorder %s51, %s67
      %p69 = scmp.eq.s32.totalorder %s22, 0
      %p70 = por %p68, %p69
      %s71 = ssub.s32 %s25, %s34
      %s72 = ssub.s32 %s24, %s38
      %s73 = sor.u32 %s71, %s72
      %p74 = scmp.eq.s32.totalorder %s73, 0
      %s76 = sadd.s32 %s75, 1
      %s77 = scalar_select %p74, %s75, %s76
      %p80 = pneg %p74
      %p81 = scmp.eq.s32.totalorder %s16, 1
      %p82 = por %p80, %p81
      %p83 = scmp.ne.s32.totalorder %s75, %s78
      %p84 = scmp.eq.s32.totalorder %s16, 0
      %p85 = por %p83, %p84
      %p86 = scmp.ne.s32.totalorder %s75, %s78
      %p87 = scmp.eq.s32.totalorder %s21, 1
      %p88 = por %p86, %p87
      %p89 = scmp.ne.s32.totalorder %s78, %s79
      %p90 = scmp.eq.s32.totalorder %s21, 0
      %p91 = por %p89, %p90
      %p92 = scmp.ne.s32.totalorder %s78, %s79
      %p93 = scmp.eq.s32.totalorder %s22, 1
      %p94 = por %p92, %p93
      %p96 = scmp.ne.s32.totalorder %s79, %s95
      %p97 = scmp.eq.s32.totalorder %s22, 0
      %p98 = por %p96, %p97
      %s99 = ssub.s32 %s24, %s38
      %p100 = scmp.eq.s32.totalorder %s99, 0
      %s102 = sadd.s32 %s101, 1
      %s103 = scalar_select %p100, %s101, %s102
      %p106 = pneg %p100
      %p107 = scmp.eq.s32.totalorder %s16, 1
      %p108 = por %p106, %p107
      %p109 = scmp.ne.s32.totalorder %s101, %s104
      %p110 = scmp.eq.s32.totalorder %s16, 0
      %p111 = por %p109, %p110
      %p112 = scmp.ne.s32.totalorder %s101, %s104
      %p113 = scmp.eq.s32.totalorder %s21, 1
      %p114 = por %p112, %p113
      %p115 = scmp.ne.s32.totalorder %s104, %s105
      %p116 = scmp.eq.s32.totalorder %s21, 0
      %p117 = por %p115, %p116
      %p118 = scmp.ne.s32.totalorder %s104, %s105
      %p119 = scmp.eq.s32.totalorder %s22, 1
      %p120 = por %p118, %p119
      %p122 = scmp.ne.s32.totalorder %s105, %s121
      %p123 = scmp.eq.s32.totalorder %s22, 0
      %p124 = por %p122, %p123
      %s125 = ssub.s32 %s24, %s38
      %p126 = scmp.eq.s32.totalorder %s125, 0
      %s128 = sadd.s32 %s127, 1
      %s129 = scalar_select %p126, %s127, %s128
      %p132 = pneg %p126
      %p133 = scmp.eq.s32.totalorder %s16, 1
      %p134 = por %p132, %p133
      %p135 = scmp.ne.s32.totalorder %s127, %s130
      %p136 = scmp.eq.s32.totalorder %s16, 0
      %p137 = por %p135, %p136
      %p138 = scmp.ne.s32.totalorder %s127, %s130
      %p139 = scmp.eq.s32.totalorder %s21, 1
      %p140 = por %p138, %p139
      %p141 = scmp.ne.s32.totalorder %s130, %s131
      %p142 = scmp.eq.s32.totalorder %s21, 0
      %p143 = por %p141, %p142
      %p144 = scmp.ne.s32.totalorder %s130, %s131
      %p145 = scmp.eq.s32.totalorder %s22, 1
      %p146 = por %p144, %p145
      %p148 = scmp.ne.s32.totalorder %s131, %s147
      %p149 = scmp.eq.s32.totalorder %s22, 0
      %p150 = por %p148, %p149
      %s151 = ssub.s32 %s23, %s42
      %s152 = ssub.s32 %s24, %s38
      %s153 = sor.u32 %s151, %s152
      %p154 = scmp.eq.s32.totalorder %s153, 0
      %s156 = sadd.s32 %s155, 1
      %s157 = scalar_select %p154, %s155, %s156
      %p160 = pneg %p154
      %p161 = scmp.eq.s32.totalorder %s16, 1
      %p162 = por %p160, %p161
      %p163 = scmp.ne.s32.totalorder %s155, %s158
      %p164 = scmp.eq.s32.totalorder %s16, 0
      %p165 = por %p163, %p164
      %p166 = scmp.ne.s32.totalorder %s155, %s158
      %p167 = scmp.eq.s32.totalorder %s21, 1
      %p168 = por %p166, %p167
      %p169 = scmp.ne.s32.totalorder %s158, %s159
      %p170 = scmp.eq.s32.totalorder %s21, 0
      %p171 = por %p169, %p170
      %p172 = scmp.ne.s32.totalorder %s158, %s159
      %p173 = scmp.eq.s32.totalorder %s22, 1
      %p174 = por %p172, %p173
      %p176 = scmp.ne.s32.totalorder %s159, %s175
      %p177 = scmp.eq.s32.totalorder %s22, 0
      %p178 = por %p176, %p177
      %p179 = scmp.le.s32.totalorder 1, %s16
      %p180 = scmp.lt.s32.totalorder %s16, 3
      %p181 = pnand %p179, %p180
      %p182 = pneg %p181
      // Predicated region
      $region9: #{_lambda_.4} parent=5 // pred_check
        _
      $region10: #{_lambda_.4} parent=5 // pred_check_branch
        %184 = sbr.rel (%p181) target = $region12
      $region11: #{_lambda_.4} parent=5 // pred_region
        %s185 = ssub.s32 %s16, 1
        // Predicated region
        $region13: #{_lambda_.4} parent=11 // pred_check
          %p186 = pneg %p63
        $region14: #{_lambda_.4} parent=11 // pred_check_branch
          %188 = sbr.rel (%p186) target = $region16
        $region15: #{_lambda_.4} parent=11 // pred_region
          %s189 = smul.u32 2, %s26
          %p190 = scmp.lt.s32.totalorder %s189, 1
          %s191 = scalar_select %p190, %s189, 1
          %p192 = scmp.lt.s32.totalorder %s28, 0
          %s193 = scalar_select %p192, %s28, 0
          %s194 = sadd.s32 %s193, %s191
          %s195 = smul.addr %s194, 4
          %s196 = scalar_lea.vmem %s0, %s195
          %s197 = smul.u32 2, %s26
        $region16: #{_lambda_.4} parent=11 // pred_fallthru
          _
      $region12: #{_lambda_.4} parent=5 // pred_fallthru
        _
      %p198 = scmp.lt.s32.totalorder %s16, 2
      // Predicated region
      $region17: #{_lambda_.4} parent=5 // pred_check
        %p199 = pneg %p198
      $region18: #{_lambda_.4} parent=5 // pred_check_branch
        %201 = sbr.rel (%p199) target = $region20
      $region19: #{_lambda_.4} parent=5 // pred_region
        // Predicated region
        $region21: #{_lambda_.4} parent=19 // pred_check
          %p202 = pneg %p85
        $region22: #{_lambda_.4} parent=19 // pred_check_branch
          %204 = sbr.rel (%p202) target = $region24
        $region23: #{_lambda_.4} parent=19 // pred_region
          %s205 = sand.u32 %s75, 1
          %s206 = scalar_lea.sflag [#allocation3], %s205
          %s207 = sand.u32 %s75, 1
          %s208 = smul.addr %s207, 512
          %s209 = scalar_lea.vmem [#allocation2], %s208
          %s210 = smul.u32 16, %s25
          %s211 = smul.u32 8, %s24
          %213 = vsyncadd %s206, 0
          %s214 = smul.addr %s210, 16
          %s215 = sadd.s32 %s211, %s214
          %s216 = smul.addr %s215, 4
          %s217 = scalar_lea.hbm %s1, %s216
          %s218 = sshll.u32 %s217, 4
          %s219 = int_to_ptr.hbm [resolvable:$true] %s218
          %s220 = sshll.u32 %s209, 4
          %s221 = int_to_ptr.vmem [resolvable:$true] %s220
          %226 = dma.hbm_to_vmem [thread:$0]  %s219, 8192, %s221, %s206, 1024, 512, 32
        $region24: #{_lambda_.4} parent=19 // pred_fallthru
          _
        // Predicated region
        $region25: #{_lambda_.4} parent=19 // pred_check
          %p227 = pneg %p111
        $region26: #{_lambda_.4} parent=19 // pred_check_branch
          %229 = sbr.rel (%p227) target = $region28
        $region27: #{_lambda_.4} parent=19 // pred_region
          %s230 = sand.u32 %s16, 1
          %s231 = scalar_lea.sflag [#allocation5], %s230
          %s232 = sand.u32 %s101, 1
          %s233 = smul.addr %s232, 8
          %s234 = scalar_lea.vmem [#allocation4], %s233
          %s235 = smul.u32 8, %s24
          %237 = vsyncadd %s231, 0
          %s238 = scalar_lea.hbm %s2, %s235
          %s240 = sshll.u32 %s238, 4
          %s241 = int_to_ptr.hbm [resolvable:$true] %s240
          %s242 = sshll.u32 %s234, 4
          %s243 = int_to_ptr.vmem [resolvable:$true] %s242
          %245 = dma.hbm_to_vmem [thread:$0]  %s241, 128, %s243, %s231
        $region28: #{_lambda_.4} parent=19 // pred_fallthru
          _
        // Predicated region
        $region29: #{_lambda_.4} parent=19 // pred_check
          %p246 = pneg %p137
        $region30: #{_lambda_.4} parent=19 // pred_check_branch
          %248 = sbr.rel (%p246) target = $region32
        $region31: #{_lambda_.4} parent=19 // pred_region
          %s249 = sand.u32 %s16, 1
          %s250 = scalar_lea.sflag [#allocation5], %s249
          %s251 = sand.u32 %s127, 1
          %s252 = smul.addr %s251, 8
          %s253 = scalar_lea.vmem [#allocation6], %s252
          %s254 = smul.u32 8, %s24
          %256 = vsyncadd %s250, 0
          %s257 = scalar_lea.hbm %s3, %s254
          %s259 = sshll.u32 %s257, 4
          %s260 = int_to_ptr.hbm [resolvable:$true] %s259
          %s261 = sshll.u32 %s253, 4
          %s262 = int_to_ptr.vmem [resolvable:$true] %s261
          %264 = dma.hbm_to_vmem [thread:$0]  %s260, 128, %s262, %s250
        $region32: #{_lambda_.4} parent=19 // pred_fallthru
          _
      $region20: #{_lambda_.4} parent=5 // pred_fallthru
        _
      %p265 = scmp.le.s32.totalorder 1, %s16
      %p266 = scmp.lt.s32.totalorder %s16, 3
      %p267 = pnand %p265, %p266
      %p268 = pneg %p267
      // Predicated region
      $region33: #{_lambda_.4} parent=5 // pred_check
        _
      $region34: #{_lambda_.4} parent=5 // pred_check_branch
        %270 = sbr.rel (%p267) target = $region36
      $region35: #{_lambda_.4} parent=5 // pred_region
        %s271 = ssub.s32 %s16, 1
        %s272 = sand.u32 %s78, 1
        %s273 = scalar_lea.sflag [#allocation3], %s272
        %s274 = sand.u32 %s78, 1
        %s275 = smul.addr %s274, 512
        %s276 = scalar_lea.vmem [#allocation2], %s275
        // Predicated region
        $region37: #{_lambda_.4} parent=35 // pred_check
          %p277 = pneg %p91
        $region38: #{_lambda_.4} parent=35 // pred_check_branch
          %279 = sbr.rel (%p277) target = $region40
        $region39: #{_lambda_.4} parent=35 // pred_region
          %281 = dma.done %s273, 8192
        $region40: #{_lambda_.4} parent=35 // pred_fallthru
          _
        %s282 = sand.u32 %s21, 1
        %s283 = scalar_lea.sflag [#allocation5], %s282
        %s284 = sand.u32 %s104, 1
        %s285 = smul.addr %s284, 8
        %s286 = scalar_lea.vmem [#allocation4], %s285
        // Predicated region
        $region41: #{_lambda_.4} parent=35 // pred_check
          %p287 = pneg %p117
        $region42: #{_lambda_.4} parent=35 // pred_check_branch
          %289 = sbr.rel (%p287) target = $region44
        $region43: #{_lambda_.4} parent=35 // pred_region
          %291 = dma.done %s283, 128
        $region44: #{_lambda_.4} parent=35 // pred_fallthru
          _
        %s292 = sand.u32 %s21, 1
        %s293 = scalar_lea.sflag [#allocation5], %s292
        %s294 = sand.u32 %s130, 1
        %s295 = smul.addr %s294, 8
        %s296 = scalar_lea.vmem [#allocation6], %s295
        // Predicated region
        $region45: #{_lambda_.4} parent=35 // pred_check
          %p297 = pneg %p143
        $region46: #{_lambda_.4} parent=35 // pred_check_branch
          %299 = sbr.rel (%p297) target = $region48
        $region47: #{_lambda_.4} parent=35 // pred_region
          %301 = dma.done %s293, 128
        $region48: #{_lambda_.4} parent=35 // pred_fallthru
          _
        %s302 = smul.u32 2, %s26
        %p303 = scmp.lt.s32.totalorder %s302, 1
        %s304 = scalar_select %p303, %s302, 1
        %p305 = scmp.lt.s32.totalorder %s28, 0
        %s306 = scalar_select %p305, %s28, 0
        %s307 = sadd.s32 %s306, %s304
        %s308 = smul.addr %s307, 4
        %s309 = scalar_lea.vmem %s0, %s308
        %p310 = pneg %p63
        %p311 = pneg %p60
        %s312 = sand.u32 %s78, 1
        %s313 = scalar_lea.sflag [#allocation3], %s312
        %s314 = sand.u32 %s78, 1
        %s315 = smul.addr %s314, 512
        %s316 = scalar_lea.vmem [#allocation2], %s315
        %p317 = pneg %p91
        %p318 = pneg %p88
        %s319 = sand.u32 %s21, 1
        %s320 = scalar_lea.sflag [#allocation5], %s319
        %s321 = sand.u32 %s104, 1
        %s322 = smul.addr %s321, 8
        %s323 = scalar_lea.vmem [#allocation4], %s322
        %p324 = pneg %p117
        %p325 = pneg %p114
        %s326 = sand.u32 %s21, 1
        %s327 = scalar_lea.sflag [#allocation5], %s326
        %s328 = sand.u32 %s130, 1
        %s329 = smul.addr %s328, 8
        %s330 = scalar_lea.vmem [#allocation6], %s329
        %p331 = pneg %p143
        %p332 = pneg %p140
        %p333 = pneg %p171
        %p334 = pneg %p168
        %s335 = sand.u32 %s158, 1
        %s336 = sand.u32 %s158, 1
        %s337 = smul.addr %s336, 64
        %s338 = scalar_lea.vmem [#allocation7], %s337
        %s339 = smul.u32 2, %s26
        %p340 = scmp.lt.s32.totalorder %s339, 1
        %s341 = scalar_select %p340, %s339, 1
        %p342 = scmp.lt.s32.totalorder %s28, 0
        %s343 = scalar_select %p342, %s28, 0
        %s344 = sadd.s32 %s343, %s341
        %s345 = smul.addr %s344, 4
        %s346 = scalar_lea.vmem %s0, %s345
        %s347 = smul.u32 2, %s26
        %s348 = smul.u32 16, %s28
        %s349 = smul.u32 8, %s27
        %s350 = smul.u32 8, %s27
        %s351 = smul.u32 8, %s27
        %s352 = smul.u32 2, %s26
        %s353 = smul.u32 8, %s27
        %v354 = vld [vmem:[%s346] sm:$0xf]
        %v355 = vld [vmem:[%s346 + $0x4] sm:$0xf]
        %v356 = vld [vmem:[%s276] sm:$0xff]
        %v357 = vld [vmem:[%s276 + $0x8] sm:$0xff]
        %v358 = vld [vmem:[%s276 + $0x10] sm:$0xff]
        %v359 = vld [vmem:[%s276 + $0x18] sm:$0xff]
        %v360 = vld [vmem:[%s276 + $0x20] sm:$0xff]
        %v361 = vld [vmem:[%s276 + $0x28] sm:$0xff]
        %v362 = vld [vmem:[%s276 + $0x30] sm:$0xff]
        %v363 = vld [vmem:[%s276 + $0x38] sm:$0xff]
        %v364 = vld [vmem:[%s276 + $0x40] sm:$0xff]
        %v365 = vld [vmem:[%s276 + $0x48] sm:$0xff]
        %v366 = vld [vmem:[%s276 + $0x50] sm:$0xff]
        %v367 = vld [vmem:[%s276 + $0x58] sm:$0xff]
        %v368 = vld [vmem:[%s276 + $0x60] sm:$0xff]
        %v369 = vld [vmem:[%s276 + $0x68] sm:$0xff]
        %v370 = vld [vmem:[%s276 + $0x70] sm:$0xff]
        %v371 = vld [vmem:[%s276 + $0x78] sm:$0xff]
        %v372 = vld [vmem:[%s276 + $0x80] sm:$0xff]
        %v373 = vld [vmem:[%s276 + $0x88] sm:$0xff]
        %v374 = vld [vmem:[%s276 + $0x90] sm:$0xff]
        %v375 = vld [vmem:[%s276 + $0x98] sm:$0xff]
        %v376 = vld [vmem:[%s276 + $0xa0] sm:$0xff]
        %v377 = vld [vmem:[%s276 + $0xa8] sm:$0xff]
        %v378 = vld [vmem:[%s276 + $0xb0] sm:$0xff]
        %v379 = vld [vmem:[%s276 + $0xb8] sm:$0xff]
        %v380 = vld [vmem:[%s276 + $0xc0] sm:$0xff]
        %v381 = vld [vmem:[%s276 + $0xc8] sm:$0xff]
        %v382 = vld [vmem:[%s276 + $0xd0] sm:$0xff]
        %v383 = vld [vmem:[%s276 + $0xd8] sm:$0xff]
        %v384 = vld [vmem:[%s276 + $0xe0] sm:$0xff]
        %v385 = vld [vmem:[%s276 + $0xe8] sm:$0xff]
        %v386 = vld [vmem:[%s276 + $0xf0] sm:$0xff]
        %v387 = vld [vmem:[%s276 + $0xf8] sm:$0xff]
        %v388 = vld [vmem:[%s276 + $0x100] sm:$0xff]
        %v389 = vld [vmem:[%s276 + $0x108] sm:$0xff]
        %v390 = vld [vmem:[%s276 + $0x110] sm:$0xff]
        %v391 = vld [vmem:[%s276 + $0x118] sm:$0xff]
        %v392 = vld [vmem:[%s276 + $0x120] sm:$0xff]
        %v393 = vld [vmem:[%s276 + $0x128] sm:$0xff]
        %v394 = vld [vmem:[%s276 + $0x130] sm:$0xff]
        %v395 = vld [vmem:[%s276 + $0x138] sm:$0xff]
        %v396 = vld [vmem:[%s276 + $0x140] sm:$0xff]
        %v397 = vld [vmem:[%s276 + $0x148] sm:$0xff]
        %v398 = vld [vmem:[%s276 + $0x150] sm:$0xff]
        %v399 = vld [vmem:[%s276 + $0x158] sm:$0xff]
        %v400 = vld [vmem:[%s276 + $0x160] sm:$0xff]
        %v401 = vld [vmem:[%s276 + $0x168] sm:$0xff]
        %v402 = vld [vmem:[%s276 + $0x170] sm:$0xff]
        %v403 = vld [vmem:[%s276 + $0x178] sm:$0xff]
        %v404 = vld [vmem:[%s276 + $0x180] sm:$0xff]
        %v405 = vld [vmem:[%s276 + $0x188] sm:$0xff]
        %v406 = vld [vmem:[%s276 + $0x190] sm:$0xff]
        %v407 = vld [vmem:[%s276 + $0x198] sm:$0xff]
        %v408 = vld [vmem:[%s276 + $0x1a0] sm:$0xff]
        %v409 = vld [vmem:[%s276 + $0x1a8] sm:$0xff]
        %v410 = vld [vmem:[%s276 + $0x1b0] sm:$0xff]
        %v411 = vld [vmem:[%s276 + $0x1b8] sm:$0xff]
        %v412 = vld [vmem:[%s276 + $0x1c0] sm:$0xff]
        %v413 = vld [vmem:[%s276 + $0x1c8] sm:$0xff]
        %v414 = vld [vmem:[%s276 + $0x1d0] sm:$0xff]
        %v415 = vld [vmem:[%s276 + $0x1d8] sm:$0xff]
        %v416 = vld [vmem:[%s276 + $0x1e0] sm:$0xff]
        %v417 = vld [vmem:[%s276 + $0x1e8] sm:$0xff]
        %v418 = vld [vmem:[%s276 + $0x1f0] sm:$0xff]
        %v419 = vld [vmem:[%s276 + $0x1f8] sm:$0xff]
        %v422 = vunpack.c.l.b16 %v354
        %v423 = vunpack.c.l.b16 %v355
        %v424 = vpack.c.b16 %v423, %v422
        %v490 = vunpack.c.l.b16 %v356
        %v491 = vunpack.c.h.b16 %v356
        %v492 = vunpack.c.l.b16 %v357
        %v493 = vunpack.c.h.b16 %v357
        %v494 = vunpack.c.l.b16 %v358
        %v495 = vunpack.c.h.b16 %v358
        %v496 = vunpack.c.l.b16 %v359
        %v497 = vunpack.c.h.b16 %v359
        %v498 = vunpack.c.l.b16 %v360
        %v499 = vunpack.c.h.b16 %v360
        %v500 = vunpack.c.l.b16 %v361
        %v501 = vunpack.c.h.b16 %v361
        %v502 = vunpack.c.l.b16 %v362
        %v503 = vunpack.c.h.b16 %v362
        %v504 = vunpack.c.l.b16 %v363
        %v505 = vunpack.c.h.b16 %v363
        %v506 = vunpack.c.l.b16 %v364
        %v507 = vunpack.c.h.b16 %v364
        %v508 = vunpack.c.l.b16 %v365
        %v509 = vunpack.c.h.b16 %v365
        %v510 = vunpack.c.l.b16 %v366
        %v511 = vunpack.c.h.b16 %v366
        %v512 = vunpack.c.l.b16 %v367
        %v513 = vunpack.c.h.b16 %v367
        %v514 = vunpack.c.l.b16 %v368
        %v515 = vunpack.c.h.b16 %v368
        %v516 = vunpack.c.l.b16 %v369
        %v517 = vunpack.c.h.b16 %v369
        %v518 = vunpack.c.l.b16 %v370
        %v519 = vunpack.c.h.b16 %v370
        %v520 = vunpack.c.l.b16 %v371
        %v521 = vunpack.c.h.b16 %v371
        %v522 = vunpack.c.l.b16 %v372
        %v523 = vunpack.c.h.b16 %v372
        %v524 = vunpack.c.l.b16 %v373
        %v525 = vunpack.c.h.b16 %v373
        %v526 = vunpack.c.l.b16 %v374
        %v527 = vunpack.c.h.b16 %v374
        %v528 = vunpack.c.l.b16 %v375
        %v529 = vunpack.c.h.b16 %v375
        %v530 = vunpack.c.l.b16 %v376
        %v531 = vunpack.c.h.b16 %v376
        %v532 = vunpack.c.l.b16 %v377
        %v533 = vunpack.c.h.b16 %v377
        %v534 = vunpack.c.l.b16 %v378
        %v535 = vunpack.c.h.b16 %v378
        %v536 = vunpack.c.l.b16 %v379
        %v537 = vunpack.c.h.b16 %v379
        %v538 = vunpack.c.l.b16 %v380
        %v539 = vunpack.c.h.b16 %v380
        %v540 = vunpack.c.l.b16 %v381
        %v541 = vunpack.c.h.b16 %v381
        %v542 = vunpack.c.l.b16 %v382
        %v543 = vunpack.c.h.b16 %v382
        %v544 = vunpack.c.l.b16 %v383
        %v545 = vunpack.c.h.b16 %v383
        %v546 = vunpack.c.l.b16 %v384
        %v547 = vunpack.c.h.b16 %v384
        %v548 = vunpack.c.l.b16 %v385
        %v549 = vunpack.c.h.b16 %v385
        %v550 = vunpack.c.l.b16 %v386
        %v551 = vunpack.c.h.b16 %v386
        %v552 = vunpack.c.l.b16 %v387
        %v553 = vunpack.c.h.b16 %v387
        %v554 = vunpack.c.l.b16 %v388
        %v555 = vunpack.c.h.b16 %v388
        %v556 = vunpack.c.l.b16 %v389
        %v557 = vunpack.c.h.b16 %v389
        %v558 = vunpack.c.l.b16 %v390
        %v559 = vunpack.c.h.b16 %v390
        %v560 = vunpack.c.l.b16 %v391
        %v561 = vunpack.c.h.b16 %v391
        %v562 = vunpack.c.l.b16 %v392
        %v563 = vunpack.c.h.b16 %v392
        %v564 = vunpack.c.l.b16 %v393
        %v565 = vunpack.c.h.b16 %v393
        %v566 = vunpack.c.l.b16 %v394
        %v567 = vunpack.c.h.b16 %v394
        %v568 = vunpack.c.l.b16 %v395
        %v569 = vunpack.c.h.b16 %v395
        %v570 = vunpack.c.l.b16 %v396
        %v571 = vunpack.c.h.b16 %v396
        %v572 = vunpack.c.l.b16 %v397
        %v573 = vunpack.c.h.b16 %v397
        %v574 = vunpack.c.l.b16 %v398
        %v575 = vunpack.c.h.b16 %v398
        %v576 = vunpack.c.l.b16 %v399
        %v577 = vunpack.c.h.b16 %v399
        %v578 = vunpack.c.l.b16 %v400
        %v579 = vunpack.c.h.b16 %v400
        %v580 = vunpack.c.l.b16 %v401
        %v581 = vunpack.c.h.b16 %v401
        %v582 = vunpack.c.l.b16 %v402
        %v583 = vunpack.c.h.b16 %v402
        %v584 = vunpack.c.l.b16 %v403
        %v585 = vunpack.c.h.b16 %v403
        %v586 = vunpack.c.l.b16 %v404
        %v587 = vunpack.c.h.b16 %v404
        %v588 = vunpack.c.l.b16 %v405
        %v589 = vunpack.c.h.b16 %v405
        %v590 = vunpack.c.l.b16 %v406
        %v591 = vunpack.c.h.b16 %v406
        %v592 = vunpack.c.l.b16 %v407
        %v593 = vunpack.c.h.b16 %v407
        %v594 = vunpack.c.l.b16 %v408
        %v595 = vunpack.c.h.b16 %v408
        %v596 = vunpack.c.l.b16 %v409
        %v597 = vunpack.c.h.b16 %v409
        %v598 = vunpack.c.l.b16 %v410
        %v599 = vunpack.c.h.b16 %v410
        %v600 = vunpack.c.l.b16 %v411
        %v601 = vunpack.c.h.b16 %v411
        %v602 = vunpack.c.l.b16 %v412
        %v603 = vunpack.c.h.b16 %v412
        %v604 = vunpack.c.l.b16 %v413
        %v605 = vunpack.c.h.b16 %v413
        %v606 = vunpack.c.l.b16 %v414
        %v607 = vunpack.c.h.b16 %v414
        %v608 = vunpack.c.l.b16 %v415
        %v609 = vunpack.c.h.b16 %v415
        %v610 = vunpack.c.l.b16 %v416
        %v611 = vunpack.c.h.b16 %v416
        %v612 = vunpack.c.l.b16 %v417
        %v613 = vunpack.c.h.b16 %v417
        %v614 = vunpack.c.l.b16 %v418
        %v615 = vunpack.c.h.b16 %v418
        %v616 = vunpack.c.l.b16 %v419
        %v617 = vunpack.c.h.b16 %v419
        %v618 = vpack.c.b16 %v498, %v490
        %v619 = vpack.c.b16 %v499, %v491
        %v620 = vpack.c.b16 %v500, %v492
        %v621 = vpack.c.b16 %v501, %v493
        %v622 = vpack.c.b16 %v502, %v494
        %v623 = vpack.c.b16 %v503, %v495
        %v624 = vpack.c.b16 %v504, %v496
        %v625 = vpack.c.b16 %v505, %v497
        %v626 = vpack.c.b16 %v514, %v506
        %v627 = vpack.c.b16 %v515, %v507
        %v628 = vpack.c.b16 %v516, %v508
        %v629 = vpack.c.b16 %v517, %v509
        %v630 = vpack.c.b16 %v518, %v510
        %v631 = vpack.c.b16 %v519, %v511
        %v632 = vpack.c.b16 %v520, %v512
        %v633 = vpack.c.b16 %v521, %v513
        %v634 = vpack.c.b16 %v530, %v522
        %v635 = vpack.c.b16 %v531, %v523
        %v636 = vpack.c.b16 %v532, %v524
        %v637 = vpack.c.b16 %v533, %v525
        %v638 = vpack.c.b16 %v534, %v526
        %v639 = vpack.c.b16 %v535, %v527
        %v640 = vpack.c.b16 %v536, %v528
        %v641 = vpack.c.b16 %v537, %v529
        %v642 = vpack.c.b16 %v546, %v538
        %v643 = vpack.c.b16 %v547, %v539
        %v644 = vpack.c.b16 %v548, %v540
        %v645 = vpack.c.b16 %v549, %v541
        %v646 = vpack.c.b16 %v550, %v542
        %v647 = vpack.c.b16 %v551, %v543
        %v648 = vpack.c.b16 %v552, %v544
        %v649 = vpack.c.b16 %v553, %v545
        %v650 = vpack.c.b16 %v562, %v554
        %v651 = vpack.c.b16 %v563, %v555
        %v652 = vpack.c.b16 %v564, %v556
        %v653 = vpack.c.b16 %v565, %v557
        %v654 = vpack.c.b16 %v566, %v558
        %v655 = vpack.c.b16 %v567, %v559
        %v656 = vpack.c.b16 %v568, %v560
        %v657 = vpack.c.b16 %v569, %v561
        %v658 = vpack.c.b16 %v578, %v570
        %v659 = vpack.c.b16 %v579, %v571
        %v660 = vpack.c.b16 %v580, %v572
        %v661 = vpack.c.b16 %v581, %v573
        %v662 = vpack.c.b16 %v582, %v574
        %v663 = vpack.c.b16 %v583, %v575
        %v664 = vpack.c.b16 %v584, %v576
        %v665 = vpack.c.b16 %v585, %v577
        %v666 = vpack.c.b16 %v594, %v586
        %v667 = vpack.c.b16 %v595, %v587
        %v668 = vpack.c.b16 %v596, %v588
        %v669 = vpack.c.b16 %v597, %v589
        %v670 = vpack.c.b16 %v598, %v590
        %v671 = vpack.c.b16 %v599, %v591
        %v672 = vpack.c.b16 %v600, %v592
        %v673 = vpack.c.b16 %v601, %v593
        %v674 = vpack.c.b16 %v610, %v602
        %v675 = vpack.c.b16 %v611, %v603
        %v676 = vpack.c.b16 %v612, %v604
        %v677 = vpack.c.b16 %v613, %v605
        %v678 = vpack.c.b16 %v614, %v606
        %v679 = vpack.c.b16 %v615, %v607
        %v680 = vpack.c.b16 %v616, %v608
        %v681 = vpack.c.b16 %v617, %v609
        %746 = vmatpush.bf16.msra.mxu0 %v674
        %747 = vmatpush.bf16.msra.mxu0 %v666
        %748 = vmatpush.bf16.msra.mxu0 %v658
        %749 = vmatpush.bf16.msra.mxu0 %v650
        %750 = vmatpush.bf16.msra.mxu0 %v642
        %751 = vmatpush.bf16.msra.mxu0 %v634
        %752 = vmatpush.bf16.msra.mxu0 %v626
        %753 = vmatpush.bf16.msra.mxu0 %v618
        %754 = vmatmul.bf16.gmra.mxu0 %v424
        %v755 = vpop.f32.mrf.mxu0
        %v756 = vadd.f32 0.0, %v755
        %v757 = vpop.f32.mrf.mxu0
        %v758 = vadd.f32 0.0, %v757
        %759 = vdwg.mxu0
        %760 = vmatpush.bf16.msra.mxu0 %v675
        %761 = vmatpush.bf16.msra.mxu0 %v667
        %762 = vmatpush.bf16.msra.mxu0 %v659
        %763 = vmatpush.bf16.msra.mxu0 %v651
        %764 = vmatpush.bf16.msra.mxu0 %v643
        %765 = vmatpush.bf16.msra.mxu0 %v635
        %766 = vmatpush.bf16.msra.mxu0 %v627
        %767 = vmatpush.bf16.msra.mxu0 %v619
        %768 = vmatmul.bf16.gmra.mxu0 %v424
        %v769 = vpop.f32.mrf.mxu0
        %v770 = vadd.f32 0.0, %v769
        %v771 = vpop.f32.mrf.mxu0
        %v772 = vadd.f32 0.0, %v771
        %773 = vdwg.mxu0
        %774 = vmatpush.bf16.msra.mxu0 %v676
        %775 = vmatpush.bf16.msra.mxu0 %v668
        %776 = vmatpush.bf16.msra.mxu0 %v660
        %777 = vmatpush.bf16.msra.mxu0 %v652
        %778 = vmatpush.bf16.msra.mxu0 %v644
        %779 = vmatpush.bf16.msra.mxu0 %v636
        %780 = vmatpush.bf16.msra.mxu0 %v628
        %781 = vmatpush.bf16.msra.mxu0 %v620
        %782 = vmatmul.bf16.gmra.mxu0 %v424
        %v783 = vpop.f32.mrf.mxu0
        %v784 = vadd.f32 0.0, %v783
        %v785 = vpop.f32.mrf.mxu0
        %v786 = vadd.f32 0.0, %v785
        %787 = vdwg.mxu0
        %788 = vmatpush.bf16.msra.mxu0 %v677
        %789 = vmatpush.bf16.msra.mxu0 %v669
        %790 = vmatpush.bf16.msra.mxu0 %v661
        %791 = vmatpush.bf16.msra.mxu0 %v653
        %792 = vmatpush.bf16.msra.mxu0 %v645
        %793 = vmatpush.bf16.msra.mxu0 %v637
        %794 = vmatpush.bf16.msra.mxu0 %v629
        %795 = vmatpush.bf16.msra.mxu0 %v621
        %796 = vmatmul.bf16.gmra.mxu0 %v424
        %v797 = vpop.f32.mrf.mxu0
        %v798 = vadd.f32 0.0, %v797
        %v799 = vpop.f32.mrf.mxu0
        %v800 = vadd.f32 0.0, %v799
        %801 = vdwg.mxu0
        %802 = vmatpush.bf16.msra.mxu0 %v678
        %803 = vmatpush.bf16.msra.mxu0 %v670
        %804 = vmatpush.bf16.msra.mxu0 %v662
        %805 = vmatpush.bf16.msra.mxu0 %v654
        %806 = vmatpush.bf16.msra.mxu0 %v646
        %807 = vmatpush.bf16.msra.mxu0 %v638
        %808 = vmatpush.bf16.msra.mxu0 %v630
        %809 = vmatpush.bf16.msra.mxu0 %v622
        %810 = vmatmul.bf16.gmra.mxu0 %v424
        %v811 = vpop.f32.mrf.mxu0
        %v812 = vadd.f32 0.0, %v811
        %v813 = vpop.f32.mrf.mxu0
        %v814 = vadd.f32 0.0, %v813
        %815 = vdwg.mxu0
        %816 = vmatpush.bf16.msra.mxu0 %v679
        %817 = vmatpush.bf16.msra.mxu0 %v671
        %818 = vmatpush.bf16.msra.mxu0 %v663
        %819 = vmatpush.bf16.msra.mxu0 %v655
        %820 = vmatpush.bf16.msra.mxu0 %v647
        %821 = vmatpush.bf16.msra.mxu0 %v639
        %822 = vmatpush.bf16.msra.mxu0 %v631
        %823 = vmatpush.bf16.msra.mxu0 %v623
        %824 = vmatmul.bf16.gmra.mxu0 %v424
        %v825 = vpop.f32.mrf.mxu0
        %v826 = vadd.f32 0.0, %v825
        %v827 = vpop.f32.mrf.mxu0
        %v828 = vadd.f32 0.0, %v827
        %829 = vdwg.mxu0
        %830 = vmatpush.bf16.msra.mxu0 %v680
        %831 = vmatpush.bf16.msra.mxu0 %v672
        %832 = vmatpush.bf16.msra.mxu0 %v664
        %833 = vmatpush.bf16.msra.mxu0 %v656
        %834 = vmatpush.bf16.msra.mxu0 %v648
        %835 = vmatpush.bf16.msra.mxu0 %v640
        %836 = vmatpush.bf16.msra.mxu0 %v632
        %837 = vmatpush.bf16.msra.mxu0 %v624
        %838 = vmatmul.bf16.gmra.mxu0 %v424
        %v839 = vpop.f32.mrf.mxu0
        %v840 = vadd.f32 0.0, %v839
        %v841 = vpop.f32.mrf.mxu0
        %v842 = vadd.f32 0.0, %v841
        %843 = vdwg.mxu0
        %844 = vmatpush.bf16.msra.mxu0 %v681
        %845 = vmatpush.bf16.msra.mxu0 %v673
        %846 = vmatpush.bf16.msra.mxu0 %v665
        %847 = vmatpush.bf16.msra.mxu0 %v657
        %848 = vmatpush.bf16.msra.mxu0 %v649
        %849 = vmatpush.bf16.msra.mxu0 %v641
        %850 = vmatpush.bf16.msra.mxu0 %v633
        %851 = vmatpush.bf16.msra.mxu0 %v625
        %852 = vmatmul.bf16.gmra.mxu0 %v424
        %v853 = vpop.f32.mrf.mxu0
        %v854 = vadd.f32 0.0, %v853
        %v855 = vpop.f32.mrf.mxu0
        %v856 = vadd.f32 0.0, %v855
        %857 = vdwg.mxu0
        %v858 = vld [vmem:[%s286] sm:$0xff]
        %v859 = vld [vmem:[%s296] sm:$0xff]
        %v861 = vperm.slane %v858, 0
        %v862 = vperm.slane %v858, 1
        %v863 = vperm.slane %v858, 2
        %v864 = vperm.slane %v858, 3
        %v865 = vperm.slane %v858, 4
        %v866 = vperm.slane %v858, 5
        %v867 = vperm.slane %v858, 6
        %v868 = vperm.slane %v858, 7
        %v877 = vmul.f32 %v756, %v861
        %v878 = vmul.f32 %v770, %v862
        %v879 = vmul.f32 %v784, %v863
        %v880 = vmul.f32 %v798, %v864
        %v881 = vmul.f32 %v812, %v865
        %v882 = vmul.f32 %v826, %v866
        %v883 = vmul.f32 %v840, %v867
        %v884 = vmul.f32 %v854, %v868
        %v885 = vmul.f32 %v758, %v861
        %v886 = vmul.f32 %v772, %v862
        %v887 = vmul.f32 %v786, %v863
        %v888 = vmul.f32 %v800, %v864
        %v889 = vmul.f32 %v814, %v865
        %v890 = vmul.f32 %v828, %v866
        %v891 = vmul.f32 %v842, %v867
        %v892 = vmul.f32 %v856, %v868
        %v894 = vperm.slane %v859, 0
        %v895 = vperm.slane %v859, 1
        %v896 = vperm.slane %v859, 2
        %v897 = vperm.slane %v859, 3
        %v898 = vperm.slane %v859, 4
        %v899 = vperm.slane %v859, 5
        %v900 = vperm.slane %v859, 6
        %v901 = vperm.slane %v859, 7
        %v910 = vadd.f32 %v877, %v894
        %v911 = vadd.f32 %v878, %v895
        %v912 = vadd.f32 %v879, %v896
        %v913 = vadd.f32 %v880, %v897
        %v914 = vadd.f32 %v881, %v898
        %v915 = vadd.f32 %v882, %v899
        %v916 = vadd.f32 %v883, %v900
        %v917 = vadd.f32 %v884, %v901
        %v918 = vadd.f32 %v885, %v894
        %v919 = vadd.f32 %v886, %v895
        %v920 = vadd.f32 %v887, %v896
        %v921 = vadd.f32 %v888, %v897
        %v922 = vadd.f32 %v889, %v898
        %v923 = vadd.f32 %v890, %v899
        %v924 = vadd.f32 %v891, %v900
        %v925 = vadd.f32 %v892, %v901
        %v926 = vmax.f32 %v910, 0.0
        %v927 = vmax.f32 %v911, 0.0
        %v928 = vmax.f32 %v912, 0.0
        %v929 = vmax.f32 %v913, 0.0
        %v930 = vmax.f32 %v914, 0.0
        %v931 = vmax.f32 %v915, 0.0
        %v932 = vmax.f32 %v916, 0.0
        %v933 = vmax.f32 %v917, 0.0
        %v934 = vmax.f32 %v918, 0.0
        %v935 = vmax.f32 %v919, 0.0
        %v936 = vmax.f32 %v920, 0.0
        %v937 = vmax.f32 %v921, 0.0
        %v938 = vmax.f32 %v922, 0.0
        %v939 = vmax.f32 %v923, 0.0
        %v940 = vmax.f32 %v924, 0.0
        %v941 = vmax.f32 %v925, 0.0
        %v942 = vpack.c.bf16 %v927, %v926
        %v943 = vpack.c.bf16 %v929, %v928
        %v944 = vpack.c.bf16 %v931, %v930
        %v945 = vpack.c.bf16 %v933, %v932
        %v946 = vpack.c.bf16 %v935, %v934
        %v947 = vpack.c.bf16 %v937, %v936
        %v948 = vpack.c.bf16 %v939, %v938
        %v949 = vpack.c.bf16 %v941, %v940
        %950 = vst [vmem:[%s338] sm:$0xff] %v942
        %951 = vst [vmem:[%s338 + $0x8] sm:$0xff] %v943
        %952 = vst [vmem:[%s338 + $0x10] sm:$0xff] %v944
        %953 = vst [vmem:[%s338 + $0x18] sm:$0xff] %v945
        %954 = vst [vmem:[%s338 + $0x20] sm:$0xff] %v946
        %955 = vst [vmem:[%s338 + $0x28] sm:$0xff] %v947
        %956 = vst [vmem:[%s338 + $0x30] sm:$0xff] %v948
        %957 = vst [vmem:[%s338 + $0x38] sm:$0xff] %v949
        %s958 = sand.u32 %s158, 1
        %s959 = sand.u32 %s158, 1
        %s960 = smul.addr %s959, 64
        %s961 = scalar_lea.vmem [#allocation7], %s960
        // Predicated region
        $region49: #{_lambda_.4} parent=35 // pred_check
          %p962 = pneg %p168
        $region50: #{_lambda_.4} parent=35 // pred_check_branch
          %964 = sbr.rel (%p962) target = $region52
        $region51: #{_lambda_.4} parent=35 // pred_region
          %s965 = smul.u32 2, %s26
          %s966 = smul.u32 8, %s27
          %s967 = smul.addr %s965, 16
          %s968 = sadd.s32 %s966, %s967
          %s969 = smul.addr %s968, 4
          %s970 = scalar_lea.vmem %s4, %s969
          // Predicated region
          $region53: #{_lambda_.4} parent=51 // pred_check
            _
          $region54: #{_lambda_.4} parent=51 // pred_check_branch
            %972 = sbr.rel (0) target = $region56
          $region55: #{_lambda_.4} parent=51 // pred_region
            // Predicated region
            $region57: #{_lambda_.4} parent=55 // pred_check
              _
            $region58: #{_lambda_.4} parent=55 // pred_check_branch
              %974 = sbr.rel (0) target = $region60
            $region59: #{_lambda_.4} parent=55 // pred_region
              loop: start=0, step=1, limit=1
              $region61: #{_lambda_.4} parent=59 // loop_pre_header
                _
              $region62: #{_lambda_.4} parent=59 // loop_header
                %s976 = sphi 0, %s980
                %p977 = scmp.ge.s32.totalorder %s976, 1
                %s981 = sphi %s961, %s961
                %s982 = sphi %s970, %s970
              $region63: #{_lambda_.4} parent=59 // loop_header_branch
                %979 = sbr.rel (%p977) target = $region67
              $region64: #{_lambda_.4} parent=59 // loop_body
                %v983 = vld [vmem:[%s981] sm:$0xff]
                %984 = vst [vmem:[%s982] sm:$0xff] %v983
                %v985 = vld [vmem:[%s981 + $0x8] sm:$0xff]
                %986 = vst [vmem:[%s982 + $0x8] sm:$0xff] %v985
                %v987 = vld [vmem:[%s981 + $0x10] sm:$0xff]
                %988 = vst [vmem:[%s982 + $0x10] sm:$0xff] %v987
                %v989 = vld [vmem:[%s981 + $0x18] sm:$0xff]
                %990 = vst [vmem:[%s982 + $0x18] sm:$0xff] %v989
                %v991 = vld [vmem:[%s981 + $0x20] sm:$0xff]
                %992 = vst [vmem:[%s982 + $0x40] sm:$0xff] %v991
                %v993 = vld [vmem:[%s981 + $0x28] sm:$0xff]
                %994 = vst [vmem:[%s982 + $0x48] sm:$0xff] %v993
                %v995 = vld [vmem:[%s981 + $0x30] sm:$0xff]
                %996 = vst [vmem:[%s982 + $0x50] sm:$0xff] %v995
                %v997 = vld [vmem:[%s981 + $0x38] sm:$0xff]
                %998 = vst [vmem:[%s982 + $0x58] sm:$0xff] %v997
              $region65: #{_lambda_.4} parent=59 // loop_footer
                %s980 = sadd.s32 1, %s976
              $region66: #{_lambda_.4} parent=59 // loop_footer_branch
                %975 = sbr.rel target = $region62
              $region67: #{_lambda_.4} parent=59 // loop_exit
                _
            $region60: #{_lambda_.4} parent=55 // pred_fallthru
              _
            // Predicated region
            $region68: #{_lambda_.4} parent=55 // pred_check
              _
            $region69: #{_lambda_.4} parent=55 // pred_check_branch
              %1000 = sbr.rel target = $region71
            $region70: #{_lambda_.4} parent=55 // pred_region
              _
            $region71: #{_lambda_.4} parent=55 // pred_fallthru
              _
          $region56: #{_lambda_.4} parent=51 // pred_fallthru
            _
          %1001 = vnop
        $region52: #{_lambda_.4} parent=35 // pred_fallthru
          _
      $region36: #{_lambda_.4} parent=5 // pred_fallthru
        _
      %p1002 = scmp.le.s32.totalorder 2, %s16
      // Predicated region
      $region72: #{_lambda_.4} parent=5 // pred_check
        %p1003 = pneg %p1002
      $region73: #{_lambda_.4} parent=5 // pred_check_branch
        %1005 = sbr.rel (%p1003) target = $region75
      $region74: #{_lambda_.4} parent=5 // pred_region
        %s1006 = ssub.s32 %s16, 2
        // Predicated region
        $region76: #{_lambda_.4} parent=74 // pred_check
          %p1007 = pneg %p174
        $region77: #{_lambda_.4} parent=74 // pred_check_branch
          %1009 = sbr.rel (%p1007) target = $region79
        $region78: #{_lambda_.4} parent=74 // pred_region
          %s1010 = sand.u32 %s159, 1
          %s1011 = sand.u32 %s159, 1
          %s1012 = smul.addr %s1011, 64
          %s1013 = scalar_lea.vmem [#allocation7], %s1012
        $region79: #{_lambda_.4} parent=74 // pred_fallthru
          _
      $region75: #{_lambda_.4} parent=5 // pred_fallthru
        _
    $region6: #{_lambda_.4} parent=1 // loop_footer
      %s20 = sadd.s32 1, %s16
    $region7: #{_lambda_.4} parent=1 // loop_footer_branch
      %15 = sbr.rel target = $region3
    $region8: #{_lambda_.4} parent=1 // loop_exit
      _
    %1014 = vsyncpa [#allocation3], 1
    %s1015 = scalar_lea.sflag [#allocation3], 1
    %1016 = vsyncpa %s1015, 1
    %1017 = vsyncpa [#allocation5], 1
    %s1018 = scalar_lea.sflag [#allocation5], 1
    %1019 = vsyncpa %s1018, 1

// kernel: _lambda_.5
$region0: #{_lambda_.5}
  #allocation0 [shape = 'u32[]', space=smem, size = 0x4, offset = 0x4, fixed_abs, tag = 'smem constant byte address 0x4 - core index']
  #allocation1 [shape = 'u32[72,128]{1,0:T(1,128)}', space=vmem, size = 0x9000, scoped, tag = 'internal scratch']
  %s0 = inlined_call_operand.vmem [shape: bf16[32,1152], index: 0, kind: input, shape index: {}]
  %s1 = inlined_call_operand.hbm [shape: bf16[1152,256], index: 1, kind: input, shape index: {}]
  %s2 = inlined_call_operand.hbm [shape: f32[1,256], index: 2, kind: input, shape index: {}]
  %s3 = inlined_call_operand.hbm [shape: f32[1,256], index: 3, kind: input, shape index: {}]
  %s4 = inlined_call_operand.vmem [shape: bf16[32,256], index: 4, kind: output, shape index: {}]
  %s5 = sld [smem:[#allocation0]]
  $region98: #{_lambda_.5} parent=0
    _
  %s7 = ssub.s32 1, %s5
  %s8 = scalar_select 0, %s7, %s5
  $region1: #{_lambda_.5} parent=0
    #allocation2 [shape = 'u8[589824]{0}', space=vmem, size = 0x90000, scoped, tag = 'input window, operand 1']
    #allocation3 [shape = 's32[2]{0}', space=sflag, size = 0x8, scoped, tag = 'scoped memory for _lambda_.5']
    #allocation4 [shape = 'u8[1024]{0}', space=vmem, size = 0x400, scoped, tag = 'input window, operand 2']
    #allocation5 [shape = 's32[2]{0}', space=sflag, size = 0x8, scoped, tag = 'scoped memory for _lambda_.5']
    #allocation6 [shape = 'u8[1024]{0}', space=vmem, size = 0x400, scoped, tag = 'input window, operand 3']
    #allocation7 [shape = 'u8[16384]{0}', space=vmem, size = 0x4000, scoped, tag = 'output window, operand 0']
    %9 = vsyncpa [#allocation3], 0
    %s10 = scalar_lea.sflag [#allocation3], 1
    %11 = vsyncpa %s10, 0
    %12 = vsyncpa [#allocation5], 0
    %s13 = scalar_lea.sflag [#allocation5], 1
    %14 = vsyncpa %s13, 0
    loop: start=0, step=1, limit=4
    $region2: #{_lambda_.5} parent=1 // loop_pre_header
      _
    $region3: #{_lambda_.5} parent=1 // loop_header
      %s16 = sphi 0, %s20
      %p17 = scmp.ge.s32.totalorder %s16, 4
      %s23 = sphi 0, %s42
      %s24 = sphi 0, %s38
      %s25 = sphi 0, %s34
      %s26 = sphi 0, %s23
      %s27 = sphi 0, %s24
      %s28 = sphi 0, %s25
      %s29 = sphi 0, %s26
      %s30 = sphi 0, %s27
      %s31 = sphi 0, %s28
      %s47 = sphi 0, %s49
      %s50 = sphi 0, %s47
      %s51 = sphi 0, %s50
      %s67 = sphi 0, %s51
      %s75 = sphi 0, %s77
      %s78 = sphi 0, %s75
      %s79 = sphi 0, %s78
      %s95 = sphi 0, %s79
      %s101 = sphi 0, %s103
      %s104 = sphi 0, %s101
      %s105 = sphi 0, %s104
      %s121 = sphi 0, %s105
      %s127 = sphi 0, %s129
      %s130 = sphi 0, %s127
      %s131 = sphi 0, %s130
      %s147 = sphi 0, %s131
      %s155 = sphi 0, %s157
      %s158 = sphi 0, %s155
      %s159 = sphi 0, %s158
      %s175 = sphi 0, %s159
    $region4: #{_lambda_.5} parent=1 // loop_header_branch
      %19 = sbr.rel (%p17) target = $region8
    $region5: #{_lambda_.5} parent=1 // loop_body
      %s21 = ssub.s32 %s16, 1
      %s22 = ssub.s32 %s16, 2
      %s32 = sadd.s32 1, %s25
      %p33 = scmp.ge.s32.totalorder %s32, 1
      %s34 = scalar_select %p33, 0, %s32
      %s35 = sadd.s32 1, %s24
      %s36 = scalar_select %p33, %s35, %s24
      %p37 = scmp.ge.s32.totalorder %s36, 2
      %s38 = scalar_select %p37, 0, %s36
      %s39 = sadd.s32 1, %s23
      %s40 = scalar_select %p37, %s39, %s23
      %p41 = scmp.ge.s32.totalorder %s40, 1
      %s42 = scalar_select %p41, 0, %s40
      %s43 = ssub.s32 %s23, %s42
      %s44 = ssub.s32 %s25, %s34
      %s45 = sor.u32 %s43, %s44
      %p46 = scmp.eq.s32.totalorder %s45, 0
      %s48 = sadd.s32 %s47, 1
      %s49 = scalar_select %p46, %s47, %s48
      %p52 = pneg %p46
      %p53 = scmp.eq.s32.totalorder %s16, 1
      %p54 = por %p52, %p53
      %p55 = scmp.ne.s32.totalorder %s47, %s50
      %p56 = scmp.eq.s32.totalorder %s16, 0
      %p57 = por %p55, %p56
      %p58 = scmp.ne.s32.totalorder %s47, %s50
      %p59 = scmp.eq.s32.totalorder %s21, 1
      %p60 = por %p58, %p59
      %p61 = scmp.ne.s32.totalorder %s50, %s51
      %p62 = scmp.eq.s32.totalorder %s21, 0
      %p63 = por %p61, %p62
      %p64 = scmp.ne.s32.totalorder %s50, %s51
      %p65 = scmp.eq.s32.totalorder %s22, 1
      %p66 = por %p64, %p65
      %p68 = scmp.ne.s32.totalorder %s51, %s67
      %p69 = scmp.eq.s32.totalorder %s22, 0
      %p70 = por %p68, %p69
      %s71 = ssub.s32 %s25, %s34
      %s72 = ssub.s32 %s24, %s38
      %s73 = sor.u32 %s71, %s72
      %p74 = scmp.eq.s32.totalorder %s73, 0
      %s76 = sadd.s32 %s75, 1
      %s77 = scalar_select %p74, %s75, %s76
      %p80 = pneg %p74
      %p81 = scmp.eq.s32.totalorder %s16, 1
      %p82 = por %p80, %p81
      %p83 = scmp.ne.s32.totalorder %s75, %s78
      %p84 = scmp.eq.s32.totalorder %s16, 0
      %p85 = por %p83, %p84
      %p86 = scmp.ne.s32.totalorder %s75, %s78
      %p87 = scmp.eq.s32.totalorder %s21, 1
      %p88 = por %p86, %p87
      %p89 = scmp.ne.s32.totalorder %s78, %s79
      %p90 = scmp.eq.s32.totalorder %s21, 0
      %p91 = por %p89, %p90
      %p92 = scmp.ne.s32.totalorder %s78, %s79
      %p93 = scmp.eq.s32.totalorder %s22, 1
      %p94 = por %p92, %p93
      %p96 = scmp.ne.s32.totalorder %s79, %s95
      %p97 = scmp.eq.s32.totalorder %s22, 0
      %p98 = por %p96, %p97
      %s99 = ssub.s32 %s24, %s38
      %p100 = scmp.eq.s32.totalorder %s99, 0
      %s102 = sadd.s32 %s101, 1
      %s103 = scalar_select %p100, %s101, %s102
      %p106 = pneg %p100
      %p107 = scmp.eq.s32.totalorder %s16, 1
      %p108 = por %p106, %p107
      %p109 = scmp.ne.s32.totalorder %s101, %s104
      %p110 = scmp.eq.s32.totalorder %s16, 0
      %p111 = por %p109, %p110
      %p112 = scmp.ne.s32.totalorder %s101, %s104
      %p113 = scmp.eq.s32.totalorder %s21, 1
      %p114 = por %p112, %p113
      %p115 = scmp.ne.s32.totalorder %s104, %s105
      %p116 = scmp.eq.s32.totalorder %s21, 0
      %p117 = por %p115, %p116
      %p118 = scmp.ne.s32.totalorder %s104, %s105
      %p119 = scmp.eq.s32.totalorder %s22, 1
      %p120 = por %p118, %p119
      %p122 = scmp.ne.s32.totalorder %s105, %s121
      %p123 = scmp.eq.s32.totalorder %s22, 0
      %p124 = por %p122, %p123
      %s125 = ssub.s32 %s24, %s38
      %p126 = scmp.eq.s32.totalorder %s125, 0
      %s128 = sadd.s32 %s127, 1
      %s129 = scalar_select %p126, %s127, %s128
      %p132 = pneg %p126
      %p133 = scmp.eq.s32.totalorder %s16, 1
      %p134 = por %p132, %p133
      %p135 = scmp.ne.s32.totalorder %s127, %s130
      %p136 = scmp.eq.s32.totalorder %s16, 0
      %p137 = por %p135, %p136
      %p138 = scmp.ne.s32.totalorder %s127, %s130
      %p139 = scmp.eq.s32.totalorder %s21, 1
      %p140 = por %p138, %p139
      %p141 = scmp.ne.s32.totalorder %s130, %s131
      %p142 = scmp.eq.s32.totalorder %s21, 0
      %p143 = por %p141, %p142
      %p144 = scmp.ne.s32.totalorder %s130, %s131
      %p145 = scmp.eq.s32.totalorder %s22, 1
      %p146 = por %p144, %p145
      %p148 = scmp.ne.s32.totalorder %s131, %s147
      %p149 = scmp.eq.s32.totalorder %s22, 0
      %p150 = por %p148, %p149
      %s151 = ssub.s32 %s23, %s42
      %s152 = ssub.s32 %s24, %s38
      %s153 = sor.u32 %s151, %s152
      %p154 = scmp.eq.s32.totalorder %s153, 0
      %s156 = sadd.s32 %s155, 1
      %s157 = scalar_select %p154, %s155, %s156
      %p160 = pneg %p154
      %p161 = scmp.eq.s32.totalorder %s16, 1
      %p162 = por %p160, %p161
      %p163 = scmp.ne.s32.totalorder %s155, %s158
      %p164 = scmp.eq.s32.totalorder %s16, 0
      %p165 = por %p163, %p164
      %p166 = scmp.ne.s32.totalorder %s155, %s158
      %p167 = scmp.eq.s32.totalorder %s21, 1
      %p168 = por %p166, %p167
      %p169 = scmp.ne.s32.totalorder %s158, %s159
      %p170 = scmp.eq.s32.totalorder %s21, 0
      %p171 = por %p169, %p170
      %p172 = scmp.ne.s32.totalorder %s158, %s159
      %p173 = scmp.eq.s32.totalorder %s22, 1
      %p174 = por %p172, %p173
      %p176 = scmp.ne.s32.totalorder %s159, %s175
      %p177 = scmp.eq.s32.totalorder %s22, 0
      %p178 = por %p176, %p177
      %p179 = scmp.le.s32.totalorder 1, %s16
      %p180 = scmp.lt.s32.totalorder %s16, 3
      %p181 = pnand %p179, %p180
      %p182 = pneg %p181
      // Predicated region
      $region9: #{_lambda_.5} parent=5 // pred_check
        _
      $region10: #{_lambda_.5} parent=5 // pred_check_branch
        %184 = sbr.rel (%p181) target = $region12
      $region11: #{_lambda_.5} parent=5 // pred_region
        %s185 = ssub.s32 %s16, 1
        // Predicated region
        $region13: #{_lambda_.5} parent=11 // pred_check
          %p186 = pneg %p63
        $region14: #{_lambda_.5} parent=11 // pred_check_branch
          %188 = sbr.rel (%p186) target = $region16
        $region15: #{_lambda_.5} parent=11 // pred_region
          %s189 = smul.u32 4, %s26
          %s190 = smul.u32 9, %s28
          %p191 = scmp.lt.s32.totalorder %s189, 3
          %s192 = scalar_select %p191, %s189, 3
          %p193 = scmp.lt.s32.totalorder %s190, 8
          %s194 = scalar_select %p193, %s190, 8
          %s195 = smul.addr %s192, 9
          %s196 = sadd.s32 %s194, %s195
          %s197 = smul.addr %s196, 4
          %s198 = scalar_lea.vmem %s0, %s197
          %s199 = smul.u32 4, %s26
          %s200 = smul.u32 9, %s28
        $region16: #{_lambda_.5} parent=11 // pred_fallthru
          _
      $region12: #{_lambda_.5} parent=5 // pred_fallthru
        _
      %p201 = scmp.lt.s32.totalorder %s16, 2
      // Predicated region
      $region17: #{_lambda_.5} parent=5 // pred_check
        %p202 = pneg %p201
      $region18: #{_lambda_.5} parent=5 // pred_check_branch
        %204 = sbr.rel (%p202) target = $region20
      $region19: #{_lambda_.5} parent=5 // pred_region
        // Predicated region
        $region21: #{_lambda_.5} parent=19 // pred_check
          %p205 = pneg %p85
        $region22: #{_lambda_.5} parent=19 // pred_check_branch
          %207 = sbr.rel (%p205) target = $region24
        $region23: #{_lambda_.5} parent=19 // pred_region
          %s208 = sand.u32 %s75, 1
          %s209 = scalar_lea.sflag [#allocation3], %s208
          %s210 = sand.u32 %s75, 1
          %s211 = smul.addr %s210, 576
          %s212 = scalar_lea.vmem [#allocation2], %s211
          %s213 = smul.u32 144, %s25
          %215 = vsyncadd %s209, 0
          %s216 = smul.addr %s213, 2
          %s217 = sadd.s32 %s24, %s216
          %s218 = smul.addr %s217, 4
          %s219 = scalar_lea.hbm %s1, %s218
          %s220 = sshll.u32 %s219, 4
          %s221 = int_to_ptr.hbm [resolvable:$true] %s220
          %s222 = sshll.u32 %s212, 4
          %s223 = int_to_ptr.vmem [resolvable:$true] %s222
          %228 = dma.hbm_to_vmem [thread:$0]  %s221, 9216, %s223, %s209, 128, 64, 4
        $region24: #{_lambda_.5} parent=19 // pred_fallthru
          _
        // Predicated region
        $region25: #{_lambda_.5} parent=19 // pred_check
          %p229 = pneg %p111
        $region26: #{_lambda_.5} parent=19 // pred_check_branch
          %231 = sbr.rel (%p229) target = $region28
        $region27: #{_lambda_.5} parent=19 // pred_region
          %s232 = sand.u32 %s16, 1
          %s233 = scalar_lea.sflag [#allocation5], %s232
          %s234 = sand.u32 %s101, 1
          %s235 = scalar_lea.vmem [#allocation4], %s234
          %237 = vsyncadd %s233, 0
          %s238 = scalar_lea.hbm %s2, %s24
          %s240 = sshll.u32 %s238, 4
          %s241 = int_to_ptr.hbm [resolvable:$true] %s240
          %s242 = sshll.u32 %s235, 4
          %s243 = int_to_ptr.vmem [resolvable:$true] %s242
          %245 = dma.hbm_to_vmem [thread:$0]  %s241, 16, %s243, %s233
        $region28: #{_lambda_.5} parent=19 // pred_fallthru
          _
        // Predicated region
        $region29: #{_lambda_.5} parent=19 // pred_check
          %p246 = pneg %p137
        $region30: #{_lambda_.5} parent=19 // pred_check_branch
          %248 = sbr.rel (%p246) target = $region32
        $region31: #{_lambda_.5} parent=19 // pred_region
          %s249 = sand.u32 %s16, 1
          %s250 = scalar_lea.sflag [#allocation5], %s249
          %s251 = sand.u32 %s127, 1
          %s252 = scalar_lea.vmem [#allocation6], %s251
          %254 = vsyncadd %s250, 0
          %s255 = scalar_lea.hbm %s3, %s24
          %s257 = sshll.u32 %s255, 4
          %s258 = int_to_ptr.hbm [resolvable:$true] %s257
          %s259 = sshll.u32 %s252, 4
          %s260 = int_to_ptr.vmem [resolvable:$true] %s259
          %262 = dma.hbm_to_vmem [thread:$0]  %s258, 16, %s260, %s250
        $region32: #{_lambda_.5} parent=19 // pred_fallthru
          _
      $region20: #{_lambda_.5} parent=5 // pred_fallthru
        _
      %p263 = scmp.le.s32.totalorder 1, %s16
      %p264 = scmp.lt.s32.totalorder %s16, 3
      %p265 = pnand %p263, %p264
      %p266 = pneg %p265
      // Predicated region
      $region33: #{_lambda_.5} parent=5 // pred_check
        _
      $region34: #{_lambda_.5} parent=5 // pred_check_branch
        %268 = sbr.rel (%p265) target = $region36
      $region35: #{_lambda_.5} parent=5 // pred_region
        %s269 = ssub.s32 %s16, 1
        %s270 = sand.u32 %s78, 1
        %s271 = scalar_lea.sflag [#allocation3], %s270
        %s272 = sand.u32 %s78, 1
        %s273 = smul.addr %s272, 576
        %s274 = scalar_lea.vmem [#allocation2], %s273
        // Predicated region
        $region37: #{_lambda_.5} parent=35 // pred_check
          %p275 = pneg %p91
        $region38: #{_lambda_.5} parent=35 // pred_check_branch
          %277 = sbr.rel (%p275) target = $region40
        $region39: #{_lambda_.5} parent=35 // pred_region
          %279 = dma.done %s271, 9216
        $region40: #{_lambda_.5} parent=35 // pred_fallthru
          _
        %s280 = sand.u32 %s21, 1
        %s281 = scalar_lea.sflag [#allocation5], %s280
        %s282 = sand.u32 %s104, 1
        %s283 = scalar_lea.vmem [#allocation4], %s282
        // Predicated region
        $region41: #{_lambda_.5} parent=35 // pred_check
          %p284 = pneg %p117
        $region42: #{_lambda_.5} parent=35 // pred_check_branch
          %286 = sbr.rel (%p284) target = $region44
        $region43: #{_lambda_.5} parent=35 // pred_region
          %288 = dma.done %s281, 16
        $region44: #{_lambda_.5} parent=35 // pred_fallthru
          _
        %s289 = sand.u32 %s21, 1
        %s290 = scalar_lea.sflag [#allocation5], %s289
        %s291 = sand.u32 %s130, 1
        %s292 = scalar_lea.vmem [#allocation6], %s291
        // Predicated region
        $region45: #{_lambda_.5} parent=35 // pred_check
          %p293 = pneg %p143
        $region46: #{_lambda_.5} parent=35 // pred_check_branch
          %295 = sbr.rel (%p293) target = $region48
        $region47: #{_lambda_.5} parent=35 // pred_region
          %297 = dma.done %s290, 16
        $region48: #{_lambda_.5} parent=35 // pred_fallthru
          _
        %s298 = smul.u32 4, %s26
        %s299 = smul.u32 9, %s28
        %p300 = scmp.lt.s32.totalorder %s298, 3
        %s301 = scalar_select %p300, %s298, 3
        %p302 = scmp.lt.s32.totalorder %s299, 8
        %s303 = scalar_select %p302, %s299, 8
        %s304 = smul.addr %s301, 9
        %s305 = sadd.s32 %s303, %s304
        %s306 = smul.addr %s305, 4
        %s307 = scalar_lea.vmem %s0, %s306
        %p308 = pneg %p63
        %p309 = pneg %p60
        %s310 = sand.u32 %s78, 1
        %s311 = scalar_lea.sflag [#allocation3], %s310
        %s312 = sand.u32 %s78, 1
        %s313 = smul.addr %s312, 576
        %s314 = scalar_lea.vmem [#allocation2], %s313
        %p315 = pneg %p91
        %p316 = pneg %p88
        %s317 = sand.u32 %s21, 1
        %s318 = scalar_lea.sflag [#allocation5], %s317
        %s319 = sand.u32 %s104, 1
        %s320 = scalar_lea.vmem [#allocation4], %s319
        %p321 = pneg %p117
        %p322 = pneg %p114
        %s323 = sand.u32 %s21, 1
        %s324 = scalar_lea.sflag [#allocation5], %s323
        %s325 = sand.u32 %s130, 1
        %s326 = scalar_lea.vmem [#allocation6], %s325
        %p327 = pneg %p143
        %p328 = pneg %p140
        %p329 = pneg %p171
        %p330 = pneg %p168
        %s331 = sand.u32 %s158, 1
        %s332 = sand.u32 %s158, 1
        %s333 = smul.addr %s332, 16
        %s334 = scalar_lea.vmem [#allocation7], %s333
        %s335 = smul.u32 4, %s26
        %s336 = smul.u32 9, %s28
        %p337 = scmp.lt.s32.totalorder %s335, 3
        %s338 = scalar_select %p337, %s335, 3
        %p339 = scmp.lt.s32.totalorder %s336, 8
        %s340 = scalar_select %p339, %s336, 8
        %s341 = smul.addr %s338, 9
        %s342 = sadd.s32 %s340, %s341
        %s343 = smul.addr %s342, 4
        %s344 = scalar_lea.vmem %s0, %s343
        %s345 = smul.u32 4, %s26
        %s346 = smul.u32 9, %s28
        %s347 = smul.u32 144, %s28
        %s348 = smul.u32 4, %s26
        %v349 = vld [vmem:[%s344] sm:$0xff]
        %v350 = vld [vmem:[%s344 + $0x8] sm:$0xff]
        %v351 = vld [vmem:[%s344 + $0x10] sm:$0xff]
        %v352 = vld [vmem:[%s344 + $0x18] sm:$0xff]
        %v353 = vld [vmem:[%s344 + $0x20] sm:$0xf]
        %v354 = vld [vmem:[%s344 + $0x24] sm:$0xff]
        %v355 = vld [vmem:[%s344 + $0x2c] sm:$0xff]
        %v356 = vld [vmem:[%s344 + $0x34] sm:$0xff]
        %v357 = vld [vmem:[%s344 + $0x3c] sm:$0xff]
        %v358 = vld [vmem:[%s344 + $0x44] sm:$0xf]
        %v359 = vld [vmem:[%s344 + $0x48] sm:$0xff]
        %v360 = vld [vmem:[%s344 + $0x50] sm:$0xff]
        %v361 = vld [vmem:[%s344 + $0x58] sm:$0xff]
        %v362 = vld [vmem:[%s344 + $0x60] sm:$0xff]
        %v363 = vld [vmem:[%s344 + $0x68] sm:$0xf]
        %v364 = vld [vmem:[%s344 + $0x6c] sm:$0xff]
        %v365 = vld [vmem:[%s344 + $0x74] sm:$0xff]
        %v366 = vld [vmem:[%s344 + $0x7c] sm:$0xff]
        %v367 = vld [vmem:[%s344 + $0x84] sm:$0xff]
        %v368 = vld [vmem:[%s344 + $0x8c] sm:$0xf]
        %v369 = vld [vmem:[%s274] sm:$0xf]
        %v370 = vld [vmem:[%s274 + $0x4] sm:$0xf]
        %v371 = vld [vmem:[%s274 + $0x8] sm:$0xf]
        %v372 = vld [vmem:[%s274 + $0xc] sm:$0xf]
        %v373 = vld [vmem:[%s274 + $0x10] sm:$0xf]
        %v374 = vld [vmem:[%s274 + $0x14] sm:$0xf]
        %v375 = vld [vmem:[%s274 + $0x18] sm:$0xf]
        %v376 = vld [vmem:[%s274 + $0x1c] sm:$0xf]
        %v377 = vld [vmem:[%s274 + $0x20] sm:$0xf]
        %v378 = vld [vmem:[%s274 + $0x24] sm:$0xf]
        %v379 = vld [vmem:[%s274 + $0x28] sm:$0xf]
        %v380 = vld [vmem:[%s274 + $0x2c] sm:$0xf]
        %v381 = vld [vmem:[%s274 + $0x30] sm:$0xf]
        %v382 = vld [vmem:[%s274 + $0x34] sm:$0xf]
        %v383 = vld [vmem:[%s274 + $0x38] sm:$0xf]
        %v384 = vld [vmem:[%s274 + $0x3c] sm:$0xf]
        %v385 = vld [vmem:[%s274 + $0x40] sm:$0xf]
        %v386 = vld [vmem:[%s274 + $0x44] sm:$0xf]
        %v387 = vld [vmem:[%s274 + $0x48] sm:$0xf]
        %v388 = vld [vmem:[%s274 + $0x4c] sm:$0xf]
        %v389 = vld [vmem:[%s274 + $0x50] sm:$0xf]
        %v390 = vld [vmem:[%s274 + $0x54] sm:$0xf]
        %v391 = vld [vmem:[%s274 + $0x58] sm:$0xf]
        %v392 = vld [vmem:[%s274 + $0x5c] sm:$0xf]
        %v393 = vld [vmem:[%s274 + $0x60] sm:$0xf]
        %v394 = vld [vmem:[%s274 + $0x64] sm:$0xf]
        %v395 = vld [vmem:[%s274 + $0x68] sm:$0xf]
        %v396 = vld [vmem:[%s274 + $0x6c] sm:$0xf]
        %v397 = vld [vmem:[%s274 + $0x70] sm:$0xf]
        %v398 = vld [vmem:[%s274 + $0x74] sm:$0xf]
        %v399 = vld [vmem:[%s274 + $0x78] sm:$0xf]
        %v400 = vld [vmem:[%s274 + $0x7c] sm:$0xf]
        %v401 = vld [vmem:[%s274 + $0x80] sm:$0xf]
        %v402 = vld [vmem:[%s274 + $0x84] sm:$0xf]
        %v403 = vld [vmem:[%s274 + $0x88] sm:$0xf]
        %v404 = vld [vmem:[%s274 + $0x8c] sm:$0xf]
        %v405 = vld [vmem:[%s274 + $0x90] sm:$0xf]
        %v406 = vld [vmem:[%s274 + $0x94] sm:$0xf]
        %v407 = vld [vmem:[%s274 + $0x98] sm:$0xf]
        %v408 = vld [vmem:[%s274 + $0x9c] sm:$0xf]
        %v409 = vld [vmem:[%s274 + $0xa0] sm:$0xf]
        %v410 = vld [vmem:[%s274 + $0xa4] sm:$0xf]
        %v411 = vld [vmem:[%s274 + $0xa8] sm:$0xf]
        %v412 = vld [vmem:[%s274 + $0xac] sm:$0xf]
        %v413 = vld [vmem:[%s274 + $0xb0] sm:$0xf]
        %v414 = vld [vmem:[%s274 + $0xb4] sm:$0xf]
        %v415 = vld [vmem:[%s274 + $0xb8] sm:$0xf]
        %v416 = vld [vmem:[%s274 + $0xbc] sm:$0xf]
        %v417 = vld [vmem:[%s274 + $0xc0] sm:$0xf]
        %v418 = vld [vmem:[%s274 + $0xc4] sm:$0xf]
        %v419 = vld [vmem:[%s274 + $0xc8] sm:$0xf]
        %v420 = vld [vmem:[%s274 + $0xcc] sm:$0xf]
        %v421 = vld [vmem:[%s274 + $0xd0] sm:$0xf]
        %v422 = vld [vmem:[%s274 + $0xd4] sm:$0xf]
        %v423 = vld [vmem:[%s274 + $0xd8] sm:$0xf]
        %v424 = vld [vmem:[%s274 + $0xdc] sm:$0xf]
        %v425 = vld [vmem:[%s274 + $0xe0] sm:$0xf]
        %v426 = vld [vmem:[%s274 + $0xe4] sm:$0xf]
        %v427 = vld [vmem:[%s274 + $0xe8] sm:$0xf]
        %v428 = vld [vmem:[%s274 + $0xec] sm:$0xf]
        %v429 = vld [vmem:[%s274 + $0xf0] sm:$0xf]
        %v430 = vld [vmem:[%s274 + $0xf4] sm:$0xf]
        %v431 = vld [vmem:[%s274 + $0xf8] sm:$0xf]
        %v432 = vld [vmem:[%s274 + $0xfc] sm:$0xf]
        %v433 = vld [vmem:[%s274 + $0x100] sm:$0xf]
        %v434 = vld [vmem:[%s274 + $0x104] sm:$0xf]
        %v435 = vld [vmem:[%s274 + $0x108] sm:$0xf]
        %v436 = vld [vmem:[%s274 + $0x10c] sm:$0xf]
        %v437 = vld [vmem:[%s274 + $0x110] sm:$0xf]
        %v438 = vld [vmem:[%s274 + $0x114] sm:$0xf]
        %v439 = vld [vmem:[%s274 + $0x118] sm:$0xf]
        %v440 = vld [vmem:[%s274 + $0x11c] sm:$0xf]
        %v441 = vld [vmem:[%s274 + $0x120] sm:$0xf]
        %v442 = vld [vmem:[%s274 + $0x124] sm:$0xf]
        %v443 = vld [vmem:[%s274 + $0x128] sm:$0xf]
        %v444 = vld [vmem:[%s274 + $0x12c] sm:$0xf]
        %v445 = vld [vmem:[%s274 + $0x130] sm:$0xf]
        %v446 = vld [vmem:[%s274 + $0x134] sm:$0xf]
        %v447 = vld [vmem:[%s274 + $0x138] sm:$0xf]
        %v448 = vld [vmem:[%s274 + $0x13c] sm:$0xf]
        %v449 = vld [vmem:[%s274 + $0x140] sm:$0xf]
        %v450 = vld [vmem:[%s274 + $0x144] sm:$0xf]
        %v451 = vld [vmem:[%s274 + $0x148] sm:$0xf]
        %v452 = vld [vmem:[%s274 + $0x14c] sm:$0xf]
        %v453 = vld [vmem:[%s274 + $0x150] sm:$0xf]
        %v454 = vld [vmem:[%s274 + $0x154] sm:$0xf]
        %v455 = vld [vmem:[%s274 + $0x158] sm:$0xf]
        %v456 = vld [vmem:[%s274 + $0x15c] sm:$0xf]
        %v457 = vld [vmem:[%s274 + $0x160] sm:$0xf]
        %v458 = vld [vmem:[%s274 + $0x164] sm:$0xf]
        %v459 = vld [vmem:[%s274 + $0x168] sm:$0xf]
        %v460 = vld [vmem:[%s274 + $0x16c] sm:$0xf]
        %v461 = vld [vmem:[%s274 + $0x170] sm:$0xf]
        %v462 = vld [vmem:[%s274 + $0x174] sm:$0xf]
        %v463 = vld [vmem:[%s274 + $0x178] sm:$0xf]
        %v464 = vld [vmem:[%s274 + $0x17c] sm:$0xf]
        %v465 = vld [vmem:[%s274 + $0x180] sm:$0xf]
        %v466 = vld [vmem:[%s274 + $0x184] sm:$0xf]
        %v467 = vld [vmem:[%s274 + $0x188] sm:$0xf]
        %v468 = vld [vmem:[%s274 + $0x18c] sm:$0xf]
        %v469 = vld [vmem:[%s274 + $0x190] sm:$0xf]
        %v470 = vld [vmem:[%s274 + $0x194] sm:$0xf]
        %v471 = vld [vmem:[%s274 + $0x198] sm:$0xf]
        %v472 = vld [vmem:[%s274 + $0x19c] sm:$0xf]
        %v473 = vld [vmem:[%s274 + $0x1a0] sm:$0xf]
        %v474 = vld [vmem:[%s274 + $0x1a4] sm:$0xf]
        %v475 = vld [vmem:[%s274 + $0x1a8] sm:$0xf]
        %v476 = vld [vmem:[%s274 + $0x1ac] sm:$0xf]
        %v477 = vld [vmem:[%s274 + $0x1b0] sm:$0xf]
        %v478 = vld [vmem:[%s274 + $0x1b4] sm:$0xf]
        %v479 = vld [vmem:[%s274 + $0x1b8] sm:$0xf]
        %v480 = vld [vmem:[%s274 + $0x1bc] sm:$0xf]
        %v481 = vld [vmem:[%s274 + $0x1c0] sm:$0xf]
        %v482 = vld [vmem:[%s274 + $0x1c4] sm:$0xf]
        %v483 = vld [vmem:[%s274 + $0x1c8] sm:$0xf]
        %v484 = vld [vmem:[%s274 + $0x1cc] sm:$0xf]
        %v485 = vld [vmem:[%s274 + $0x1d0] sm:$0xf]
        %v486 = vld [vmem:[%s274 + $0x1d4] sm:$0xf]
        %v487 = vld [vmem:[%s274 + $0x1d8] sm:$0xf]
        %v488 = vld [vmem:[%s274 + $0x1dc] sm:$0xf]
        %v489 = vld [vmem:[%s274 + $0x1e0] sm:$0xf]
        %v490 = vld [vmem:[%s274 + $0x1e4] sm:$0xf]
        %v491 = vld [vmem:[%s274 + $0x1e8] sm:$0xf]
        %v492 = vld [vmem:[%s274 + $0x1ec] sm:$0xf]
        %v493 = vld [vmem:[%s274 + $0x1f0] sm:$0xf]
        %v494 = vld [vmem:[%s274 + $0x1f4] sm:$0xf]
        %v495 = vld [vmem:[%s274 + $0x1f8] sm:$0xf]
        %v496 = vld [vmem:[%s274 + $0x1fc] sm:$0xf]
        %v497 = vld [vmem:[%s274 + $0x200] sm:$0xf]
        %v498 = vld [vmem:[%s274 + $0x204] sm:$0xf]
        %v499 = vld [vmem:[%s274 + $0x208] sm:$0xf]
        %v500 = vld [vmem:[%s274 + $0x20c] sm:$0xf]
        %v501 = vld [vmem:[%s274 + $0x210] sm:$0xf]
        %v502 = vld [vmem:[%s274 + $0x214] sm:$0xf]
        %v503 = vld [vmem:[%s274 + $0x218] sm:$0xf]
        %v504 = vld [vmem:[%s274 + $0x21c] sm:$0xf]
        %v505 = vld [vmem:[%s274 + $0x220] sm:$0xf]
        %v506 = vld [vmem:[%s274 + $0x224] sm:$0xf]
        %v507 = vld [vmem:[%s274 + $0x228] sm:$0xf]
        %v508 = vld [vmem:[%s274 + $0x22c] sm:$0xf]
        %v509 = vld [vmem:[%s274 + $0x230] sm:$0xf]
        %v510 = vld [vmem:[%s274 + $0x234] sm:$0xf]
        %v511 = vld [vmem:[%s274 + $0x238] sm:$0xf]
        %v512 = vld [vmem:[%s274 + $0x23c] sm:$0xf]
        %v533 = vunpack.c.l.b16 %v349
        %v534 = vunpack.c.h.b16 %v349
        %v535 = vunpack.c.l.b16 %v350
        %v536 = vunpack.c.h.b16 %v350
        %v537 = vunpack.c.l.b16 %v351
        %v538 = vunpack.c.h.b16 %v351
        %v539 = vunpack.c.l.b16 %v352
        %v540 = vunpack.c.h.b16 %v352
        %v541 = vunpack.c.l.b16 %v353
        %v542 = vunpack.c.l.b16 %v354
        %v543 = vunpack.c.h.b16 %v354
        %v544 = vunpack.c.l.b16 %v355
        %v545 = vunpack.c.h.b16 %v355
        %v546 = vunpack.c.l.b16 %v356
        %v547 = vunpack.c.h.b16 %v356
        %v548 = vunpack.c.l.b16 %v357
        %v549 = vunpack.c.h.b16 %v357
        %v550 = vunpack.c.l.b16 %v358
        %v551 = vunpack.c.l.b16 %v359
        %v552 = vunpack.c.h.b16 %v359
        %v553 = vunpack.c.l.b16 %v360
        %v554 = vunpack.c.h.b16 %v360
        %v555 = vunpack.c.l.b16 %v361
        %v556 = vunpack.c.h.b16 %v361
        %v557 = vunpack.c.l.b16 %v362
        %v558 = vunpack.c.h.b16 %v362
        %v559 = vunpack.c.l.b16 %v363
        %v560 = vunpack.c.l.b16 %v364
        %v561 = vunpack.c.h.b16 %v364
        %v562 = vunpack.c.l.b16 %v365
        %v563 = vunpack.c.h.b16 %v365
        %v564 = vunpack.c.l.b16 %v366
        %v565 = vunpack.c.h.b16 %v366
        %v566 = vunpack.c.l.b16 %v367
        %v567 = vunpack.c.h.b16 %v367
        %v568 = vunpack.c.l.b16 %v368
        %v569 = vpack.c.b16 %v542, %v533
        %v570 = vpack.c.b16 %v543, %v534
        %v571 = vpack.c.b16 %v544, %v535
        %v572 = vpack.c.b16 %v545, %v536
        %v573 = vpack.c.b16 %v546, %v537
        %v574 = vpack.c.b16 %v547, %v538
        %v575 = vpack.c.b16 %v548, %v539
        %v576 = vpack.c.b16 %v549, %v540
        %v577 = vpack.c.b16 %v550, %v541
        %v578 = vpack.c.b16 %v560, %v551
        %v579 = vpack.c.b16 %v561, %v552
        %v580 = vpack.c.b16 %v562, %v553
        %v581 = vpack.c.b16 %v563, %v554
        %v582 = vpack.c.b16 %v564, %v555
        %v583 = vpack.c.b16 %v565, %v556
        %v584 = vpack.c.b16 %v566, %v557
        %v585 = vpack.c.b16 %v567, %v558
        %v586 = vpack.c.b16 %v568, %v559
        %v749 = vunpack.c.l.b16 %v369
        %v750 = vunpack.c.l.b16 %v370
        %v751 = vunpack.c.l.b16 %v371
        %v752 = vunpack.c.l.b16 %v372
        %v753 = vunpack.c.l.b16 %v373
        %v754 = vunpack.c.l.b16 %v374
        %v755 = vunpack.c.l.b16 %v375
        %v756 = vunpack.c.l.b16 %v376
        %v757 = vunpack.c.l.b16 %v377
        %v758 = vunpack.c.l.b16 %v378
        %v759 = vunpack.c.l.b16 %v379
        %v760 = vunpack.c.l.b16 %v380
        %v761 = vunpack.c.l.b16 %v381
        %v762 = vunpack.c.l.b16 %v382
        %v763 = vunpack.c.l.b16 %v383
        %v764 = vunpack.c.l.b16 %v384
        %v765 = vunpack.c.l.b16 %v385
        %v766 = vunpack.c.l.b16 %v386
        %v767 = vunpack.c.l.b16 %v387
        %v768 = vunpack.c.l.b16 %v388
        %v769 = vunpack.c.l.b16 %v389
        %v770 = vunpack.c.l.b16 %v390
        %v771 = vunpack.c.l.b16 %v391
        %v772 = vunpack.c.l.b16 %v392
        %v773 = vunpack.c.l.b16 %v393
        %v774 = vunpack.c.l.b16 %v394
        %v775 = vunpack.c.l.b16 %v395
        %v776 = vunpack.c.l.b16 %v396
        %v777 = vunpack.c.l.b16 %v397
        %v778 = vunpack.c.l.b16 %v398
        %v779 = vunpack.c.l.b16 %v399
        %v780 = vunpack.c.l.b16 %v400
        %v781 = vunpack.c.l.b16 %v401
        %v782 = vunpack.c.l.b16 %v402
        %v783 = vunpack.c.l.b16 %v403
        %v784 = vunpack.c.l.b16 %v404
        %v785 = vunpack.c.l.b16 %v405
        %v786 = vunpack.c.l.b16 %v406
        %v787 = vunpack.c.l.b16 %v407
        %v788 = vunpack.c.l.b16 %v408
        %v789 = vunpack.c.l.b16 %v409
        %v790 = vunpack.c.l.b16 %v410
        %v791 = vunpack.c.l.b16 %v411
        %v792 = vunpack.c.l.b16 %v412
        %v793 = vunpack.c.l.b16 %v413
        %v794 = vunpack.c.l.b16 %v414
        %v795 = vunpack.c.l.b16 %v415
        %v796 = vunpack.c.l.b16 %v416
        %v797 = vunpack.c.l.b16 %v417
        %v798 = vunpack.c.l.b16 %v418
        %v799 = vunpack.c.l.b16 %v419
        %v800 = vunpack.c.l.b16 %v420
        %v801 = vunpack.c.l.b16 %v421
        %v802 = vunpack.c.l.b16 %v422
        %v803 = vunpack.c.l.b16 %v423
        %v804 = vunpack.c.l.b16 %v424
        %v805 = vunpack.c.l.b16 %v425
        %v806 = vunpack.c.l.b16 %v426
        %v807 = vunpack.c.l.b16 %v427
        %v808 = vunpack.c.l.b16 %v428
        %v809 = vunpack.c.l.b16 %v429
        %v810 = vunpack.c.l.b16 %v430
        %v811 = vunpack.c.l.b16 %v431
        %v812 = vunpack.c.l.b16 %v432
        %v813 = vunpack.c.l.b16 %v433
        %v814 = vunpack.c.l.b16 %v434
        %v815 = vunpack.c.l.b16 %v435
        %v816 = vunpack.c.l.b16 %v436
        %v817 = vunpack.c.l.b16 %v437
        %v818 = vunpack.c.l.b16 %v438
        %v819 = vunpack.c.l.b16 %v439
        %v820 = vunpack.c.l.b16 %v440
        %v821 = vunpack.c.l.b16 %v441
        %v822 = vunpack.c.l.b16 %v442
        %v823 = vunpack.c.l.b16 %v443
        %v824 = vunpack.c.l.b16 %v444
        %v825 = vunpack.c.l.b16 %v445
        %v826 = vunpack.c.l.b16 %v446
        %v827 = vunpack.c.l.b16 %v447
        %v828 = vunpack.c.l.b16 %v448
        %v829 = vunpack.c.l.b16 %v449
        %v830 = vunpack.c.l.b16 %v450
        %v831 = vunpack.c.l.b16 %v451
        %v832 = vunpack.c.l.b16 %v452
        %v833 = vunpack.c.l.b16 %v453
        %v834 = vunpack.c.l.b16 %v454
        %v835 = vunpack.c.l.b16 %v455
        %v836 = vunpack.c.l.b16 %v456
        %v837 = vunpack.c.l.b16 %v457
        %v838 = vunpack.c.l.b16 %v458
        %v839 = vunpack.c.l.b16 %v459
        %v840 = vunpack.c.l.b16 %v460
        %v841 = vunpack.c.l.b16 %v461
        %v842 = vunpack.c.l.b16 %v462
        %v843 = vunpack.c.l.b16 %v463
        %v844 = vunpack.c.l.b16 %v464
        %v845 = vunpack.c.l.b16 %v465
        %v846 = vunpack.c.l.b16 %v466
        %v847 = vunpack.c.l.b16 %v467
        %v848 = vunpack.c.l.b16 %v468
        %v849 = vunpack.c.l.b16 %v469
        %v850 = vunpack.c.l.b16 %v470
        %v851 = vunpack.c.l.b16 %v471
        %v852 = vunpack.c.l.b16 %v472
        %v853 = vunpack.c.l.b16 %v473
        %v854 = vunpack.c.l.b16 %v474
        %v855 = vunpack.c.l.b16 %v475
        %v856 = vunpack.c.l.b16 %v476
        %v857 = vunpack.c.l.b16 %v477
        %v858 = vunpack.c.l.b16 %v478
        %v859 = vunpack.c.l.b16 %v479
        %v860 = vunpack.c.l.b16 %v480
        %v861 = vunpack.c.l.b16 %v481
        %v862 = vunpack.c.l.b16 %v482
        %v863 = vunpack.c.l.b16 %v483
        %v864 = vunpack.c.l.b16 %v484
        %v865 = vunpack.c.l.b16 %v485
        %v866 = vunpack.c.l.b16 %v486
        %v867 = vunpack.c.l.b16 %v487
        %v868 = vunpack.c.l.b16 %v488
        %v869 = vunpack.c.l.b16 %v489
        %v870 = vunpack.c.l.b16 %v490
        %v871 = vunpack.c.l.b16 %v491
        %v872 = vunpack.c.l.b16 %v492
        %v873 = vunpack.c.l.b16 %v493
        %v874 = vunpack.c.l.b16 %v494
        %v875 = vunpack.c.l.b16 %v495
        %v876 = vunpack.c.l.b16 %v496
        %v877 = vunpack.c.l.b16 %v497
        %v878 = vunpack.c.l.b16 %v498
        %v879 = vunpack.c.l.b16 %v499
        %v880 = vunpack.c.l.b16 %v500
        %v881 = vunpack.c.l.b16 %v501
        %v882 = vunpack.c.l.b16 %v502
        %v883 = vunpack.c.l.b16 %v503
        %v884 = vunpack.c.l.b16 %v504
        %v885 = vunpack.c.l.b16 %v505
        %v886 = vunpack.c.l.b16 %v506
        %v887 = vunpack.c.l.b16 %v507
        %v888 = vunpack.c.l.b16 %v508
        %v889 = vunpack.c.l.b16 %v509
        %v890 = vunpack.c.l.b16 %v510
        %v891 = vunpack.c.l.b16 %v511
        %v892 = vunpack.c.l.b16 %v512
        %v893 = vpack.c.b16 %v750, %v749
        %v894 = vpack.c.b16 %v752, %v751
        %v895 = vpack.c.b16 %v754, %v753
        %v896 = vpack.c.b16 %v756, %v755
        %v897 = vpack.c.b16 %v758, %v757
        %v898 = vpack.c.b16 %v760, %v759
        %v899 = vpack.c.b16 %v762, %v761
        %v900 = vpack.c.b16 %v764, %v763
        %v901 = vpack.c.b16 %v766, %v765
        %v902 = vpack.c.b16 %v768, %v767
        %v903 = vpack.c.b16 %v770, %v769
        %v904 = vpack.c.b16 %v772, %v771
        %v905 = vpack.c.b16 %v774, %v773
        %v906 = vpack.c.b16 %v776, %v775
        %v907 = vpack.c.b16 %v778, %v777
        %v908 = vpack.c.b16 %v780, %v779
        %v909 = vpack.c.b16 %v782, %v781
        %v910 = vpack.c.b16 %v784, %v783
        %v911 = vpack.c.b16 %v786, %v785
        %v912 = vpack.c.b16 %v788, %v787
        %v913 = vpack.c.b16 %v790, %v789
        %v914 = vpack.c.b16 %v792, %v791
        %v915 = vpack.c.b16 %v794, %v793
        %v916 = vpack.c.b16 %v796, %v795
        %v917 = vpack.c.b16 %v798, %v797
        %v918 = vpack.c.b16 %v800, %v799
        %v919 = vpack.c.b16 %v802, %v801
        %v920 = vpack.c.b16 %v804, %v803
        %v921 = vpack.c.b16 %v806, %v805
        %v922 = vpack.c.b16 %v808, %v807
        %v923 = vpack.c.b16 %v810, %v809
        %v924 = vpack.c.b16 %v812, %v811
        %v925 = vpack.c.b16 %v814, %v813
        %v926 = vpack.c.b16 %v816, %v815
        %v927 = vpack.c.b16 %v818, %v817
        %v928 = vpack.c.b16 %v820, %v819
        %v929 = vpack.c.b16 %v822, %v821
        %v930 = vpack.c.b16 %v824, %v823
        %v931 = vpack.c.b16 %v826, %v825
        %v932 = vpack.c.b16 %v828, %v827
        %v933 = vpack.c.b16 %v830, %v829
        %v934 = vpack.c.b16 %v832, %v831
        %v935 = vpack.c.b16 %v834, %v833
        %v936 = vpack.c.b16 %v836, %v835
        %v937 = vpack.c.b16 %v838, %v837
        %v938 = vpack.c.b16 %v840, %v839
        %v939 = vpack.c.b16 %v842, %v841
        %v940 = vpack.c.b16 %v844, %v843
        %v941 = vpack.c.b16 %v846, %v845
        %v942 = vpack.c.b16 %v848, %v847
        %v943 = vpack.c.b16 %v850, %v849
        %v944 = vpack.c.b16 %v852, %v851
        %v945 = vpack.c.b16 %v854, %v853
        %v946 = vpack.c.b16 %v856, %v855
        %v947 = vpack.c.b16 %v858, %v857
        %v948 = vpack.c.b16 %v860, %v859
        %v949 = vpack.c.b16 %v862, %v861
        %v950 = vpack.c.b16 %v864, %v863
        %v951 = vpack.c.b16 %v866, %v865
        %v952 = vpack.c.b16 %v868, %v867
        %v953 = vpack.c.b16 %v870, %v869
        %v954 = vpack.c.b16 %v872, %v871
        %v955 = vpack.c.b16 %v874, %v873
        %v956 = vpack.c.b16 %v876, %v875
        %v957 = vpack.c.b16 %v878, %v877
        %v958 = vpack.c.b16 %v880, %v879
        %v959 = vpack.c.b16 %v882, %v881
        %v960 = vpack.c.b16 %v884, %v883
        %v961 = vpack.c.b16 %v886, %v885
        %v962 = vpack.c.b16 %v888, %v887
        %v963 = vpack.c.b16 %v890, %v889
        %v964 = vpack.c.b16 %v892, %v891
        %1037 = vmatpush.bf16.msra.mxu0 %v900
        %1038 = vmatpush.bf16.msra.mxu0 %v899
        %1039 = vmatpush.bf16.msra.mxu0 %v898
        %1040 = vmatpush.bf16.msra.mxu0 %v897
        %1041 = vmatpush.bf16.msra.mxu0 %v896
        %1042 = vmatpush.bf16.msra.mxu0 %v895
        %1043 = vmatpush.bf16.msra.mxu0 %v894
        %1044 = vmatpush.bf16.msra.mxu0 %v893
        %1045 = vmatmul.bf16.gmra.mxu0 %v569
        %v1046 = vpop.f32.mrf.mxu0
        %v1047 = vadd.f32 0.0, %v1046
        %v1048 = vpop.f32.mrf.mxu0
        %v1049 = vadd.f32 0.0, %v1048
        %1050 = vmatmul.bf16.gmra.mxu0 %v578
        %v1051 = vpop.f32.mrf.mxu0
        %v1052 = vadd.f32 0.0, %v1051
        %v1053 = vpop.f32.mrf.mxu0
        %v1054 = vadd.f32 0.0, %v1053
        %1055 = vdwg.mxu0
        %1056 = vmatpush.bf16.msra.mxu0 %v908
        %1057 = vmatpush.bf16.msra.mxu0 %v907
        %1058 = vmatpush.bf16.msra.mxu0 %v906
        %1059 = vmatpush.bf16.msra.mxu0 %v905
        %1060 = vmatpush.bf16.msra.mxu0 %v904
        %1061 = vmatpush.bf16.msra.mxu0 %v903
        %1062 = vmatpush.bf16.msra.mxu0 %v902
        %1063 = vmatpush.bf16.msra.mxu0 %v901
        %1064 = vmatmul.bf16.gmra.mxu0 %v570
        %v1065 = vpop.f32.mrf.mxu0
        %v1066 = vadd.f32 %v1047, %v1065
        %v1067 = vpop.f32.mrf.mxu0
        %v1068 = vadd.f32 %v1049, %v1067
        %1069 = vmatmul.bf16.gmra.mxu0 %v579
        %v1070 = vpop.f32.mrf.mxu0
        %v1071 = vadd.f32 %v1052, %v1070
        %v1072 = vpop.f32.mrf.mxu0
        %v1073 = vadd.f32 %v1054, %v1072
        %1074 = vdwg.mxu0
        %1075 = vmatpush.bf16.msra.mxu0 %v916
        %1076 = vmatpush.bf16.msra.mxu0 %v915
        %1077 = vmatpush.bf16.msra.mxu0 %v914
        %1078 = vmatpush.bf16.msra.mxu0 %v913
        %1079 = vmatpush.bf16.msra.mxu0 %v912
        %1080 = vmatpush.bf16.msra.mxu0 %v911
        %1081 = vmatpush.bf16.msra.mxu0 %v910
        %1082 = vmatpush.bf16.msra.mxu0 %v909
        %1083 = vmatmul.bf16.gmra.mxu0 %v571
        %v1084 = vpop.f32.mrf.mxu0
        %v1085 = vadd.f32 %v1066, %v1084
        %v1086 = vpop.f32.mrf.mxu0
        %v1087 = vadd.f32 %v1068, %v1086
        %1088 = vmatmul.bf16.gmra.mxu0 %v580
        %v1089 = vpop.f32.mrf.mxu0
        %v1090 = vadd.f32 %v1071, %v1089
        %v1091 = vpop.f32.mrf.mxu0
        %v1092 = vadd.f32 %v1073, %v1091
        %1093 = vdwg.mxu0
        %1094 = vmatpush.bf16.msra.mxu0 %v924
        %1095 = vmatpush.bf16.msra.mxu0 %v923
        %1096 = vmatpush.bf16.msra.mxu0 %v922
        %1097 = vmatpush.bf16.msra.mxu0 %v921
        %1098 = vmatpush.bf16.msra.mxu0 %v920
        %1099 = vmatpush.bf16.msra.mxu0 %v919
        %1100 = vmatpush.bf16.msra.mxu0 %v918
        %1101 = vmatpush.bf16.msra.mxu0 %v917
        %1102 = vmatmul.bf16.gmra.mxu0 %v572
        %v1103 = vpop.f32.mrf.mxu0
        %v1104 = vadd.f32 %v1085, %v1103
        %v1105 = vpop.f32.mrf.mxu0
        %v1106 = vadd.f32 %v1087, %v1105
        %1107 = vmatmul.bf16.gmra.mxu0 %v581
        %v1108 = vpop.f32.mrf.mxu0
        %v1109 = vadd.f32 %v1090, %v1108
        %v1110 = vpop.f32.mrf.mxu0
        %v1111 = vadd.f32 %v1092, %v1110
        %1112 = vdwg.mxu0
        %1113 = vmatpush.bf16.msra.mxu0 %v932
        %1114 = vmatpush.bf16.msra.mxu0 %v931
        %1115 = vmatpush.bf16.msra.mxu0 %v930
        %1116 = vmatpush.bf16.msra.mxu0 %v929
        %1117 = vmatpush.bf16.msra.mxu0 %v928
        %1118 = vmatpush.bf16.msra.mxu0 %v927
        %1119 = vmatpush.bf16.msra.mxu0 %v926
        %1120 = vmatpush.bf16.msra.mxu0 %v925
        %1121 = vmatmul.bf16.gmra.mxu0 %v573
        %v1122 = vpop.f32.mrf.mxu0
        %v1123 = vadd.f32 %v1104, %v1122
        %v1124 = vpop.f32.mrf.mxu0
        %v1125 = vadd.f32 %v1106, %v1124
        %1126 = vmatmul.bf16.gmra.mxu0 %v582
        %v1127 = vpop.f32.mrf.mxu0
        %v1128 = vadd.f32 %v1109, %v1127
        %v1129 = vpop.f32.mrf.mxu0
        %v1130 = vadd.f32 %v1111, %v1129
        %1131 = vdwg.mxu0
        %1132 = vmatpush.bf16.msra.mxu0 %v940
        %1133 = vmatpush.bf16.msra.mxu0 %v939
        %1134 = vmatpush.bf16.msra.mxu0 %v938
        %1135 = vmatpush.bf16.msra.mxu0 %v937
        %1136 = vmatpush.bf16.msra.mxu0 %v936
        %1137 = vmatpush.bf16.msra.mxu0 %v935
        %1138 = vmatpush.bf16.msra.mxu0 %v934
        %1139 = vmatpush.bf16.msra.mxu0 %v933
        %1140 = vmatmul.bf16.gmra.mxu0 %v574
        %v1141 = vpop.f32.mrf.mxu0
        %v1142 = vadd.f32 %v1123, %v1141
        %v1143 = vpop.f32.mrf.mxu0
        %v1144 = vadd.f32 %v1125, %v1143
        %1145 = vmatmul.bf16.gmra.mxu0 %v583
        %v1146 = vpop.f32.mrf.mxu0
        %v1147 = vadd.f32 %v1128, %v1146
        %v1148 = vpop.f32.mrf.mxu0
        %v1149 = vadd.f32 %v1130, %v1148
        %1150 = vdwg.mxu0
        %1151 = vmatpush.bf16.msra.mxu0 %v948
        %1152 = vmatpush.bf16.msra.mxu0 %v947
        %1153 = vmatpush.bf16.msra.mxu0 %v946
        %1154 = vmatpush.bf16.msra.mxu0 %v945
        %1155 = vmatpush.bf16.msra.mxu0 %v944
        %1156 = vmatpush.bf16.msra.mxu0 %v943
        %1157 = vmatpush.bf16.msra.mxu0 %v942
        %1158 = vmatpush.bf16.msra.mxu0 %v941
        %1159 = vmatmul.bf16.gmra.mxu0 %v575
        %v1160 = vpop.f32.mrf.mxu0
        %v1161 = vadd.f32 %v1142, %v1160
        %v1162 = vpop.f32.mrf.mxu0
        %v1163 = vadd.f32 %v1144, %v1162
        %1164 = vmatmul.bf16.gmra.mxu0 %v584
        %v1165 = vpop.f32.mrf.mxu0
        %v1166 = vadd.f32 %v1147, %v1165
        %v1167 = vpop.f32.mrf.mxu0
        %v1168 = vadd.f32 %v1149, %v1167
        %1169 = vdwg.mxu0
        %1170 = vmatpush.bf16.msra.mxu0 %v956
        %1171 = vmatpush.bf16.msra.mxu0 %v955
        %1172 = vmatpush.bf16.msra.mxu0 %v954
        %1173 = vmatpush.bf16.msra.mxu0 %v953
        %1174 = vmatpush.bf16.msra.mxu0 %v952
        %1175 = vmatpush.bf16.msra.mxu0 %v951
        %1176 = vmatpush.bf16.msra.mxu0 %v950
        %1177 = vmatpush.bf16.msra.mxu0 %v949
        %1178 = vmatmul.bf16.gmra.mxu0 %v576
        %v1179 = vpop.f32.mrf.mxu0
        %v1180 = vadd.f32 %v1161, %v1179
        %v1181 = vpop.f32.mrf.mxu0
        %v1182 = vadd.f32 %v1163, %v1181
        %1183 = vmatmul.bf16.gmra.mxu0 %v585
        %v1184 = vpop.f32.mrf.mxu0
        %v1185 = vadd.f32 %v1166, %v1184
        %v1186 = vpop.f32.mrf.mxu0
        %v1187 = vadd.f32 %v1168, %v1186
        %1188 = vdwg.mxu0
        %1189 = vmatpush.bf16.msra.mxu0 %v964
        %1190 = vmatpush.bf16.msra.mxu0 %v963
        %1191 = vmatpush.bf16.msra.mxu0 %v962
        %1192 = vmatpush.bf16.msra.mxu0 %v961
        %1193 = vmatpush.bf16.msra.mxu0 %v960
        %1194 = vmatpush.bf16.msra.mxu0 %v959
        %1195 = vmatpush.bf16.msra.mxu0 %v958
        %1196 = vmatpush.bf16.msra.mxu0 %v957
        %1197 = vmatmul.bf16.gmra.mxu0 %v577
        %v1198 = vpop.f32.mrf.mxu0
        %v1199 = vadd.f32 %v1180, %v1198
        %v1200 = vpop.f32.mrf.mxu0
        %v1201 = vadd.f32 %v1182, %v1200
        %1202 = vmatmul.bf16.gmra.mxu0 %v586
        %v1203 = vpop.f32.mrf.mxu0
        %v1204 = vadd.f32 %v1185, %v1203
        %v1205 = vpop.f32.mrf.mxu0
        %v1206 = vadd.f32 %v1187, %v1205
        %1207 = vdwg.mxu0
        %v1208 = vld [vmem:[%s283] sm:$0x1]
        %v1209 = vld [vmem:[%s292] sm:$0x1]
        %v1211 = vperm.slane %v1208, 0
        %v1213 = vmul.f32 %v1199, %v1211
        %v1214 = vmul.f32 %v1201, %v1211
        %v1215 = vmul.f32 %v1204, %v1211
        %v1216 = vmul.f32 %v1206, %v1211
        %v1218 = vperm.slane %v1209, 0
        %v1220 = vadd.f32 %v1213, %v1218
        %v1221 = vadd.f32 %v1214, %v1218
        %v1222 = vadd.f32 %v1215, %v1218
        %v1223 = vadd.f32 %v1216, %v1218
        %v1224 = vmax.f32 %v1220, 0.0
        %v1225 = vmax.f32 %v1221, 0.0
        %v1226 = vmax.f32 %v1222, 0.0
        %v1227 = vmax.f32 %v1223, 0.0
        %v1228 = vpack.c.bf16 %v1224, %v1224
        %v1229 = vpack.c.bf16 %v1225, %v1225
        %v1230 = vpack.c.bf16 %v1226, %v1226
        %v1231 = vpack.c.bf16 %v1227, %v1227
        %1232 = vst [vmem:[%s334] sm:$0xf] %v1228
        %1233 = vst [vmem:[%s334 + $0x4] sm:$0xf] %v1229
        %1234 = vst [vmem:[%s334 + $0x8] sm:$0xf] %v1230
        %1235 = vst [vmem:[%s334 + $0xc] sm:$0xf] %v1231
        %s1236 = sand.u32 %s158, 1
        %s1237 = sand.u32 %s158, 1
        %s1238 = smul.addr %s1237, 16
        %s1239 = scalar_lea.vmem [#allocation7], %s1238
        // Predicated region
        $region49: #{_lambda_.5} parent=35 // pred_check
          %p1240 = pneg %p168
        $region50: #{_lambda_.5} parent=35 // pred_check_branch
          %1242 = sbr.rel (%p1240) target = $region52
        $region51: #{_lambda_.5} parent=35 // pred_region
          %s1243 = smul.u32 4, %s26
          %s1244 = smul.addr %s1243, 2
          %s1245 = sadd.s32 %s27, %s1244
          %s1246 = smul.addr %s1245, 4
          %s1247 = scalar_lea.vmem %s4, %s1246
          // Predicated region
          $region53: #{_lambda_.5} parent=51 // pred_check
            _
          $region54: #{_lambda_.5} parent=51 // pred_check_branch
            %1249 = sbr.rel (0) target = $region56
          $region55: #{_lambda_.5} parent=51 // pred_region
            // Predicated region
            $region57: #{_lambda_.5} parent=55 // pred_check
              _
            $region58: #{_lambda_.5} parent=55 // pred_check_branch
              %1251 = sbr.rel target = $region60
            $region59: #{_lambda_.5} parent=55 // pred_region
              // Predicated region
              $region72: #{_lambda_.5} parent=59 // pred_check
                _
              $region73: #{_lambda_.5} parent=59 // pred_check_branch
                %1273 = sbr.rel (0) target = $region75
              $region74: #{_lambda_.5} parent=59 // pred_region
                loop: start=0, step=1, limit=1
                $region76: #{_lambda_.5} parent=74 // loop_pre_header
                  _
                $region77: #{_lambda_.5} parent=74 // loop_header
                  %s1275 = sphi 0, %s1279
                  %p1276 = scmp.ge.s32.totalorder %s1275, 1
                  %s1280 = sphi %s1239, %s1239
                  %s1281 = sphi %s1247, %s1247
                $region78: #{_lambda_.5} parent=74 // loop_header_branch
                  %1278 = sbr.rel (%p1276) target = $region82
                $region79: #{_lambda_.5} parent=74 // loop_body
                  _
                $region80: #{_lambda_.5} parent=74 // loop_footer
                  %s1279 = sadd.s32 1, %s1275
                $region81: #{_lambda_.5} parent=74 // loop_footer_branch
                  %1274 = sbr.rel target = $region77
                $region82: #{_lambda_.5} parent=74 // loop_exit
                  _
                %s1283 = ssub.s32 16, 1
                loop: start=0, step=1, limit=1
                $region83: #{_lambda_.5} parent=74 // loop_pre_header
                  _
                $region84: #{_lambda_.5} parent=74 // loop_header
                  %s1285 = sphi 0, %s1289
                  %p1286 = scmp.ge.s32.totalorder %s1285, 1
                  %s1290 = sphi %s1239, %s1239
                  %s1291 = sphi %s1247, %s1247
                $region85: #{_lambda_.5} parent=74 // loop_header_branch
                  %1288 = sbr.rel (%p1286) target = $region89
                $region86: #{_lambda_.5} parent=74 // loop_body
                  %v1292 = vld [vmem:[%s1290] sm:%s1283]
                  %1293 = vst [vmem:[%s1291] sm:%s1283] %v1292
                  %v1294 = vld [vmem:[%s1290 + $0x4] sm:%s1283]
                  %1295 = vst [vmem:[%s1291 + $0x8] sm:%s1283] %v1294
                  %v1296 = vld [vmem:[%s1290 + $0x8] sm:%s1283]
                  %1297 = vst [vmem:[%s1291 + $0x10] sm:%s1283] %v1296
                  %v1298 = vld [vmem:[%s1290 + $0xc] sm:%s1283]
                  %1299 = vst [vmem:[%s1291 + $0x18] sm:%s1283] %v1298
                $region87: #{_lambda_.5} parent=74 // loop_footer
                  %s1289 = sadd.s32 1, %s1285
                $region88: #{_lambda_.5} parent=74 // loop_footer_branch
                  %1284 = sbr.rel target = $region84
                $region89: #{_lambda_.5} parent=74 // loop_exit
                  _
              $region75: #{_lambda_.5} parent=59 // pred_fallthru
                _
            $region60: #{_lambda_.5} parent=55 // pred_fallthru
              _
            // Predicated region
            $region61: #{_lambda_.5} parent=55 // pred_check
              _
            $region62: #{_lambda_.5} parent=55 // pred_check_branch
              %1253 = sbr.rel (0) target = $region64
            $region63: #{_lambda_.5} parent=55 // pred_region
              %s1255 = ssub.s32 16, 1
              loop: start=0, step=1, limit=1
              $region65: #{_lambda_.5} parent=63 // loop_pre_header
                _
              $region66: #{_lambda_.5} parent=63 // loop_header
                %s1257 = sphi 0, %s1261
                %p1258 = scmp.ge.s32.totalorder %s1257, 1
                %s1262 = sphi %s1239, %s1239
                %s1263 = sphi %s1247, %s1247
              $region67: #{_lambda_.5} parent=63 // loop_header_branch
                %1260 = sbr.rel (%p1258) target = $region71
              $region68: #{_lambda_.5} parent=63 // loop_body
                %v1264 = vld [vmem:[%s1262] sm:%s1255]
                %1265 = vst [vmem:[%s1263] sm:%s1255] %v1264
                %v1266 = vld [vmem:[%s1262 + $0x4] sm:%s1255]
                %1267 = vst [vmem:[%s1263 + $0x8] sm:%s1255] %v1266
                %v1268 = vld [vmem:[%s1262 + $0x8] sm:%s1255]
                %1269 = vst [vmem:[%s1263 + $0x10] sm:%s1255] %v1268
                %v1270 = vld [vmem:[%s1262 + $0xc] sm:%s1255]
                %1271 = vst [vmem:[%s1263 + $0x18] sm:%s1255] %v1270
              $region69: #{_lambda_.5} parent=63 // loop_footer
                %s1261 = sadd.s32 1, %s1257
              $region70: #{_lambda_.5} parent=63 // loop_footer_branch
                %1256 = sbr.rel target = $region66
              $region71: #{_lambda_.5} parent=63 // loop_exit
                _
            $region64: #{_lambda_.5} parent=55 // pred_fallthru
              _
          $region56: #{_lambda_.5} parent=51 // pred_fallthru
            _
          %1300 = vnop
        $region52: #{_lambda_.5} parent=35 // pred_fallthru
          _
      $region36: #{_lambda_.5} parent=5 // pred_fallthru
        _
      %p1301 = scmp.le.s32.totalorder 2, %s16
      // Predicated region
      $region90: #{_lambda_.5} parent=5 // pred_check
        %p1302 = pneg %p1301
      $region91: #{_lambda_.5} parent=5 // pred_check_branch
        %1304 = sbr.rel (%p1302) target = $region93
      $region92: #{_lambda_.5} parent=5 // pred_region
        %s1305 = ssub.s32 %s16, 2
        // Predicated region
        $region94: #{_lambda_.5} parent=92 // pred_check
          %p1306 = pneg %p174
        $region95: #{_lambda_.5} parent=92 // pred_check_branch
          %1308 = sbr.rel (%p1306) target = $region97
        $region96: #{_lambda_.5} parent=92 // pred_region
          %s1309 = sand.u32 %s159, 1
          %s1310 = sand.u32 %s159, 1
          %s1311 = smul.addr %s1310, 16
          %s1312 = scalar_lea.vmem [#allocation7], %s1311
        $region97: #{_lambda_.5} parent=92 // pred_fallthru
          _
      $region93: #{_lambda_.5} parent=5 // pred_fallthru
        _
    $region6: #{_lambda_.5} parent=1 // loop_footer
      %s20 = sadd.s32 1, %s16
    $region7: #{_lambda_.5} parent=1 // loop_footer_branch
      %15 = sbr.rel target = $region3
    $region8: #{_lambda_.5} parent=1 // loop_exit
      _
    %1313 = vsyncpa [#allocation3], 1
    %s1314 = scalar_lea.sflag [#allocation3], 1
    %1315 = vsyncpa %s1314, 1
    %1316 = vsyncpa [#allocation5], 1
    %s1317 = scalar_lea.sflag [#allocation5], 1
    %1318 = vsyncpa %s1317, 1

// kernel: _lambda_.6
$region0: #{_lambda_.6}
  #allocation0 [shape = 'u32[]', space=smem, size = 0x4, offset = 0x4, fixed_abs, tag = 'smem constant byte address 0x4 - core index']
  #allocation1 [shape = 'u32[72,128]{1,0:T(1,128)}', space=vmem, size = 0x9000, scoped, tag = 'internal scratch']
  %s0 = inlined_call_operand.vmem [shape: bf16[128,640], index: 0, kind: input, shape index: {}]
  %s1 = inlined_call_operand.vmem [shape: bf16[640,128], index: 1, kind: input, shape index: {}]
  %s2 = inlined_call_operand.vmem [shape: f32[1,128], index: 2, kind: input, shape index: {}]
  %s3 = inlined_call_operand.vmem [shape: f32[1,128], index: 3, kind: input, shape index: {}]
  %s4 = inlined_call_operand.vmem [shape: bf16[128,128], index: 4, kind: output, shape index: {}]
  %s5 = sld [smem:[#allocation0]]
  $region26: #{_lambda_.6} parent=0
    _
  %s7 = ssub.s32 1, %s5
  %s8 = scalar_select 0, %s7, %s5
  // Predicated region
  $region2: #{_lambda_.6} parent=0 // pred_check
    _
  $region3: #{_lambda_.6} parent=0 // pred_check_branch
    %10 = sbr.rel (0) target = $region5
  $region4: #{_lambda_.6} parent=0 // pred_region
    _
  $region5: #{_lambda_.6} parent=0 // pred_fallthru
    _
  // Predicated region
  $region6: #{_lambda_.6} parent=0 // pred_check
    _
  $region7: #{_lambda_.6} parent=0 // pred_check_branch
    %12 = sbr.rel (0) target = $region9
  $region8: #{_lambda_.6} parent=0 // pred_region
    _
  $region9: #{_lambda_.6} parent=0 // pred_fallthru
    _
  // Predicated region
  $region10: #{_lambda_.6} parent=0 // pred_check
    _
  $region11: #{_lambda_.6} parent=0 // pred_check_branch
    %14 = sbr.rel (0) target = $region13
  $region12: #{_lambda_.6} parent=0 // pred_region
    _
  $region13: #{_lambda_.6} parent=0 // pred_fallthru
    _
  // Predicated region
  $region14: #{_lambda_.6} parent=0 // pred_check
    _
  $region15: #{_lambda_.6} parent=0 // pred_check_branch
    %16 = sbr.rel (0) target = $region17
  $region16: #{_lambda_.6} parent=0 // pred_region
    _
  $region17: #{_lambda_.6} parent=0 // pred_fallthru
    _
  %v17 = vld [vmem:[%s0] sm:$0xff]
  %v18 = vld [vmem:[%s0 + $0x8] sm:$0xff]
  %v19 = vld [vmem:[%s0 + $0x10] sm:$0xf]
  %v20 = vld [vmem:[%s0 + $0x14] sm:$0xff]
  %v21 = vld [vmem:[%s0 + $0x1c] sm:$0xff]
  %v22 = vld [vmem:[%s0 + $0x24] sm:$0xf]
  %v23 = vld [vmem:[%s0 + $0x28] sm:$0xff]
  %v24 = vld [vmem:[%s0 + $0x30] sm:$0xff]
  %v25 = vld [vmem:[%s0 + $0x38] sm:$0xf]
  %v26 = vld [vmem:[%s0 + $0x3c] sm:$0xff]
  %v27 = vld [vmem:[%s0 + $0x44] sm:$0xff]
  %v28 = vld [vmem:[%s0 + $0x4c] sm:$0xf]
  %v29 = vld [vmem:[%s0 + $0x50] sm:$0xff]
  %v30 = vld [vmem:[%s0 + $0x58] sm:$0xff]
  %v31 = vld [vmem:[%s0 + $0x60] sm:$0xf]
  %v32 = vld [vmem:[%s0 + $0x64] sm:$0xff]
  %v33 = vld [vmem:[%s0 + $0x6c] sm:$0xff]
  %v34 = vld [vmem:[%s0 + $0x74] sm:$0xf]
  %v35 = vld [vmem:[%s0 + $0x78] sm:$0xff]
  %v36 = vld [vmem:[%s0 + $0x80] sm:$0xff]
  %v37 = vld [vmem:[%s0 + $0x88] sm:$0xf]
  %v38 = vld [vmem:[%s0 + $0x8c] sm:$0xff]
  %v39 = vld [vmem:[%s0 + $0x94] sm:$0xff]
  %v40 = vld [vmem:[%s0 + $0x9c] sm:$0xf]
  %v41 = vld [vmem:[%s0 + $0xa0] sm:$0xff]
  %v42 = vld [vmem:[%s0 + $0xa8] sm:$0xff]
  %v43 = vld [vmem:[%s0 + $0xb0] sm:$0xf]
  %v44 = vld [vmem:[%s0 + $0xb4] sm:$0xff]
  %v45 = vld [vmem:[%s0 + $0xbc] sm:$0xff]
  %v46 = vld [vmem:[%s0 + $0xc4] sm:$0xf]
  %v47 = vld [vmem:[%s0 + $0xc8] sm:$0xff]
  %v48 = vld [vmem:[%s0 + $0xd0] sm:$0xff]
  %v49 = vld [vmem:[%s0 + $0xd8] sm:$0xf]
  %v50 = vld [vmem:[%s0 + $0xdc] sm:$0xff]
  %v51 = vld [vmem:[%s0 + $0xe4] sm:$0xff]
  %v52 = vld [vmem:[%s0 + $0xec] sm:$0xf]
  %v53 = vld [vmem:[%s0 + $0xf0] sm:$0xff]
  %v54 = vld [vmem:[%s0 + $0xf8] sm:$0xff]
  %v55 = vld [vmem:[%s0 + $0x100] sm:$0xf]
  %v56 = vld [vmem:[%s0 + $0x104] sm:$0xff]
  %v57 = vld [vmem:[%s0 + $0x10c] sm:$0xff]
  %v58 = vld [vmem:[%s0 + $0x114] sm:$0xf]
  %v59 = vld [vmem:[%s0 + $0x118] sm:$0xff]
  %v60 = vld [vmem:[%s0 + $0x120] sm:$0xff]
  %v61 = vld [vmem:[%s0 + $0x128] sm:$0xf]
  %v62 = vld [vmem:[%s0 + $0x12c] sm:$0xff]
  %v63 = vld [vmem:[%s0 + $0x134] sm:$0xff]
  %v64 = vld [vmem:[%s0 + $0x13c] sm:$0xf]
  %v65 = vld [vmem:[%s1] sm:$0xf]
  %v66 = vld [vmem:[%s1 + $0x4] sm:$0xf]
  %v67 = vld [vmem:[%s1 + $0x8] sm:$0xf]
  %v68 = vld [vmem:[%s1 + $0xc] sm:$0xf]
  %v69 = vld [vmem:[%s1 + $0x10] sm:$0xf]
  %v70 = vld [vmem:[%s1 + $0x14] sm:$0xf]
  %v71 = vld [vmem:[%s1 + $0x18] sm:$0xf]
  %v72 = vld [vmem:[%s1 + $0x1c] sm:$0xf]
  %v73 = vld [vmem:[%s1 + $0x20] sm:$0xf]
  %v74 = vld [vmem:[%s1 + $0x24] sm:$0xf]
  %v75 = vld [vmem:[%s1 + $0x28] sm:$0xf]
  %v76 = vld [vmem:[%s1 + $0x2c] sm:$0xf]
  %v77 = vld [vmem:[%s1 + $0x30] sm:$0xf]
  %v78 = vld [vmem:[%s1 + $0x34] sm:$0xf]
  %v79 = vld [vmem:[%s1 + $0x38] sm:$0xf]
  %v80 = vld [vmem:[%s1 + $0x3c] sm:$0xf]
  %v81 = vld [vmem:[%s1 + $0x40] sm:$0xf]
  %v82 = vld [vmem:[%s1 + $0x44] sm:$0xf]
  %v83 = vld [vmem:[%s1 + $0x48] sm:$0xf]
  %v84 = vld [vmem:[%s1 + $0x4c] sm:$0xf]
  %v85 = vld [vmem:[%s1 + $0x50] sm:$0xf]
  %v86 = vld [vmem:[%s1 + $0x54] sm:$0xf]
  %v87 = vld [vmem:[%s1 + $0x58] sm:$0xf]
  %v88 = vld [vmem:[%s1 + $0x5c] sm:$0xf]
  %v89 = vld [vmem:[%s1 + $0x60] sm:$0xf]
  %v90 = vld [vmem:[%s1 + $0x64] sm:$0xf]
  %v91 = vld [vmem:[%s1 + $0x68] sm:$0xf]
  %v92 = vld [vmem:[%s1 + $0x6c] sm:$0xf]
  %v93 = vld [vmem:[%s1 + $0x70] sm:$0xf]
  %v94 = vld [vmem:[%s1 + $0x74] sm:$0xf]
  %v95 = vld [vmem:[%s1 + $0x78] sm:$0xf]
  %v96 = vld [vmem:[%s1 + $0x7c] sm:$0xf]
  %v97 = vld [vmem:[%s1 + $0x80] sm:$0xf]
  %v98 = vld [vmem:[%s1 + $0x84] sm:$0xf]
  %v99 = vld [vmem:[%s1 + $0x88] sm:$0xf]
  %v100 = vld [vmem:[%s1 + $0x8c] sm:$0xf]
  %v101 = vld [vmem:[%s1 + $0x90] sm:$0xf]
  %v102 = vld [vmem:[%s1 + $0x94] sm:$0xf]
  %v103 = vld [vmem:[%s1 + $0x98] sm:$0xf]
  %v104 = vld [vmem:[%s1 + $0x9c] sm:$0xf]
  %v105 = vld [vmem:[%s1 + $0xa0] sm:$0xf]
  %v106 = vld [vmem:[%s1 + $0xa4] sm:$0xf]
  %v107 = vld [vmem:[%s1 + $0xa8] sm:$0xf]
  %v108 = vld [vmem:[%s1 + $0xac] sm:$0xf]
  %v109 = vld [vmem:[%s1 + $0xb0] sm:$0xf]
  %v110 = vld [vmem:[%s1 + $0xb4] sm:$0xf]
  %v111 = vld [vmem:[%s1 + $0xb8] sm:$0xf]
  %v112 = vld [vmem:[%s1 + $0xbc] sm:$0xf]
  %v113 = vld [vmem:[%s1 + $0xc0] sm:$0xf]
  %v114 = vld [vmem:[%s1 + $0xc4] sm:$0xf]
  %v115 = vld [vmem:[%s1 + $0xc8] sm:$0xf]
  %v116 = vld [vmem:[%s1 + $0xcc] sm:$0xf]
  %v117 = vld [vmem:[%s1 + $0xd0] sm:$0xf]
  %v118 = vld [vmem:[%s1 + $0xd4] sm:$0xf]
  %v119 = vld [vmem:[%s1 + $0xd8] sm:$0xf]
  %v120 = vld [vmem:[%s1 + $0xdc] sm:$0xf]
  %v121 = vld [vmem:[%s1 + $0xe0] sm:$0xf]
  %v122 = vld [vmem:[%s1 + $0xe4] sm:$0xf]
  %v123 = vld [vmem:[%s1 + $0xe8] sm:$0xf]
  %v124 = vld [vmem:[%s1 + $0xec] sm:$0xf]
  %v125 = vld [vmem:[%s1 + $0xf0] sm:$0xf]
  %v126 = vld [vmem:[%s1 + $0xf4] sm:$0xf]
  %v127 = vld [vmem:[%s1 + $0xf8] sm:$0xf]
  %v128 = vld [vmem:[%s1 + $0xfc] sm:$0xf]
  %v129 = vld [vmem:[%s1 + $0x100] sm:$0xf]
  %v130 = vld [vmem:[%s1 + $0x104] sm:$0xf]
  %v131 = vld [vmem:[%s1 + $0x108] sm:$0xf]
  %v132 = vld [vmem:[%s1 + $0x10c] sm:$0xf]
  %v133 = vld [vmem:[%s1 + $0x110] sm:$0xf]
  %v134 = vld [vmem:[%s1 + $0x114] sm:$0xf]
  %v135 = vld [vmem:[%s1 + $0x118] sm:$0xf]
  %v136 = vld [vmem:[%s1 + $0x11c] sm:$0xf]
  %v137 = vld [vmem:[%s1 + $0x120] sm:$0xf]
  %v138 = vld [vmem:[%s1 + $0x124] sm:$0xf]
  %v139 = vld [vmem:[%s1 + $0x128] sm:$0xf]
  %v140 = vld [vmem:[%s1 + $0x12c] sm:$0xf]
  %v141 = vld [vmem:[%s1 + $0x130] sm:$0xf]
  %v142 = vld [vmem:[%s1 + $0x134] sm:$0xf]
  %v143 = vld [vmem:[%s1 + $0x138] sm:$0xf]
  %v144 = vld [vmem:[%s1 + $0x13c] sm:$0xf]
  %v193 = vunpack.c.l.b16 %v17
  %v194 = vunpack.c.h.b16 %v17
  %v195 = vunpack.c.l.b16 %v18
  %v196 = vunpack.c.h.b16 %v18
  %v197 = vunpack.c.l.b16 %v19
  %v198 = vunpack.c.l.b16 %v20
  %v199 = vunpack.c.h.b16 %v20
  %v200 = vunpack.c.l.b16 %v21
  %v201 = vunpack.c.h.b16 %v21
  %v202 = vunpack.c.l.b16 %v22
  %v203 = vunpack.c.l.b16 %v23
  %v204 = vunpack.c.h.b16 %v23
  %v205 = vunpack.c.l.b16 %v24
  %v206 = vunpack.c.h.b16 %v24
  %v207 = vunpack.c.l.b16 %v25
  %v208 = vunpack.c.l.b16 %v26
  %v209 = vunpack.c.h.b16 %v26
  %v210 = vunpack.c.l.b16 %v27
  %v211 = vunpack.c.h.b16 %v27
  %v212 = vunpack.c.l.b16 %v28
  %v213 = vunpack.c.l.b16 %v29
  %v214 = vunpack.c.h.b16 %v29
  %v215 = vunpack.c.l.b16 %v30
  %v216 = vunpack.c.h.b16 %v30
  %v217 = vunpack.c.l.b16 %v31
  %v218 = vunpack.c.l.b16 %v32
  %v219 = vunpack.c.h.b16 %v32
  %v220 = vunpack.c.l.b16 %v33
  %v221 = vunpack.c.h.b16 %v33
  %v222 = vunpack.c.l.b16 %v34
  %v223 = vunpack.c.l.b16 %v35
  %v224 = vunpack.c.h.b16 %v35
  %v225 = vunpack.c.l.b16 %v36
  %v226 = vunpack.c.h.b16 %v36
  %v227 = vunpack.c.l.b16 %v37
  %v228 = vunpack.c.l.b16 %v38
  %v229 = vunpack.c.h.b16 %v38
  %v230 = vunpack.c.l.b16 %v39
  %v231 = vunpack.c.h.b16 %v39
  %v232 = vunpack.c.l.b16 %v40
  %v233 = vunpack.c.l.b16 %v41
  %v234 = vunpack.c.h.b16 %v41
  %v235 = vunpack.c.l.b16 %v42
  %v236 = vunpack.c.h.b16 %v42
  %v237 = vunpack.c.l.b16 %v43
  %v238 = vunpack.c.l.b16 %v44
  %v239 = vunpack.c.h.b16 %v44
  %v240 = vunpack.c.l.b16 %v45
  %v241 = vunpack.c.h.b16 %v45
  %v242 = vunpack.c.l.b16 %v46
  %v243 = vunpack.c.l.b16 %v47
  %v244 = vunpack.c.h.b16 %v47
  %v245 = vunpack.c.l.b16 %v48
  %v246 = vunpack.c.h.b16 %v48
  %v247 = vunpack.c.l.b16 %v49
  %v248 = vunpack.c.l.b16 %v50
  %v249 = vunpack.c.h.b16 %v50
  %v250 = vunpack.c.l.b16 %v51
  %v251 = vunpack.c.h.b16 %v51
  %v252 = vunpack.c.l.b16 %v52
  %v253 = vunpack.c.l.b16 %v53
  %v254 = vunpack.c.h.b16 %v53
  %v255 = vunpack.c.l.b16 %v54
  %v256 = vunpack.c.h.b16 %v54
  %v257 = vunpack.c.l.b16 %v55
  %v258 = vunpack.c.l.b16 %v56
  %v259 = vunpack.c.h.b16 %v56
  %v260 = vunpack.c.l.b16 %v57
  %v261 = vunpack.c.h.b16 %v57
  %v262 = vunpack.c.l.b16 %v58
  %v263 = vunpack.c.l.b16 %v59
  %v264 = vunpack.c.h.b16 %v59
  %v265 = vunpack.c.l.b16 %v60
  %v266 = vunpack.c.h.b16 %v60
  %v267 = vunpack.c.l.b16 %v61
  %v268 = vunpack.c.l.b16 %v62
  %v269 = vunpack.c.h.b16 %v62
  %v270 = vunpack.c.l.b16 %v63
  %v271 = vunpack.c.h.b16 %v63
  %v272 = vunpack.c.l.b16 %v64
  %v273 = vpack.c.b16 %v198, %v193
  %v274 = vpack.c.b16 %v199, %v194
  %v275 = vpack.c.b16 %v200, %v195
  %v276 = vpack.c.b16 %v201, %v196
  %v277 = vpack.c.b16 %v202, %v197
  %v278 = vpack.c.b16 %v208, %v203
  %v279 = vpack.c.b16 %v209, %v204
  %v280 = vpack.c.b16 %v210, %v205
  %v281 = vpack.c.b16 %v211, %v206
  %v282 = vpack.c.b16 %v212, %v207
  %v283 = vpack.c.b16 %v218, %v213
  %v284 = vpack.c.b16 %v219, %v214
  %v285 = vpack.c.b16 %v220, %v215
  %v286 = vpack.c.b16 %v221, %v216
  %v287 = vpack.c.b16 %v222, %v217
  %v288 = vpack.c.b16 %v228, %v223
  %v289 = vpack.c.b16 %v229, %v224
  %v290 = vpack.c.b16 %v230, %v225
  %v291 = vpack.c.b16 %v231, %v226
  %v292 = vpack.c.b16 %v232, %v227
  %v293 = vpack.c.b16 %v238, %v233
  %v294 = vpack.c.b16 %v239, %v234
  %v295 = vpack.c.b16 %v240, %v235
  %v296 = vpack.c.b16 %v241, %v236
  %v297 = vpack.c.b16 %v242, %v237
  %v298 = vpack.c.b16 %v248, %v243
  %v299 = vpack.c.b16 %v249, %v244
  %v300 = vpack.c.b16 %v250, %v245
  %v301 = vpack.c.b16 %v251, %v246
  %v302 = vpack.c.b16 %v252, %v247
  %v303 = vpack.c.b16 %v258, %v253
  %v304 = vpack.c.b16 %v259, %v254
  %v305 = vpack.c.b16 %v260, %v255
  %v306 = vpack.c.b16 %v261, %v256
  %v307 = vpack.c.b16 %v262, %v257
  %v308 = vpack.c.b16 %v268, %v263
  %v309 = vpack.c.b16 %v269, %v264
  %v310 = vpack.c.b16 %v270, %v265
  %v311 = vpack.c.b16 %v271, %v266
  %v312 = vpack.c.b16 %v272, %v267
  %v433 = vunpack.c.l.b16 %v65
  %v434 = vunpack.c.l.b16 %v66
  %v435 = vunpack.c.l.b16 %v67
  %v436 = vunpack.c.l.b16 %v68
  %v437 = vunpack.c.l.b16 %v69
  %v438 = vunpack.c.l.b16 %v70
  %v439 = vunpack.c.l.b16 %v71
  %v440 = vunpack.c.l.b16 %v72
  %v441 = vunpack.c.l.b16 %v73
  %v442 = vunpack.c.l.b16 %v74
  %v443 = vunpack.c.l.b16 %v75
  %v444 = vunpack.c.l.b16 %v76
  %v445 = vunpack.c.l.b16 %v77
  %v446 = vunpack.c.l.b16 %v78
  %v447 = vunpack.c.l.b16 %v79
  %v448 = vunpack.c.l.b16 %v80
  %v449 = vunpack.c.l.b16 %v81
  %v450 = vunpack.c.l.b16 %v82
  %v451 = vunpack.c.l.b16 %v83
  %v452 = vunpack.c.l.b16 %v84
  %v453 = vunpack.c.l.b16 %v85
  %v454 = vunpack.c.l.b16 %v86
  %v455 = vunpack.c.l.b16 %v87
  %v456 = vunpack.c.l.b16 %v88
  %v457 = vunpack.c.l.b16 %v89
  %v458 = vunpack.c.l.b16 %v90
  %v459 = vunpack.c.l.b16 %v91
  %v460 = vunpack.c.l.b16 %v92
  %v461 = vunpack.c.l.b16 %v93
  %v462 = vunpack.c.l.b16 %v94
  %v463 = vunpack.c.l.b16 %v95
  %v464 = vunpack.c.l.b16 %v96
  %v465 = vunpack.c.l.b16 %v97
  %v466 = vunpack.c.l.b16 %v98
  %v467 = vunpack.c.l.b16 %v99
  %v468 = vunpack.c.l.b16 %v100
  %v469 = vunpack.c.l.b16 %v101
  %v470 = vunpack.c.l.b16 %v102
  %v471 = vunpack.c.l.b16 %v103
  %v472 = vunpack.c.l.b16 %v104
  %v473 = vunpack.c.l.b16 %v105
  %v474 = vunpack.c.l.b16 %v106
  %v475 = vunpack.c.l.b16 %v107
  %v476 = vunpack.c.l.b16 %v108
  %v477 = vunpack.c.l.b16 %v109
  %v478 = vunpack.c.l.b16 %v110
  %v479 = vunpack.c.l.b16 %v111
  %v480 = vunpack.c.l.b16 %v112
  %v481 = vunpack.c.l.b16 %v113
  %v482 = vunpack.c.l.b16 %v114
  %v483 = vunpack.c.l.b16 %v115
  %v484 = vunpack.c.l.b16 %v116
  %v485 = vunpack.c.l.b16 %v117
  %v486 = vunpack.c.l.b16 %v118
  %v487 = vunpack.c.l.b16 %v119
  %v488 = vunpack.c.l.b16 %v120
  %v489 = vunpack.c.l.b16 %v121
  %v490 = vunpack.c.l.b16 %v122
  %v491 = vunpack.c.l.b16 %v123
  %v492 = vunpack.c.l.b16 %v124
  %v493 = vunpack.c.l.b16 %v125
  %v494 = vunpack.c.l.b16 %v126
  %v495 = vunpack.c.l.b16 %v127
  %v496 = vunpack.c.l.b16 %v128
  %v497 = vunpack.c.l.b16 %v129
  %v498 = vunpack.c.l.b16 %v130
  %v499 = vunpack.c.l.b16 %v131
  %v500 = vunpack.c.l.b16 %v132
  %v501 = vunpack.c.l.b16 %v133
  %v502 = vunpack.c.l.b16 %v134
  %v503 = vunpack.c.l.b16 %v135
  %v504 = vunpack.c.l.b16 %v136
  %v505 = vunpack.c.l.b16 %v137
  %v506 = vunpack.c.l.b16 %v138
  %v507 = vunpack.c.l.b16 %v139
  %v508 = vunpack.c.l.b16 %v140
  %v509 = vunpack.c.l.b16 %v141
  %v510 = vunpack.c.l.b16 %v142
  %v511 = vunpack.c.l.b16 %v143
  %v512 = vunpack.c.l.b16 %v144
  %v513 = vpack.c.b16 %v434, %v433
  %v514 = vpack.c.b16 %v436, %v435
  %v515 = vpack.c.b16 %v438, %v437
  %v516 = vpack.c.b16 %v440, %v439
  %v517 = vpack.c.b16 %v442, %v441
  %v518 = vpack.c.b16 %v444, %v443
  %v519 = vpack.c.b16 %v446, %v445
  %v520 = vpack.c.b16 %v448, %v447
  %v521 = vpack.c.b16 %v450, %v449
  %v522 = vpack.c.b16 %v452, %v451
  %v523 = vpack.c.b16 %v454, %v453
  %v524 = vpack.c.b16 %v456, %v455
  %v525 = vpack.c.b16 %v458, %v457
  %v526 = vpack.c.b16 %v460, %v459
  %v527 = vpack.c.b16 %v462, %v461
  %v528 = vpack.c.b16 %v464, %v463
  %v529 = vpack.c.b16 %v466, %v465
  %v530 = vpack.c.b16 %v468, %v467
  %v531 = vpack.c.b16 %v470, %v469
  %v532 = vpack.c.b16 %v472, %v471
  %v533 = vpack.c.b16 %v474, %v473
  %v534 = vpack.c.b16 %v476, %v475
  %v535 = vpack.c.b16 %v478, %v477
  %v536 = vpack.c.b16 %v480, %v479
  %v537 = vpack.c.b16 %v482, %v481
  %v538 = vpack.c.b16 %v484, %v483
  %v539 = vpack.c.b16 %v486, %v485
  %v540 = vpack.c.b16 %v488, %v487
  %v541 = vpack.c.b16 %v490, %v489
  %v542 = vpack.c.b16 %v492, %v491
  %v543 = vpack.c.b16 %v494, %v493
  %v544 = vpack.c.b16 %v496, %v495
  %v545 = vpack.c.b16 %v498, %v497
  %v546 = vpack.c.b16 %v500, %v499
  %v547 = vpack.c.b16 %v502, %v501
  %v548 = vpack.c.b16 %v504, %v503
  %v549 = vpack.c.b16 %v506, %v505
  %v550 = vpack.c.b16 %v508, %v507
  %v551 = vpack.c.b16 %v510, %v509
  %v552 = vpack.c.b16 %v512, %v511
  %593 = vmatpush.bf16.msra.mxu0 %v520
  %594 = vmatpush.bf16.msra.mxu0 %v519
  %595 = vmatpush.bf16.msra.mxu0 %v518
  %596 = vmatpush.bf16.msra.mxu0 %v517
  %597 = vmatpush.bf16.msra.mxu0 %v516
  %598 = vmatpush.bf16.msra.mxu0 %v515
  %599 = vmatpush.bf16.msra.mxu0 %v514
  %600 = vmatpush.bf16.msra.mxu0 %v513
  %601 = vmatmul.bf16.gmra.mxu0 %v273
  %v602 = vpop.f32.mrf.mxu0
  %v603 = vadd.f32 0.0, %v602
  %v604 = vpop.f32.mrf.mxu0
  %v605 = vadd.f32 0.0, %v604
  %606 = vmatmul.bf16.gmra.mxu0 %v278
  %v607 = vpop.f32.mrf.mxu0
  %v608 = vadd.f32 0.0, %v607
  %v609 = vpop.f32.mrf.mxu0
  %v610 = vadd.f32 0.0, %v609
  %611 = vmatmul.bf16.gmra.mxu0 %v283
  %v612 = vpop.f32.mrf.mxu0
  %v613 = vadd.f32 0.0, %v612
  %v614 = vpop.f32.mrf.mxu0
  %v615 = vadd.f32 0.0, %v614
  %616 = vmatmul.bf16.gmra.mxu0 %v288
  %v617 = vpop.f32.mrf.mxu0
  %v618 = vadd.f32 0.0, %v617
  %v619 = vpop.f32.mrf.mxu0
  %v620 = vadd.f32 0.0, %v619
  %621 = vmatmul.bf16.gmra.mxu0 %v293
  %v622 = vpop.f32.mrf.mxu0
  %v623 = vadd.f32 0.0, %v622
  %v624 = vpop.f32.mrf.mxu0
  %v625 = vadd.f32 0.0, %v624
  %626 = vmatmul.bf16.gmra.mxu0 %v298
  %v627 = vpop.f32.mrf.mxu0
  %v628 = vadd.f32 0.0, %v627
  %v629 = vpop.f32.mrf.mxu0
  %v630 = vadd.f32 0.0, %v629
  %631 = vmatmul.bf16.gmra.mxu0 %v303
  %v632 = vpop.f32.mrf.mxu0
  %v633 = vadd.f32 0.0, %v632
  %v634 = vpop.f32.mrf.mxu0
  %v635 = vadd.f32 0.0, %v634
  %636 = vmatmul.bf16.gmra.mxu0 %v308
  %v637 = vpop.f32.mrf.mxu0
  %v638 = vadd.f32 0.0, %v637
  %v639 = vpop.f32.mrf.mxu0
  %v640 = vadd.f32 0.0, %v639
  %641 = vdwg.mxu0
  %642 = vmatpush.bf16.msra.mxu0 %v528
  %643 = vmatpush.bf16.msra.mxu0 %v527
  %644 = vmatpush.bf16.msra.mxu0 %v526
  %645 = vmatpush.bf16.msra.mxu0 %v525
  %646 = vmatpush.bf16.msra.mxu0 %v524
  %647 = vmatpush.bf16.msra.mxu0 %v523
  %648 = vmatpush.bf16.msra.mxu0 %v522
  %649 = vmatpush.bf16.msra.mxu0 %v521
  %650 = vmatmul.bf16.gmra.mxu0 %v274
  %v651 = vpop.f32.mrf.mxu0
  %v652 = vadd.f32 %v603, %v651
  %v653 = vpop.f32.mrf.mxu0
  %v654 = vadd.f32 %v605, %v653
  %655 = vmatmul.bf16.gmra.mxu0 %v279
  %v656 = vpop.f32.mrf.mxu0
  %v657 = vadd.f32 %v608, %v656
  %v658 = vpop.f32.mrf.mxu0
  %v659 = vadd.f32 %v610, %v658
  %660 = vmatmul.bf16.gmra.mxu0 %v284
  %v661 = vpop.f32.mrf.mxu0
  %v662 = vadd.f32 %v613, %v661
  %v663 = vpop.f32.mrf.mxu0
  %v664 = vadd.f32 %v615, %v663
  %665 = vmatmul.bf16.gmra.mxu0 %v289
  %v666 = vpop.f32.mrf.mxu0
  %v667 = vadd.f32 %v618, %v666
  %v668 = vpop.f32.mrf.mxu0
  %v669 = vadd.f32 %v620, %v668
  %670 = vmatmul.bf16.gmra.mxu0 %v294
  %v671 = vpop.f32.mrf.mxu0
  %v672 = vadd.f32 %v623, %v671
  %v673 = vpop.f32.mrf.mxu0
  %v674 = vadd.f32 %v625, %v673
  %675 = vmatmul.bf16.gmra.mxu0 %v299
  %v676 = vpop.f32.mrf.mxu0
  %v677 = vadd.f32 %v628, %v676
  %v678 = vpop.f32.mrf.mxu0
  %v679 = vadd.f32 %v630, %v678
  %680 = vmatmul.bf16.gmra.mxu0 %v304
  %v681 = vpop.f32.mrf.mxu0
  %v682 = vadd.f32 %v633, %v681
  %v683 = vpop.f32.mrf.mxu0
  %v684 = vadd.f32 %v635, %v683
  %685 = vmatmul.bf16.gmra.mxu0 %v309
  %v686 = vpop.f32.mrf.mxu0
  %v687 = vadd.f32 %v638, %v686
  %v688 = vpop.f32.mrf.mxu0
  %v689 = vadd.f32 %v640, %v688
  %690 = vdwg.mxu0
  %691 = vmatpush.bf16.msra.mxu0 %v536
  %692 = vmatpush.bf16.msra.mxu0 %v535
  %693 = vmatpush.bf16.msra.mxu0 %v534
  %694 = vmatpush.bf16.msra.mxu0 %v533
  %695 = vmatpush.bf16.msra.mxu0 %v532
  %696 = vmatpush.bf16.msra.mxu0 %v531
  %697 = vmatpush.bf16.msra.mxu0 %v530
  %698 = vmatpush.bf16.msra.mxu0 %v529
  %699 = vmatmul.bf16.gmra.mxu0 %v275
  %v700 = vpop.f32.mrf.mxu0
  %v701 = vadd.f32 %v652, %v700
  %v702 = vpop.f32.mrf.mxu0
  %v703 = vadd.f32 %v654, %v702
  %704 = vmatmul.bf16.gmra.mxu0 %v280
  %v705 = vpop.f32.mrf.mxu0
  %v706 = vadd.f32 %v657, %v705
  %v707 = vpop.f32.mrf.mxu0
  %v708 = vadd.f32 %v659, %v707
  %709 = vmatmul.bf16.gmra.mxu0 %v285
  %v710 = vpop.f32.mrf.mxu0
  %v711 = vadd.f32 %v662, %v710
  %v712 = vpop.f32.mrf.mxu0
  %v713 = vadd.f32 %v664, %v712
  %714 = vmatmul.bf16.gmra.mxu0 %v290
  %v715 = vpop.f32.mrf.mxu0
  %v716 = vadd.f32 %v667, %v715
  %v717 = vpop.f32.mrf.mxu0
  %v718 = vadd.f32 %v669, %v717
  %719 = vmatmul.bf16.gmra.mxu0 %v295
  %v720 = vpop.f32.mrf.mxu0
  %v721 = vadd.f32 %v672, %v720
  %v722 = vpop.f32.mrf.mxu0
  %v723 = vadd.f32 %v674, %v722
  %724 = vmatmul.bf16.gmra.mxu0 %v300
  %v725 = vpop.f32.mrf.mxu0
  %v726 = vadd.f32 %v677, %v725
  %v727 = vpop.f32.mrf.mxu0
  %v728 = vadd.f32 %v679, %v727
  %729 = vmatmul.bf16.gmra.mxu0 %v305
  %v730 = vpop.f32.mrf.mxu0
  %v731 = vadd.f32 %v682, %v730
  %v732 = vpop.f32.mrf.mxu0
  %v733 = vadd.f32 %v684, %v732
  %734 = vmatmul.bf16.gmra.mxu0 %v310
  %v735 = vpop.f32.mrf.mxu0
  %v736 = vadd.f32 %v687, %v735
  %v737 = vpop.f32.mrf.mxu0
  %v738 = vadd.f32 %v689, %v737
  %739 = vdwg.mxu0
  %740 = vmatpush.bf16.msra.mxu0 %v544
  %741 = vmatpush.bf16.msra.mxu0 %v543
  %742 = vmatpush.bf16.msra.mxu0 %v542
  %743 = vmatpush.bf16.msra.mxu0 %v541
  %744 = vmatpush.bf16.msra.mxu0 %v540
  %745 = vmatpush.bf16.msra.mxu0 %v539
  %746 = vmatpush.bf16.msra.mxu0 %v538
  %747 = vmatpush.bf16.msra.mxu0 %v537
  %748 = vmatmul.bf16.gmra.mxu0 %v276
  %v749 = vpop.f32.mrf.mxu0
  %v750 = vadd.f32 %v701, %v749
  %v751 = vpop.f32.mrf.mxu0
  %v752 = vadd.f32 %v703, %v751
  %753 = vmatmul.bf16.gmra.mxu0 %v281
  %v754 = vpop.f32.mrf.mxu0
  %v755 = vadd.f32 %v706, %v754
  %v756 = vpop.f32.mrf.mxu0
  %v757 = vadd.f32 %v708, %v756
  %758 = vmatmul.bf16.gmra.mxu0 %v286
  %v759 = vpop.f32.mrf.mxu0
  %v760 = vadd.f32 %v711, %v759
  %v761 = vpop.f32.mrf.mxu0
  %v762 = vadd.f32 %v713, %v761
  %763 = vmatmul.bf16.gmra.mxu0 %v291
  %v764 = vpop.f32.mrf.mxu0
  %v765 = vadd.f32 %v716, %v764
  %v766 = vpop.f32.mrf.mxu0
  %v767 = vadd.f32 %v718, %v766
  %768 = vmatmul.bf16.gmra.mxu0 %v296
  %v769 = vpop.f32.mrf.mxu0
  %v770 = vadd.f32 %v721, %v769
  %v771 = vpop.f32.mrf.mxu0
  %v772 = vadd.f32 %v723, %v771
  %773 = vmatmul.bf16.gmra.mxu0 %v301
  %v774 = vpop.f32.mrf.mxu0
  %v775 = vadd.f32 %v726, %v774
  %v776 = vpop.f32.mrf.mxu0
  %v777 = vadd.f32 %v728, %v776
  %778 = vmatmul.bf16.gmra.mxu0 %v306
  %v779 = vpop.f32.mrf.mxu0
  %v780 = vadd.f32 %v731, %v779
  %v781 = vpop.f32.mrf.mxu0
  %v782 = vadd.f32 %v733, %v781
  %783 = vmatmul.bf16.gmra.mxu0 %v311
  %v784 = vpop.f32.mrf.mxu0
  %v785 = vadd.f32 %v736, %v784
  %v786 = vpop.f32.mrf.mxu0
  %v787 = vadd.f32 %v738, %v786
  %788 = vdwg.mxu0
  %789 = vmatpush.bf16.msra.mxu0 %v552
  %790 = vmatpush.bf16.msra.mxu0 %v551
  %791 = vmatpush.bf16.msra.mxu0 %v550
  %792 = vmatpush.bf16.msra.mxu0 %v549
  %793 = vmatpush.bf16.msra.mxu0 %v548
  %794 = vmatpush.bf16.msra.mxu0 %v547
  %795 = vmatpush.bf16.msra.mxu0 %v546
  %796 = vmatpush.bf16.msra.mxu0 %v545
  %797 = vmatmul.bf16.gmra.mxu0 %v277
  %v798 = vpop.f32.mrf.mxu0
  %v799 = vadd.f32 %v750, %v798
  %v800 = vpop.f32.mrf.mxu0
  %v801 = vadd.f32 %v752, %v800
  %802 = vmatmul.bf16.gmra.mxu0 %v282
  %v803 = vpop.f32.mrf.mxu0
  %v804 = vadd.f32 %v755, %v803
  %v805 = vpop.f32.mrf.mxu0
  %v806 = vadd.f32 %v757, %v805
  %807 = vmatmul.bf16.gmra.mxu0 %v287
  %v808 = vpop.f32.mrf.mxu0
  %v809 = vadd.f32 %v760, %v808
  %v810 = vpop.f32.mrf.mxu0
  %v811 = vadd.f32 %v762, %v810
  %812 = vmatmul.bf16.gmra.mxu0 %v292
  %v813 = vpop.f32.mrf.mxu0
  %v814 = vadd.f32 %v765, %v813
  %v815 = vpop.f32.mrf.mxu0
  %v816 = vadd.f32 %v767, %v815
  %817 = vmatmul.bf16.gmra.mxu0 %v297
  %v818 = vpop.f32.mrf.mxu0
  %v819 = vadd.f32 %v770, %v818
  %v820 = vpop.f32.mrf.mxu0
  %v821 = vadd.f32 %v772, %v820
  %822 = vmatmul.bf16.gmra.mxu0 %v302
  %v823 = vpop.f32.mrf.mxu0
  %v824 = vadd.f32 %v775, %v823
  %v825 = vpop.f32.mrf.mxu0
  %v826 = vadd.f32 %v777, %v825
  %827 = vmatmul.bf16.gmra.mxu0 %v307
  %v828 = vpop.f32.mrf.mxu0
  %v829 = vadd.f32 %v780, %v828
  %v830 = vpop.f32.mrf.mxu0
  %v831 = vadd.f32 %v782, %v830
  %832 = vmatmul.bf16.gmra.mxu0 %v312
  %v833 = vpop.f32.mrf.mxu0
  %v834 = vadd.f32 %v785, %v833
  %v835 = vpop.f32.mrf.mxu0
  %v836 = vadd.f32 %v787, %v835
  %837 = vdwg.mxu0
  %v838 = vld [vmem:[%s2] sm:$0x1]
  %v839 = vld [vmem:[%s3] sm:$0x1]
  %v841 = vperm.slane %v838, 0
  %v843 = vmul.f32 %v799, %v841
  %v844 = vmul.f32 %v801, %v841
  %v845 = vmul.f32 %v804, %v841
  %v846 = vmul.f32 %v806, %v841
  %v847 = vmul.f32 %v809, %v841
  %v848 = vmul.f32 %v811, %v841
  %v849 = vmul.f32 %v814, %v841
  %v850 = vmul.f32 %v816, %v841
  %v851 = vmul.f32 %v819, %v841
  %v852 = vmul.f32 %v821, %v841
  %v853 = vmul.f32 %v824, %v841
  %v854 = vmul.f32 %v826, %v841
  %v855 = vmul.f32 %v829, %v841
  %v856 = vmul.f32 %v831, %v841
  %v857 = vmul.f32 %v834, %v841
  %v858 = vmul.f32 %v836, %v841
  %v860 = vperm.slane %v839, 0
  %v862 = vadd.f32 %v843, %v860
  %v863 = vadd.f32 %v844, %v860
  %v864 = vadd.f32 %v845, %v860
  %v865 = vadd.f32 %v846, %v860
  %v866 = vadd.f32 %v847, %v860
  %v867 = vadd.f32 %v848, %v860
  %v868 = vadd.f32 %v849, %v860
  %v869 = vadd.f32 %v850, %v860
  %v870 = vadd.f32 %v851, %v860
  %v871 = vadd.f32 %v852, %v860
  %v872 = vadd.f32 %v853, %v860
  %v873 = vadd.f32 %v854, %v860
  %v874 = vadd.f32 %v855, %v860
  %v875 = vadd.f32 %v856, %v860
  %v876 = vadd.f32 %v857, %v860
  %v877 = vadd.f32 %v858, %v860
  %v878 = vmax.f32 %v862, 0.0
  %v879 = vmax.f32 %v863, 0.0
  %v880 = vmax.f32 %v864, 0.0
  %v881 = vmax.f32 %v865, 0.0
  %v882 = vmax.f32 %v866, 0.0
  %v883 = vmax.f32 %v867, 0.0
  %v884 = vmax.f32 %v868, 0.0
  %v885 = vmax.f32 %v869, 0.0
  %v886 = vmax.f32 %v870, 0.0
  %v887 = vmax.f32 %v871, 0.0
  %v888 = vmax.f32 %v872, 0.0
  %v889 = vmax.f32 %v873, 0.0
  %v890 = vmax.f32 %v874, 0.0
  %v891 = vmax.f32 %v875, 0.0
  %v892 = vmax.f32 %v876, 0.0
  %v893 = vmax.f32 %v877, 0.0
  %v894 = vpack.c.bf16 %v878, %v878
  %v895 = vpack.c.bf16 %v879, %v879
  %v896 = vpack.c.bf16 %v880, %v880
  %v897 = vpack.c.bf16 %v881, %v881
  %v898 = vpack.c.bf16 %v882, %v882
  %v899 = vpack.c.bf16 %v883, %v883
  %v900 = vpack.c.bf16 %v884, %v884
  %v901 = vpack.c.bf16 %v885, %v885
  %v902 = vpack.c.bf16 %v886, %v886
  %v903 = vpack.c.bf16 %v887, %v887
  %v904 = vpack.c.bf16 %v888, %v888
  %v905 = vpack.c.bf16 %v889, %v889
  %v906 = vpack.c.bf16 %v890, %v890
  %v907 = vpack.c.bf16 %v891, %v891
  %v908 = vpack.c.bf16 %v892, %v892
  %v909 = vpack.c.bf16 %v893, %v893
  %910 = vst [vmem:[%s4] sm:$0xf] %v894
  %911 = vst [vmem:[%s4 + $0x4] sm:$0xf] %v895
  %912 = vst [vmem:[%s4 + $0x8] sm:$0xf] %v896
  %913 = vst [vmem:[%s4 + $0xc] sm:$0xf] %v897
  %914 = vst [vmem:[%s4 + $0x10] sm:$0xf] %v898
  %915 = vst [vmem:[%s4 + $0x14] sm:$0xf] %v899
  %916 = vst [vmem:[%s4 + $0x18] sm:$0xf] %v900
  %917 = vst [vmem:[%s4 + $0x1c] sm:$0xf] %v901
  %918 = vst [vmem:[%s4 + $0x20] sm:$0xf] %v902
  %919 = vst [vmem:[%s4 + $0x24] sm:$0xf] %v903
  %920 = vst [vmem:[%s4 + $0x28] sm:$0xf] %v904
  %921 = vst [vmem:[%s4 + $0x2c] sm:$0xf] %v905
  %922 = vst [vmem:[%s4 + $0x30] sm:$0xf] %v906
  %923 = vst [vmem:[%s4 + $0x34] sm:$0xf] %v907
  %924 = vst [vmem:[%s4 + $0x38] sm:$0xf] %v908
  %925 = vst [vmem:[%s4 + $0x3c] sm:$0xf] %v909
  // Predicated region
  $region18: #{_lambda_.6} parent=0 // pred_check
    _
  $region19: #{_lambda_.6} parent=0 // pred_check_branch
    %927 = sbr.rel (0) target = $region21
  $region20: #{_lambda_.6} parent=0 // pred_region
    _
  $region21: #{_lambda_.6} parent=0 // pred_fallthru
    _
  // Predicated region
  $region22: #{_lambda_.6} parent=0 // pred_check
    _
  $region23: #{_lambda_.6} parent=0 // pred_check_branch
    %929 = sbr.rel (0) target = $region25
  $region24: #{_lambda_.6} parent=0 // pred_region
    _
  $region25: #{_lambda_.6} parent=0 // pred_fallthru
    _

// kernel: _lambda_.7
$region0: #{_lambda_.7}
  #allocation0 [shape = 'u32[]', space=smem, size = 0x4, offset = 0x4, fixed_abs, tag = 'smem constant byte address 0x4 - core index']
  #allocation1 [shape = 'u32[72,128]{1,0:T(1,128)}', space=vmem, size = 0x9000, scoped, tag = 'internal scratch']
  %s0 = inlined_call_operand.vmem [shape: bf16[16,384], index: 0, kind: input, shape index: {}]
  %s1 = inlined_call_operand.vmem [shape: bf16[384,512], index: 1, kind: input, shape index: {}]
  %s2 = inlined_call_operand.vmem [shape: f32[16,1], index: 2, kind: input, shape index: {}]
  %s3 = inlined_call_operand.vmem [shape: f32[16,1], index: 3, kind: input, shape index: {}]
  %s4 = inlined_call_operand.vmem [shape: f32[16,512], index: 4, kind: output, shape index: {}]
  %s5 = sld [smem:[#allocation0]]
  $region106: #{_lambda_.7} parent=0
    _
  %s7 = ssub.s32 1, %s5
  %s8 = scalar_select 0, %s7, %s5
  $region1: #{_lambda_.7} parent=0
    #allocation2 [shape = 'u8[393216]{0}', space=vmem, size = 0x60000, scoped, tag = 'input window, operand 1']
    #allocation3 [shape = 'u8[32768]{0}', space=vmem, size = 0x8000, scoped, tag = 'output window, operand 0']
    loop: start=0, step=1, limit=4
    $region2: #{_lambda_.7} parent=1 // loop_pre_header
      _
    $region3: #{_lambda_.7} parent=1 // loop_header
      %s10 = sphi 0, %s14
      %p11 = scmp.ge.s32.totalorder %s10, 4
      %s17 = sphi 0, %s36
      %s18 = sphi 0, %s32
      %s19 = sphi 0, %s28
      %s20 = sphi 0, %s17
      %s21 = sphi 0, %s18
      %s22 = sphi 0, %s19
      %s23 = sphi 0, %s20
      %s24 = sphi 0, %s21
      %s25 = sphi 0, %s22
      %s41 = sphi 0, %s43
      %s44 = sphi 0, %s41
      %s45 = sphi 0, %s44
      %s61 = sphi 0, %s45
      %s69 = sphi 0, %s71
      %s72 = sphi 0, %s69
      %s73 = sphi 0, %s72
      %s89 = sphi 0, %s73
      %s95 = sphi 0, %s97
      %s98 = sphi 0, %s95
      %s99 = sphi 0, %s98
      %s115 = sphi 0, %s99
      %s121 = sphi 0, %s123
      %s124 = sphi 0, %s121
      %s125 = sphi 0, %s124
      %s141 = sphi 0, %s125
      %s149 = sphi 0, %s151
      %s152 = sphi 0, %s149
      %s153 = sphi 0, %s152
      %s169 = sphi 0, %s153
    $region4: #{_lambda_.7} parent=1 // loop_header_branch
      %13 = sbr.rel (%p11) target = $region8
    $region5: #{_lambda_.7} parent=1 // loop_body
      %s15 = ssub.s32 %s10, 1
      %s16 = ssub.s32 %s10, 2
      %s26 = sadd.s32 1, %s19
      %p27 = scmp.ge.s32.totalorder %s26, 1
      %s28 = scalar_select %p27, 0, %s26
      %s29 = sadd.s32 1, %s18
      %s30 = scalar_select %p27, %s29, %s18
      %p31 = scmp.ge.s32.totalorder %s30, 2
      %s32 = scalar_select %p31, 0, %s30
      %s33 = sadd.s32 1, %s17
      %s34 = scalar_select %p31, %s33, %s17
      %p35 = scmp.ge.s32.totalorder %s34, 1
      %s36 = scalar_select %p35, 0, %s34
      %s37 = ssub.s32 %s17, %s36
      %s38 = ssub.s32 %s19, %s28
      %s39 = sor.u32 %s37, %s38
      %p40 = scmp.eq.s32.totalorder %s39, 0
      %s42 = sadd.s32 %s41, 1
      %s43 = scalar_select %p40, %s41, %s42
      %p46 = pneg %p40
      %p47 = scmp.eq.s32.totalorder %s10, 1
      %p48 = por %p46, %p47
      %p49 = scmp.ne.s32.totalorder %s41, %s44
      %p50 = scmp.eq.s32.totalorder %s10, 0
      %p51 = por %p49, %p50
      %p52 = scmp.ne.s32.totalorder %s41, %s44
      %p53 = scmp.eq.s32.totalorder %s15, 1
      %p54 = por %p52, %p53
      %p55 = scmp.ne.s32.totalorder %s44, %s45
      %p56 = scmp.eq.s32.totalorder %s15, 0
      %p57 = por %p55, %p56
      %p58 = scmp.ne.s32.totalorder %s44, %s45
      %p59 = scmp.eq.s32.totalorder %s16, 1
      %p60 = por %p58, %p59
      %p62 = scmp.ne.s32.totalorder %s45, %s61
      %p63 = scmp.eq.s32.totalorder %s16, 0
      %p64 = por %p62, %p63
      %s65 = ssub.s32 %s19, %s28
      %s66 = ssub.s32 %s18, %s32
      %s67 = sor.u32 %s65, %s66
      %p68 = scmp.eq.s32.totalorder %s67, 0
      %s70 = sadd.s32 %s69, 1
      %s71 = scalar_select %p68, %s69, %s70
      %p74 = pneg %p68
      %p75 = scmp.eq.s32.totalorder %s10, 1
      %p76 = por %p74, %p75
      %p77 = scmp.ne.s32.totalorder %s69, %s72
      %p78 = scmp.eq.s32.totalorder %s10, 0
      %p79 = por %p77, %p78
      %p80 = scmp.ne.s32.totalorder %s69, %s72
      %p81 = scmp.eq.s32.totalorder %s15, 1
      %p82 = por %p80, %p81
      %p83 = scmp.ne.s32.totalorder %s72, %s73
      %p84 = scmp.eq.s32.totalorder %s15, 0
      %p85 = por %p83, %p84
      %p86 = scmp.ne.s32.totalorder %s72, %s73
      %p87 = scmp.eq.s32.totalorder %s16, 1
      %p88 = por %p86, %p87
      %p90 = scmp.ne.s32.totalorder %s73, %s89
      %p91 = scmp.eq.s32.totalorder %s16, 0
      %p92 = por %p90, %p91
      %s93 = ssub.s32 %s17, %s36
      %p94 = scmp.eq.s32.totalorder %s93, 0
      %s96 = sadd.s32 %s95, 1
      %s97 = scalar_select %p94, %s95, %s96
      %p100 = pneg %p94
      %p101 = scmp.eq.s32.totalorder %s10, 1
      %p102 = por %p100, %p101
      %p103 = scmp.ne.s32.totalorder %s95, %s98
      %p104 = scmp.eq.s32.totalorder %s10, 0
      %p105 = por %p103, %p104
      %p106 = scmp.ne.s32.totalorder %s95, %s98
      %p107 = scmp.eq.s32.totalorder %s15, 1
      %p108 = por %p106, %p107
      %p109 = scmp.ne.s32.totalorder %s98, %s99
      %p110 = scmp.eq.s32.totalorder %s15, 0
      %p111 = por %p109, %p110
      %p112 = scmp.ne.s32.totalorder %s98, %s99
      %p113 = scmp.eq.s32.totalorder %s16, 1
      %p114 = por %p112, %p113
      %p116 = scmp.ne.s32.totalorder %s99, %s115
      %p117 = scmp.eq.s32.totalorder %s16, 0
      %p118 = por %p116, %p117
      %s119 = ssub.s32 %s17, %s36
      %p120 = scmp.eq.s32.totalorder %s119, 0
      %s122 = sadd.s32 %s121, 1
      %s123 = scalar_select %p120, %s121, %s122
      %p126 = pneg %p120
      %p127 = scmp.eq.s32.totalorder %s10, 1
      %p128 = por %p126, %p127
      %p129 = scmp.ne.s32.totalorder %s121, %s124
      %p130 = scmp.eq.s32.totalorder %s10, 0
      %p131 = por %p129, %p130
      %p132 = scmp.ne.s32.totalorder %s121, %s124
      %p133 = scmp.eq.s32.totalorder %s15, 1
      %p134 = por %p132, %p133
      %p135 = scmp.ne.s32.totalorder %s124, %s125
      %p136 = scmp.eq.s32.totalorder %s15, 0
      %p137 = por %p135, %p136
      %p138 = scmp.ne.s32.totalorder %s124, %s125
      %p139 = scmp.eq.s32.totalorder %s16, 1
      %p140 = por %p138, %p139
      %p142 = scmp.ne.s32.totalorder %s125, %s141
      %p143 = scmp.eq.s32.totalorder %s16, 0
      %p144 = por %p142, %p143
      %s145 = ssub.s32 %s17, %s36
      %s146 = ssub.s32 %s18, %s32
      %s147 = sor.u32 %s145, %s146
      %p148 = scmp.eq.s32.totalorder %s147, 0
      %s150 = sadd.s32 %s149, 1
      %s151 = scalar_select %p148, %s149, %s150
      %p154 = pneg %p148
      %p155 = scmp.eq.s32.totalorder %s10, 1
      %p156 = por %p154, %p155
      %p157 = scmp.ne.s32.totalorder %s149, %s152
      %p158 = scmp.eq.s32.totalorder %s10, 0
      %p159 = por %p157, %p158
      %p160 = scmp.ne.s32.totalorder %s149, %s152
      %p161 = scmp.eq.s32.totalorder %s15, 1
      %p162 = por %p160, %p161
      %p163 = scmp.ne.s32.totalorder %s152, %s153
      %p164 = scmp.eq.s32.totalorder %s15, 0
      %p165 = por %p163, %p164
      %p166 = scmp.ne.s32.totalorder %s152, %s153
      %p167 = scmp.eq.s32.totalorder %s16, 1
      %p168 = por %p166, %p167
      %p170 = scmp.ne.s32.totalorder %s153, %s169
      %p171 = scmp.eq.s32.totalorder %s16, 0
      %p172 = por %p170, %p171
      %p173 = scmp.le.s32.totalorder 1, %s10
      %p174 = scmp.lt.s32.totalorder %s10, 3
      %p175 = pnand %p173, %p174
      %p176 = pneg %p175
      // Predicated region
      $region9: #{_lambda_.7} parent=5 // pred_check
        _
      $region10: #{_lambda_.7} parent=5 // pred_check_branch
        %178 = sbr.rel (%p175) target = $region12
      $region11: #{_lambda_.7} parent=5 // pred_region
        %s179 = ssub.s32 %s10, 1
        // Predicated region
        $region13: #{_lambda_.7} parent=11 // pred_check
          %p180 = pneg %p57
        $region14: #{_lambda_.7} parent=11 // pred_check_branch
          %182 = sbr.rel (%p180) target = $region16
        $region15: #{_lambda_.7} parent=11 // pred_region
          %s183 = smul.u32 2, %s20
          %s184 = smul.u32 3, %s22
          %p185 = scmp.lt.s32.totalorder %s183, 1
          %s186 = scalar_select %p185, %s183, 1
          %p187 = scmp.lt.s32.totalorder %s184, 2
          %s188 = scalar_select %p187, %s184, 2
          %s189 = smul.addr %s186, 3
          %s190 = sadd.s32 %s188, %s189
          %s191 = smul.addr %s190, 4
          %s192 = scalar_lea.vmem %s0, %s191
          %s193 = smul.u32 2, %s20
          %s194 = smul.u32 3, %s22
        $region16: #{_lambda_.7} parent=11 // pred_fallthru
          _
        // Predicated region
        $region17: #{_lambda_.7} parent=11 // pred_check
          %p195 = pneg %p111
        $region18: #{_lambda_.7} parent=11 // pred_check_branch
          %197 = sbr.rel (%p195) target = $region20
        $region19: #{_lambda_.7} parent=11 // pred_region
          %s198 = smul.u32 2, %s20
          %p199 = scmp.lt.s32.totalorder %s198, 1
          %s200 = scalar_select %p199, %s198, 1
          %s201 = smul.addr %s200, 8
          %s202 = scalar_lea.vmem %s2, %s201
          %s203 = smul.u32 2, %s20
        $region20: #{_lambda_.7} parent=11 // pred_fallthru
          _
        // Predicated region
        $region21: #{_lambda_.7} parent=11 // pred_check
          %p204 = pneg %p137
        $region22: #{_lambda_.7} parent=11 // pred_check_branch
          %206 = sbr.rel (%p204) target = $region24
        $region23: #{_lambda_.7} parent=11 // pred_region
          %s207 = smul.u32 2, %s20
          %p208 = scmp.lt.s32.totalorder %s207, 1
          %s209 = scalar_select %p208, %s207, 1
          %s210 = smul.addr %s209, 8
          %s211 = scalar_lea.vmem %s3, %s210
          %s212 = smul.u32 2, %s20
        $region24: #{_lambda_.7} parent=11 // pred_fallthru
          _
      $region12: #{_lambda_.7} parent=5 // pred_fallthru
        _
      %p213 = scmp.lt.s32.totalorder %s10, 2
      // Predicated region
      $region25: #{_lambda_.7} parent=5 // pred_check
        %p214 = pneg %p213
      $region26: #{_lambda_.7} parent=5 // pred_check_branch
        %216 = sbr.rel (%p214) target = $region28
      $region27: #{_lambda_.7} parent=5 // pred_region
        // Predicated region
        $region29: #{_lambda_.7} parent=27 // pred_check
          %p217 = pneg %p79
        $region30: #{_lambda_.7} parent=27 // pred_check_branch
          %219 = sbr.rel (%p217) target = $region32
        $region31: #{_lambda_.7} parent=27 // pred_region
          %s220 = sand.u32 %s69, 1
          %s221 = sand.u32 %s69, 1
          %s222 = smul.addr %s221, 384
          %s223 = scalar_lea.vmem [#allocation2], %s222
          %s224 = smul.u32 48, %s19
          %s225 = smul.u32 2, %s18
          %s226 = smul.addr %s224, 4
          %s227 = sadd.s32 %s225, %s226
          %s228 = smul.addr %s227, 4
          %s229 = scalar_lea.vmem %s1, %s228
          // Predicated region
          $region33: #{_lambda_.7} parent=31 // pred_check
            _
          $region34: #{_lambda_.7} parent=31 // pred_check_branch
            %231 = sbr.rel (0) target = $region36
          $region35: #{_lambda_.7} parent=31 // pred_region
            // Predicated region
            $region37: #{_lambda_.7} parent=35 // pred_check
              _
            $region38: #{_lambda_.7} parent=35 // pred_check_branch
              %233 = sbr.rel (0) target = $region40
            $region39: #{_lambda_.7} parent=35 // pred_region
              // Predicated region
              $region52: #{_lambda_.7} parent=39 // pred_check
                _
              $region53: #{_lambda_.7} parent=39 // pred_check_branch
                %343 = sbr.rel (0) target = $region55
              $region54: #{_lambda_.7} parent=39 // pred_region
                loop: start=0, step=1, limit=1
                $region56: #{_lambda_.7} parent=54 // loop_pre_header
                  _
                $region57: #{_lambda_.7} parent=54 // loop_header
                  %s345 = sphi 0, %s349
                  %p346 = scmp.ge.s32.totalorder %s345, 1
                  %s350 = sphi %s229, %s229
                  %s351 = sphi %s223, %s223
                $region58: #{_lambda_.7} parent=54 // loop_header_branch
                  %348 = sbr.rel (%p346) target = $region62
                $region59: #{_lambda_.7} parent=54 // loop_body
                  %v352 = vld [vmem:[%s350] sm:$0xff]
                  %353 = vst [vmem:[%s351] sm:$0xff] %v352
                  %v354 = vld [vmem:[%s350 + $0x10] sm:$0xff]
                  %355 = vst [vmem:[%s351 + $0x8] sm:$0xff] %v354
                  %v356 = vld [vmem:[%s350 + $0x20] sm:$0xff]
                  %357 = vst [vmem:[%s351 + $0x10] sm:$0xff] %v356
                  %v358 = vld [vmem:[%s350 + $0x30] sm:$0xff]
                  %359 = vst [vmem:[%s351 + $0x18] sm:$0xff] %v358
                  %v360 = vld [vmem:[%s350 + $0x40] sm:$0xff]
                  %361 = vst [vmem:[%s351 + $0x20] sm:$0xff] %v360
                  %v362 = vld [vmem:[%s350 + $0x50] sm:$0xff]
                  %363 = vst [vmem:[%s351 + $0x28] sm:$0xff] %v362
                  %v364 = vld [vmem:[%s350 + $0x60] sm:$0xff]
                  %365 = vst [vmem:[%s351 + $0x30] sm:$0xff] %v364
                  %v366 = vld [vmem:[%s350 + $0x70] sm:$0xff]
                  %367 = vst [vmem:[%s351 + $0x38] sm:$0xff] %v366
                  %v368 = vld [vmem:[%s350 + $0x80] sm:$0xff]
                  %369 = vst [vmem:[%s351 + $0x40] sm:$0xff] %v368
                  %v370 = vld [vmem:[%s350 + $0x90] sm:$0xff]
                  %371 = vst [vmem:[%s351 + $0x48] sm:$0xff] %v370
                  %v372 = vld [vmem:[%s350 + $0xa0] sm:$0xff]
                  %373 = vst [vmem:[%s351 + $0x50] sm:$0xff] %v372
                  %v374 = vld [vmem:[%s350 + $0xb0] sm:$0xff]
                  %375 = vst [vmem:[%s351 + $0x58] sm:$0xff] %v374
                  %v376 = vld [vmem:[%s350 + $0xc0] sm:$0xff]
                  %377 = vst [vmem:[%s351 + $0x60] sm:$0xff] %v376
                  %v378 = vld [vmem:[%s350 + $0xd0] sm:$0xff]
                  %379 = vst [vmem:[%s351 + $0x68] sm:$0xff] %v378
                  %v380 = vld [vmem:[%s350 + $0xe0] sm:$0xff]
                  %381 = vst [vmem:[%s351 + $0x70] sm:$0xff] %v380
                  %v382 = vld [vmem:[%s350 + $0xf0] sm:$0xff]
                  %383 = vst [vmem:[%s351 + $0x78] sm:$0xff] %v382
                  %v384 = vld [vmem:[%s350 + $0x100] sm:$0xff]
                  %385 = vst [vmem:[%s351 + $0x80] sm:$0xff] %v384
                  %v386 = vld [vmem:[%s350 + $0x110] sm:$0xff]
                  %387 = vst [vmem:[%s351 + $0x88] sm:$0xff] %v386
                  %v388 = vld [vmem:[%s350 + $0x120] sm:$0xff]
                  %389 = vst [vmem:[%s351 + $0x90] sm:$0xff] %v388
                  %v390 = vld [vmem:[%s350 + $0x130] sm:$0xff]
                  %391 = vst [vmem:[%s351 + $0x98] sm:$0xff] %v390
                  %v392 = vld [vmem:[%s350 + $0x140] sm:$0xff]
                  %393 = vst [vmem:[%s351 + $0xa0] sm:$0xff] %v392
                  %v394 = vld [vmem:[%s350 + $0x150] sm:$0xff]
                  %395 = vst [vmem:[%s351 + $0xa8] sm:$0xff] %v394
                  %v396 = vld [vmem:[%s350 + $0x160] sm:$0xff]
                  %397 = vst [vmem:[%s351 + $0xb0] sm:$0xff] %v396
                  %v398 = vld [vmem:[%s350 + $0x170] sm:$0xff]
                  %399 = vst [vmem:[%s351 + $0xb8] sm:$0xff] %v398
                  %v400 = vld [vmem:[%s350 + $0x180] sm:$0xff]
                  %401 = vst [vmem:[%s351 + $0xc0] sm:$0xff] %v400
                  %v402 = vld [vmem:[%s350 + $0x190] sm:$0xff]
                  %403 = vst [vmem:[%s351 + $0xc8] sm:$0xff] %v402
                  %v404 = vld [vmem:[%s350 + $0x1a0] sm:$0xff]
                  %405 = vst [vmem:[%s351 + $0xd0] sm:$0xff] %v404
                  %v406 = vld [vmem:[%s350 + $0x1b0] sm:$0xff]
                  %407 = vst [vmem:[%s351 + $0xd8] sm:$0xff] %v406
                  %v408 = vld [vmem:[%s350 + $0x1c0] sm:$0xff]
                  %409 = vst [vmem:[%s351 + $0xe0] sm:$0xff] %v408
                  %v410 = vld [vmem:[%s350 + $0x1d0] sm:$0xff]
                  %411 = vst [vmem:[%s351 + $0xe8] sm:$0xff] %v410
                  %v412 = vld [vmem:[%s350 + $0x1e0] sm:$0xff]
                  %413 = vst [vmem:[%s351 + $0xf0] sm:$0xff] %v412
                  %v414 = vld [vmem:[%s350 + $0x1f0] sm:$0xff]
                  %415 = vst [vmem:[%s351 + $0xf8] sm:$0xff] %v414
                  %v416 = vld [vmem:[%s350 + $0x200] sm:$0xff]
                  %417 = vst [vmem:[%s351 + $0x100] sm:$0xff] %v416
                  %v418 = vld [vmem:[%s350 + $0x210] sm:$0xff]
                  %419 = vst [vmem:[%s351 + $0x108] sm:$0xff] %v418
                  %v420 = vld [vmem:[%s350 + $0x220] sm:$0xff]
                  %421 = vst [vmem:[%s351 + $0x110] sm:$0xff] %v420
                  %v422 = vld [vmem:[%s350 + $0x230] sm:$0xff]
                  %423 = vst [vmem:[%s351 + $0x118] sm:$0xff] %v422
                  %v424 = vld [vmem:[%s350 + $0x240] sm:$0xff]
                  %425 = vst [vmem:[%s351 + $0x120] sm:$0xff] %v424
                  %v426 = vld [vmem:[%s350 + $0x250] sm:$0xff]
                  %427 = vst [vmem:[%s351 + $0x128] sm:$0xff] %v426
                  %v428 = vld [vmem:[%s350 + $0x260] sm:$0xff]
                  %429 = vst [vmem:[%s351 + $0x130] sm:$0xff] %v428
                  %v430 = vld [vmem:[%s350 + $0x270] sm:$0xff]
                  %431 = vst [vmem:[%s351 + $0x138] sm:$0xff] %v430
                  %v432 = vld [vmem:[%s350 + $0x280] sm:$0xff]
                  %433 = vst [vmem:[%s351 + $0x140] sm:$0xff] %v432
                  %v434 = vld [vmem:[%s350 + $0x290] sm:$0xff]
                  %435 = vst [vmem:[%s351 + $0x148] sm:$0xff] %v434
                  %v436 = vld [vmem:[%s350 + $0x2a0] sm:$0xff]
                  %437 = vst [vmem:[%s351 + $0x150] sm:$0xff] %v436
                  %v438 = vld [vmem:[%s350 + $0x2b0] sm:$0xff]
                  %439 = vst [vmem:[%s351 + $0x158] sm:$0xff] %v438
                  %v440 = vld [vmem:[%s350 + $0x2c0] sm:$0xff]
                  %441 = vst [vmem:[%s351 + $0x160] sm:$0xff] %v440
                  %v442 = vld [vmem:[%s350 + $0x2d0] sm:$0xff]
                  %443 = vst [vmem:[%s351 + $0x168] sm:$0xff] %v442
                  %v444 = vld [vmem:[%s350 + $0x2e0] sm:$0xff]
                  %445 = vst [vmem:[%s351 + $0x170] sm:$0xff] %v444
                  %v446 = vld [vmem:[%s350 + $0x2f0] sm:$0xff]
                  %447 = vst [vmem:[%s351 + $0x178] sm:$0xff] %v446
                $region60: #{_lambda_.7} parent=54 // loop_footer
                  %s349 = sadd.s32 1, %s345
                $region61: #{_lambda_.7} parent=54 // loop_footer_branch
                  %344 = sbr.rel target = $region57
                $region62: #{_lambda_.7} parent=54 // loop_exit
                  _
              $region55: #{_lambda_.7} parent=39 // pred_fallthru
                _
              // Predicated region
              $region63: #{_lambda_.7} parent=39 // pred_check
                _
              $region64: #{_lambda_.7} parent=39 // pred_check_branch
                %449 = sbr.rel target = $region66
              $region65: #{_lambda_.7} parent=39 // pred_region
                _
              $region66: #{_lambda_.7} parent=39 // pred_fallthru
                _
            $region40: #{_lambda_.7} parent=35 // pred_fallthru
              _
            // Predicated region
            $region41: #{_lambda_.7} parent=35 // pred_check
              _
            $region42: #{_lambda_.7} parent=35 // pred_check_branch
              %235 = sbr.rel target = $region44
            $region43: #{_lambda_.7} parent=35 // pred_region
              %s237 = ssub.s32 256, 1
              loop: start=0, step=1, limit=1
              $region45: #{_lambda_.7} parent=43 // loop_pre_header
                _
              $region46: #{_lambda_.7} parent=43 // loop_header
                %s239 = sphi 0, %s243
                %p240 = scmp.ge.s32.totalorder %s239, 1
                %s244 = sphi %s229, %s229
                %s245 = sphi %s223, %s223
              $region47: #{_lambda_.7} parent=43 // loop_header_branch
                %242 = sbr.rel (%p240) target = $region51
              $region48: #{_lambda_.7} parent=43 // loop_body
                %v246 = vld [vmem:[%s244] sm:%s237]
                %247 = vst [vmem:[%s245] sm:%s237] %v246
                %v248 = vld [vmem:[%s244 + $0x10] sm:%s237]
                %249 = vst [vmem:[%s245 + $0x8] sm:%s237] %v248
                %v250 = vld [vmem:[%s244 + $0x20] sm:%s237]
                %251 = vst [vmem:[%s245 + $0x10] sm:%s237] %v250
                %v252 = vld [vmem:[%s244 + $0x30] sm:%s237]
                %253 = vst [vmem:[%s245 + $0x18] sm:%s237] %v252
                %v254 = vld [vmem:[%s244 + $0x40] sm:%s237]
                %255 = vst [vmem:[%s245 + $0x20] sm:%s237] %v254
                %v256 = vld [vmem:[%s244 + $0x50] sm:%s237]
                %257 = vst [vmem:[%s245 + $0x28] sm:%s237] %v256
                %v258 = vld [vmem:[%s244 + $0x60] sm:%s237]
                %259 = vst [vmem:[%s245 + $0x30] sm:%s237] %v258
                %v260 = vld [vmem:[%s244 + $0x70] sm:%s237]
                %261 = vst [vmem:[%s245 + $0x38] sm:%s237] %v260
                %v262 = vld [vmem:[%s244 + $0x80] sm:%s237]
                %263 = vst [vmem:[%s245 + $0x40] sm:%s237] %v262
                %v264 = vld [vmem:[%s244 + $0x90] sm:%s237]
                %265 = vst [vmem:[%s245 + $0x48] sm:%s237] %v264
                %v266 = vld [vmem:[%s244 + $0xa0] sm:%s237]
                %267 = vst [vmem:[%s245 + $0x50] sm:%s237] %v266
                %v268 = vld [vmem:[%s244 + $0xb0] sm:%s237]
                %269 = vst [vmem:[%s245 + $0x58] sm:%s237] %v268
                %v270 = vld [vmem:[%s244 + $0xc0] sm:%s237]
                %271 = vst [vmem:[%s245 + $0x60] sm:%s237] %v270
                %v272 = vld [vmem:[%s244 + $0xd0] sm:%s237]
                %273 = vst [vmem:[%s245 + $0x68] sm:%s237] %v272
                %v274 = vld [vmem:[%s244 + $0xe0] sm:%s237]
                %275 = vst [vmem:[%s245 + $0x70] sm:%s237] %v274
                %v276 = vld [vmem:[%s244 + $0xf0] sm:%s237]
                %277 = vst [vmem:[%s245 + $0x78] sm:%s237] %v276
                %v278 = vld [vmem:[%s244 + $0x100] sm:%s237]
                %279 = vst [vmem:[%s245 + $0x80] sm:%s237] %v278
                %v280 = vld [vmem:[%s244 + $0x110] sm:%s237]
                %281 = vst [vmem:[%s245 + $0x88] sm:%s237] %v280
                %v282 = vld [vmem:[%s244 + $0x120] sm:%s237]
                %283 = vst [vmem:[%s245 + $0x90] sm:%s237] %v282
                %v284 = vld [vmem:[%s244 + $0x130] sm:%s237]
                %285 = vst [vmem:[%s245 + $0x98] sm:%s237] %v284
                %v286 = vld [vmem:[%s244 + $0x140] sm:%s237]
                %287 = vst [vmem:[%s245 + $0xa0] sm:%s237] %v286
                %v288 = vld [vmem:[%s244 + $0x150] sm:%s237]
                %289 = vst [vmem:[%s245 + $0xa8] sm:%s237] %v288
                %v290 = vld [vmem:[%s244 + $0x160] sm:%s237]
                %291 = vst [vmem:[%s245 + $0xb0] sm:%s237] %v290
                %v292 = vld [vmem:[%s244 + $0x170] sm:%s237]
                %293 = vst [vmem:[%s245 + $0xb8] sm:%s237] %v292
                %v294 = vld [vmem:[%s244 + $0x180] sm:%s237]
                %295 = vst [vmem:[%s245 + $0xc0] sm:%s237] %v294
                %v296 = vld [vmem:[%s244 + $0x190] sm:%s237]
                %297 = vst [vmem:[%s245 + $0xc8] sm:%s237] %v296
                %v298 = vld [vmem:[%s244 + $0x1a0] sm:%s237]
                %299 = vst [vmem:[%s245 + $0xd0] sm:%s237] %v298
                %v300 = vld [vmem:[%s244 + $0x1b0] sm:%s237]
                %301 = vst [vmem:[%s245 + $0xd8] sm:%s237] %v300
                %v302 = vld [vmem:[%s244 + $0x1c0] sm:%s237]
                %303 = vst [vmem:[%s245 + $0xe0] sm:%s237] %v302
                %v304 = vld [vmem:[%s244 + $0x1d0] sm:%s237]
                %305 = vst [vmem:[%s245 + $0xe8] sm:%s237] %v304
                %v306 = vld [vmem:[%s244 + $0x1e0] sm:%s237]
                %307 = vst [vmem:[%s245 + $0xf0] sm:%s237] %v306
                %v308 = vld [vmem:[%s244 + $0x1f0] sm:%s237]
                %309 = vst [vmem:[%s245 + $0xf8] sm:%s237] %v308
                %v310 = vld [vmem:[%s244 + $0x200] sm:%s237]
                %311 = vst [vmem:[%s245 + $0x100] sm:%s237] %v310
                %v312 = vld [vmem:[%s244 + $0x210] sm:%s237]
                %313 = vst [vmem:[%s245 + $0x108] sm:%s237] %v312
                %v314 = vld [vmem:[%s244 + $0x220] sm:%s237]
                %315 = vst [vmem:[%s245 + $0x110] sm:%s237] %v314
                %v316 = vld [vmem:[%s244 + $0x230] sm:%s237]
                %317 = vst [vmem:[%s245 + $0x118] sm:%s237] %v316
                %v318 = vld [vmem:[%s244 + $0x240] sm:%s237]
                %319 = vst [vmem:[%s245 + $0x120] sm:%s237] %v318
                %v320 = vld [vmem:[%s244 + $0x250] sm:%s237]
                %321 = vst [vmem:[%s245 + $0x128] sm:%s237] %v320
                %v322 = vld [vmem:[%s244 + $0x260] sm:%s237]
                %323 = vst [vmem:[%s245 + $0x130] sm:%s237] %v322
                %v324 = vld [vmem:[%s244 + $0x270] sm:%s237]
                %325 = vst [vmem:[%s245 + $0x138] sm:%s237] %v324
                %v326 = vld [vmem:[%s244 + $0x280] sm:%s237]
                %327 = vst [vmem:[%s245 + $0x140] sm:%s237] %v326
                %v328 = vld [vmem:[%s244 + $0x290] sm:%s237]
                %329 = vst [vmem:[%s245 + $0x148] sm:%s237] %v328
                %v330 = vld [vmem:[%s244 + $0x2a0] sm:%s237]
                %331 = vst [vmem:[%s245 + $0x150] sm:%s237] %v330
                %v332 = vld [vmem:[%s244 + $0x2b0] sm:%s237]
                %333 = vst [vmem:[%s245 + $0x158] sm:%s237] %v332
                %v334 = vld [vmem:[%s244 + $0x2c0] sm:%s237]
                %335 = vst [vmem:[%s245 + $0x160] sm:%s237] %v334
                %v336 = vld [vmem:[%s244 + $0x2d0] sm:%s237]
                %337 = vst [vmem:[%s245 + $0x168] sm:%s237] %v336
                %v338 = vld [vmem:[%s244 + $0x2e0] sm:%s237]
                %339 = vst [vmem:[%s245 + $0x170] sm:%s237] %v338
                %v340 = vld [vmem:[%s244 + $0x2f0] sm:%s237]
                %341 = vst [vmem:[%s245 + $0x178] sm:%s237] %v340
              $region49: #{_lambda_.7} parent=43 // loop_footer
                %s243 = sadd.s32 1, %s239
              $region50: #{_lambda_.7} parent=43 // loop_footer_branch
                %238 = sbr.rel target = $region46
              $region51: #{_lambda_.7} parent=43 // loop_exit
                _
            $region44: #{_lambda_.7} parent=35 // pred_fallthru
              _
          $region36: #{_lambda_.7} parent=31 // pred_fallthru
            _
          %450 = vnop
        $region32: #{_lambda_.7} parent=27 // pred_fallthru
          _
      $region28: #{_lambda_.7} parent=5 // pred_fallthru
        _
      %p451 = scmp.le.s32.totalorder 1, %s10
      %p452 = scmp.lt.s32.totalorder %s10, 3
      %p453 = pnand %p451, %p452
      %p454 = pneg %p453
      // Predicated region
      $region67: #{_lambda_.7} parent=5 // pred_check
        _
      $region68: #{_lambda_.7} parent=5 // pred_check_branch
        %456 = sbr.rel (%p453) target = $region70
      $region69: #{_lambda_.7} parent=5 // pred_region
        %s457 = ssub.s32 %s10, 1
        %s458 = sand.u32 %s72, 1
        %s459 = sand.u32 %s72, 1
        %s460 = smul.addr %s459, 384
        %s461 = scalar_lea.vmem [#allocation2], %s460
        // Predicated region
        $region71: #{_lambda_.7} parent=69 // pred_check
          %p462 = pneg %p85
        $region72: #{_lambda_.7} parent=69 // pred_check_branch
          %464 = sbr.rel (%p462) target = $region74
        $region73: #{_lambda_.7} parent=69 // pred_region
          _
        $region74: #{_lambda_.7} parent=69 // pred_fallthru
          _
        %s465 = smul.u32 2, %s20
        %s466 = smul.u32 3, %s22
        %p467 = scmp.lt.s32.totalorder %s465, 1
        %s468 = scalar_select %p467, %s465, 1
        %p469 = scmp.lt.s32.totalorder %s466, 2
        %s470 = scalar_select %p469, %s466, 2
        %s471 = smul.addr %s468, 3
        %s472 = sadd.s32 %s470, %s471
        %s473 = smul.addr %s472, 4
        %s474 = scalar_lea.vmem %s0, %s473
        %p475 = pneg %p57
        %p476 = pneg %p54
        %s477 = sand.u32 %s72, 1
        %s478 = sand.u32 %s72, 1
        %s479 = smul.addr %s478, 384
        %s480 = scalar_lea.vmem [#allocation2], %s479
        %p481 = pneg %p85
        %p482 = pneg %p82
        %s483 = smul.u32 2, %s20
        %p484 = scmp.lt.s32.totalorder %s483, 1
        %s485 = scalar_select %p484, %s483, 1
        %s486 = smul.addr %s485, 8
        %s487 = scalar_lea.vmem %s2, %s486
        %p488 = pneg %p111
        %p489 = pneg %p108
        %s490 = smul.u32 2, %s20
        %p491 = scmp.lt.s32.totalorder %s490, 1
        %s492 = scalar_select %p491, %s490, 1
        %s493 = smul.addr %s492, 8
        %s494 = scalar_lea.vmem %s3, %s493
        %p495 = pneg %p137
        %p496 = pneg %p134
        %p497 = pneg %p165
        %p498 = pneg %p162
        %s499 = sand.u32 %s152, 1
        %s500 = sand.u32 %s152, 1
        %s501 = smul.addr %s500, 32
        %s502 = scalar_lea.vmem [#allocation3], %s501
        %s503 = smul.u32 2, %s20
        %s504 = smul.u32 3, %s22
        %p505 = scmp.lt.s32.totalorder %s503, 1
        %s506 = scalar_select %p505, %s503, 1
        %p507 = scmp.lt.s32.totalorder %s504, 2
        %s508 = scalar_select %p507, %s504, 2
        %s509 = smul.addr %s506, 3
        %s510 = sadd.s32 %s508, %s509
        %s511 = smul.addr %s510, 4
        %s512 = scalar_lea.vmem %s0, %s511
        %s513 = smul.u32 2, %s20
        %s514 = smul.u32 3, %s22
        %s515 = smul.u32 48, %s22
        %s516 = smul.u32 2, %s21
        %s517 = smul.u32 2, %s20
        %p518 = scmp.lt.s32.totalorder %s517, 1
        %s519 = scalar_select %p518, %s517, 1
        %s520 = smul.addr %s519, 8
        %s521 = scalar_lea.vmem %s2, %s520
        %s522 = smul.u32 2, %s20
        %s523 = smul.u32 2, %s20
        %p524 = scmp.lt.s32.totalorder %s523, 1
        %s525 = scalar_select %p524, %s523, 1
        %s526 = smul.addr %s525, 8
        %s527 = scalar_lea.vmem %s3, %s526
        %s528 = smul.u32 2, %s20
        %s529 = smul.u32 2, %s20
        %s530 = smul.u32 2, %s21
        %v531 = vld [vmem:[%s512] sm:$0xff]
        %v532 = vld [vmem:[%s512 + $0x8] sm:$0xf]
        %v533 = vld [vmem:[%s512 + $0xc] sm:$0xff]
        %v534 = vld [vmem:[%s512 + $0x14] sm:$0xf]
        %v535 = vld [vmem:[%s461] sm:$0xff]
        %v536 = vld [vmem:[%s461 + $0x8] sm:$0xff]
        %v537 = vld [vmem:[%s461 + $0x10] sm:$0xff]
        %v538 = vld [vmem:[%s461 + $0x18] sm:$0xff]
        %v539 = vld [vmem:[%s461 + $0x20] sm:$0xff]
        %v540 = vld [vmem:[%s461 + $0x28] sm:$0xff]
        %v541 = vld [vmem:[%s461 + $0x30] sm:$0xff]
        %v542 = vld [vmem:[%s461 + $0x38] sm:$0xff]
        %v543 = vld [vmem:[%s461 + $0x40] sm:$0xff]
        %v544 = vld [vmem:[%s461 + $0x48] sm:$0xff]
        %v545 = vld [vmem:[%s461 + $0x50] sm:$0xff]
        %v546 = vld [vmem:[%s461 + $0x58] sm:$0xff]
        %v547 = vld [vmem:[%s461 + $0x60] sm:$0xff]
        %v548 = vld [vmem:[%s461 + $0x68] sm:$0xff]
        %v549 = vld [vmem:[%s461 + $0x70] sm:$0xff]
        %v550 = vld [vmem:[%s461 + $0x78] sm:$0xff]
        %v551 = vld [vmem:[%s461 + $0x80] sm:$0xff]
        %v552 = vld [vmem:[%s461 + $0x88] sm:$0xff]
        %v553 = vld [vmem:[%s461 + $0x90] sm:$0xff]
        %v554 = vld [vmem:[%s461 + $0x98] sm:$0xff]
        %v555 = vld [vmem:[%s461 + $0xa0] sm:$0xff]
        %v556 = vld [vmem:[%s461 + $0xa8] sm:$0xff]
        %v557 = vld [vmem:[%s461 + $0xb0] sm:$0xff]
        %v558 = vld [vmem:[%s461 + $0xb8] sm:$0xff]
        %v559 = vld [vmem:[%s461 + $0xc0] sm:$0xff]
        %v560 = vld [vmem:[%s461 + $0xc8] sm:$0xff]
        %v561 = vld [vmem:[%s461 + $0xd0] sm:$0xff]
        %v562 = vld [vmem:[%s461 + $0xd8] sm:$0xff]
        %v563 = vld [vmem:[%s461 + $0xe0] sm:$0xff]
        %v564 = vld [vmem:[%s461 + $0xe8] sm:$0xff]
        %v565 = vld [vmem:[%s461 + $0xf0] sm:$0xff]
        %v566 = vld [vmem:[%s461 + $0xf8] sm:$0xff]
        %v567 = vld [vmem:[%s461 + $0x100] sm:$0xff]
        %v568 = vld [vmem:[%s461 + $0x108] sm:$0xff]
        %v569 = vld [vmem:[%s461 + $0x110] sm:$0xff]
        %v570 = vld [vmem:[%s461 + $0x118] sm:$0xff]
        %v571 = vld [vmem:[%s461 + $0x120] sm:$0xff]
        %v572 = vld [vmem:[%s461 + $0x128] sm:$0xff]
        %v573 = vld [vmem:[%s461 + $0x130] sm:$0xff]
        %v574 = vld [vmem:[%s461 + $0x138] sm:$0xff]
        %v575 = vld [vmem:[%s461 + $0x140] sm:$0xff]
        %v576 = vld [vmem:[%s461 + $0x148] sm:$0xff]
        %v577 = vld [vmem:[%s461 + $0x150] sm:$0xff]
        %v578 = vld [vmem:[%s461 + $0x158] sm:$0xff]
        %v579 = vld [vmem:[%s461 + $0x160] sm:$0xff]
        %v580 = vld [vmem:[%s461 + $0x168] sm:$0xff]
        %v581 = vld [vmem:[%s461 + $0x170] sm:$0xff]
        %v582 = vld [vmem:[%s461 + $0x178] sm:$0xff]
        %v587 = vunpack.c.l.b16 %v531
        %v588 = vunpack.c.h.b16 %v531
        %v589 = vunpack.c.l.b16 %v532
        %v590 = vunpack.c.l.b16 %v533
        %v591 = vunpack.c.h.b16 %v533
        %v592 = vunpack.c.l.b16 %v534
        %v593 = vpack.c.b16 %v590, %v587
        %v594 = vpack.c.b16 %v591, %v588
        %v595 = vpack.c.b16 %v592, %v589
        %v647 = vunpack.c.l.b16 %v535
        %v648 = vunpack.c.h.b16 %v535
        %v649 = vunpack.c.l.b16 %v536
        %v650 = vunpack.c.h.b16 %v536
        %v651 = vunpack.c.l.b16 %v537
        %v652 = vunpack.c.h.b16 %v537
        %v653 = vunpack.c.l.b16 %v538
        %v654 = vunpack.c.h.b16 %v538
        %v655 = vunpack.c.l.b16 %v539
        %v656 = vunpack.c.h.b16 %v539
        %v657 = vunpack.c.l.b16 %v540
        %v658 = vunpack.c.h.b16 %v540
        %v659 = vunpack.c.l.b16 %v541
        %v660 = vunpack.c.h.b16 %v541
        %v661 = vunpack.c.l.b16 %v542
        %v662 = vunpack.c.h.b16 %v542
        %v663 = vunpack.c.l.b16 %v543
        %v664 = vunpack.c.h.b16 %v543
        %v665 = vunpack.c.l.b16 %v544
        %v666 = vunpack.c.h.b16 %v544
        %v667 = vunpack.c.l.b16 %v545
        %v668 = vunpack.c.h.b16 %v545
        %v669 = vunpack.c.l.b16 %v546
        %v670 = vunpack.c.h.b16 %v546
        %v671 = vunpack.c.l.b16 %v547
        %v672 = vunpack.c.h.b16 %v547
        %v673 = vunpack.c.l.b16 %v548
        %v674 = vunpack.c.h.b16 %v548
        %v675 = vunpack.c.l.b16 %v549
        %v676 = vunpack.c.h.b16 %v549
        %v677 = vunpack.c.l.b16 %v550
        %v678 = vunpack.c.h.b16 %v550
        %v679 = vunpack.c.l.b16 %v551
        %v680 = vunpack.c.h.b16 %v551
        %v681 = vunpack.c.l.b16 %v552
        %v682 = vunpack.c.h.b16 %v552
        %v683 = vunpack.c.l.b16 %v553
        %v684 = vunpack.c.h.b16 %v553
        %v685 = vunpack.c.l.b16 %v554
        %v686 = vunpack.c.h.b16 %v554
        %v687 = vunpack.c.l.b16 %v555
        %v688 = vunpack.c.h.b16 %v555
        %v689 = vunpack.c.l.b16 %v556
        %v690 = vunpack.c.h.b16 %v556
        %v691 = vunpack.c.l.b16 %v557
        %v692 = vunpack.c.h.b16 %v557
        %v693 = vunpack.c.l.b16 %v558
        %v694 = vunpack.c.h.b16 %v558
        %v695 = vunpack.c.l.b16 %v559
        %v696 = vunpack.c.h.b16 %v559
        %v697 = vunpack.c.l.b16 %v560
        %v698 = vunpack.c.h.b16 %v560
        %v699 = vunpack.c.l.b16 %v561
        %v700 = vunpack.c.h.b16 %v561
        %v701 = vunpack.c.l.b16 %v562
        %v702 = vunpack.c.h.b16 %v562
        %v703 = vunpack.c.l.b16 %v563
        %v704 = vunpack.c.h.b16 %v563
        %v705 = vunpack.c.l.b16 %v564
        %v706 = vunpack.c.h.b16 %v564
        %v707 = vunpack.c.l.b16 %v565
        %v708 = vunpack.c.h.b16 %v565
        %v709 = vunpack.c.l.b16 %v566
        %v710 = vunpack.c.h.b16 %v566
        %v711 = vunpack.c.l.b16 %v567
        %v712 = vunpack.c.h.b16 %v567
        %v713 = vunpack.c.l.b16 %v568
        %v714 = vunpack.c.h.b16 %v568
        %v715 = vunpack.c.l.b16 %v569
        %v716 = vunpack.c.h.b16 %v569
        %v717 = vunpack.c.l.b16 %v570
        %v718 = vunpack.c.h.b16 %v570
        %v719 = vunpack.c.l.b16 %v571
        %v720 = vunpack.c.h.b16 %v571
        %v721 = vunpack.c.l.b16 %v572
        %v722 = vunpack.c.h.b16 %v572
        %v723 = vunpack.c.l.b16 %v573
        %v724 = vunpack.c.h.b16 %v573
        %v725 = vunpack.c.l.b16 %v574
        %v726 = vunpack.c.h.b16 %v574
        %v727 = vunpack.c.l.b16 %v575
        %v728 = vunpack.c.h.b16 %v575
        %v729 = vunpack.c.l.b16 %v576
        %v730 = vunpack.c.h.b16 %v576
        %v731 = vunpack.c.l.b16 %v577
        %v732 = vunpack.c.h.b16 %v577
        %v733 = vunpack.c.l.b16 %v578
        %v734 = vunpack.c.h.b16 %v578
        %v735 = vunpack.c.l.b16 %v579
        %v736 = vunpack.c.h.b16 %v579
        %v737 = vunpack.c.l.b16 %v580
        %v738 = vunpack.c.h.b16 %v580
        %v739 = vunpack.c.l.b16 %v581
        %v740 = vunpack.c.h.b16 %v581
        %v741 = vunpack.c.l.b16 %v582
        %v742 = vunpack.c.h.b16 %v582
        %v743 = vpack.c.b16 %v649, %v647
        %v744 = vpack.c.b16 %v650, %v648
        %v745 = vpack.c.b16 %v653, %v651
        %v746 = vpack.c.b16 %v654, %v652
        %v747 = vpack.c.b16 %v657, %v655
        %v748 = vpack.c.b16 %v658, %v656
        %v749 = vpack.c.b16 %v661, %v659
        %v750 = vpack.c.b16 %v662, %v660
        %v751 = vpack.c.b16 %v665, %v663
        %v752 = vpack.c.b16 %v666, %v664
        %v753 = vpack.c.b16 %v669, %v667
        %v754 = vpack.c.b16 %v670, %v668
        %v755 = vpack.c.b16 %v673, %v671
        %v756 = vpack.c.b16 %v674, %v672
        %v757 = vpack.c.b16 %v677, %v675
        %v758 = vpack.c.b16 %v678, %v676
        %v759 = vpack.c.b16 %v681, %v679
        %v760 = vpack.c.b16 %v682, %v680
        %v761 = vpack.c.b16 %v685, %v683
        %v762 = vpack.c.b16 %v686, %v684
        %v763 = vpack.c.b16 %v689, %v687
        %v764 = vpack.c.b16 %v690, %v688
        %v765 = vpack.c.b16 %v693, %v691
        %v766 = vpack.c.b16 %v694, %v692
        %v767 = vpack.c.b16 %v697, %v695
        %v768 = vpack.c.b16 %v698, %v696
        %v769 = vpack.c.b16 %v701, %v699
        %v770 = vpack.c.b16 %v702, %v700
        %v771 = vpack.c.b16 %v705, %v703
        %v772 = vpack.c.b16 %v706, %v704
        %v773 = vpack.c.b16 %v709, %v707
        %v774 = vpack.c.b16 %v710, %v708
        %v775 = vpack.c.b16 %v713, %v711
        %v776 = vpack.c.b16 %v714, %v712
        %v777 = vpack.c.b16 %v717, %v715
        %v778 = vpack.c.b16 %v718, %v716
        %v779 = vpack.c.b16 %v721, %v719
        %v780 = vpack.c.b16 %v722, %v720
        %v781 = vpack.c.b16 %v725, %v723
        %v782 = vpack.c.b16 %v726, %v724
        %v783 = vpack.c.b16 %v729, %v727
        %v784 = vpack.c.b16 %v730, %v728
        %v785 = vpack.c.b16 %v733, %v731
        %v786 = vpack.c.b16 %v734, %v732
        %v787 = vpack.c.b16 %v737, %v735
        %v788 = vpack.c.b16 %v738, %v736
        %v789 = vpack.c.b16 %v741, %v739
        %v790 = vpack.c.b16 %v742, %v740
        %839 = vmatpush.bf16.msra.mxu0 %v757
        %840 = vmatpush.bf16.msra.mxu0 %v755
        %841 = vmatpush.bf16.msra.mxu0 %v753
        %842 = vmatpush.bf16.msra.mxu0 %v751
        %843 = vmatpush.bf16.msra.mxu0 %v749
        %844 = vmatpush.bf16.msra.mxu0 %v747
        %845 = vmatpush.bf16.msra.mxu0 %v745
        %846 = vmatpush.bf16.msra.mxu0 %v743
        %847 = vmatmul.bf16.gmra.mxu0 %v593
        %v848 = vpop.f32.mrf.mxu0
        %v849 = vadd.f32 0.0, %v848
        %v850 = vpop.f32.mrf.mxu0
        %v851 = vadd.f32 0.0, %v850
        %852 = vdwg.mxu0
        %853 = vmatpush.bf16.msra.mxu0 %v773
        %854 = vmatpush.bf16.msra.mxu0 %v771
        %855 = vmatpush.bf16.msra.mxu0 %v769
        %856 = vmatpush.bf16.msra.mxu0 %v767
        %857 = vmatpush.bf16.msra.mxu0 %v765
        %858 = vmatpush.bf16.msra.mxu0 %v763
        %859 = vmatpush.bf16.msra.mxu0 %v761
        %860 = vmatpush.bf16.msra.mxu0 %v759
        %861 = vmatmul.bf16.gmra.mxu0 %v594
        %v862 = vpop.f32.mrf.mxu0
        %v863 = vadd.f32 %v849, %v862
        %v864 = vpop.f32.mrf.mxu0
        %v865 = vadd.f32 %v851, %v864
        %866 = vdwg.mxu0
        %867 = vmatpush.bf16.msra.mxu0 %v789
        %868 = vmatpush.bf16.msra.mxu0 %v787
        %869 = vmatpush.bf16.msra.mxu0 %v785
        %870 = vmatpush.bf16.msra.mxu0 %v783
        %871 = vmatpush.bf16.msra.mxu0 %v781
        %872 = vmatpush.bf16.msra.mxu0 %v779
        %873 = vmatpush.bf16.msra.mxu0 %v777
        %874 = vmatpush.bf16.msra.mxu0 %v775
        %875 = vmatmul.bf16.gmra.mxu0 %v595
        %v876 = vpop.f32.mrf.mxu0
        %v877 = vadd.f32 %v863, %v876
        %v878 = vpop.f32.mrf.mxu0
        %v879 = vadd.f32 %v865, %v878
        %880 = vdwg.mxu0
        %881 = vmatpush.bf16.msra.mxu0 %v758
        %882 = vmatpush.bf16.msra.mxu0 %v756
        %883 = vmatpush.bf16.msra.mxu0 %v754
        %884 = vmatpush.bf16.msra.mxu0 %v752
        %885 = vmatpush.bf16.msra.mxu0 %v750
        %886 = vmatpush.bf16.msra.mxu0 %v748
        %887 = vmatpush.bf16.msra.mxu0 %v746
        %888 = vmatpush.bf16.msra.mxu0 %v744
        %889 = vmatmul.bf16.gmra.mxu0 %v593
        %v890 = vpop.f32.mrf.mxu0
        %v891 = vadd.f32 0.0, %v890
        %v892 = vpop.f32.mrf.mxu0
        %v893 = vadd.f32 0.0, %v892
        %894 = vdwg.mxu0
        %895 = vmatpush.bf16.msra.mxu0 %v774
        %896 = vmatpush.bf16.msra.mxu0 %v772
        %897 = vmatpush.bf16.msra.mxu0 %v770
        %898 = vmatpush.bf16.msra.mxu0 %v768
        %899 = vmatpush.bf16.msra.mxu0 %v766
        %900 = vmatpush.bf16.msra.mxu0 %v764
        %901 = vmatpush.bf16.msra.mxu0 %v762
        %902 = vmatpush.bf16.msra.mxu0 %v760
        %903 = vmatmul.bf16.gmra.mxu0 %v594
        %v904 = vpop.f32.mrf.mxu0
        %v905 = vadd.f32 %v891, %v904
        %v906 = vpop.f32.mrf.mxu0
        %v907 = vadd.f32 %v893, %v906
        %908 = vdwg.mxu0
        %909 = vmatpush.bf16.msra.mxu0 %v790
        %910 = vmatpush.bf16.msra.mxu0 %v788
        %911 = vmatpush.bf16.msra.mxu0 %v786
        %912 = vmatpush.bf16.msra.mxu0 %v784
        %913 = vmatpush.bf16.msra.mxu0 %v782
        %914 = vmatpush.bf16.msra.mxu0 %v780
        %915 = vmatpush.bf16.msra.mxu0 %v778
        %916 = vmatpush.bf16.msra.mxu0 %v776
        %917 = vmatmul.bf16.gmra.mxu0 %v595
        %v918 = vpop.f32.mrf.mxu0
        %v919 = vadd.f32 %v905, %v918
        %v920 = vpop.f32.mrf.mxu0
        %v921 = vadd.f32 %v907, %v920
        %922 = vdwg.mxu0
        %v923 = vld [vmem:[%s521] sm:$0xff]
        %v924 = vld [vmem:[%s521 + $0x8] sm:$0xff]
        %v925 = vld [vmem:[%s527] sm:$0xff]
        %v926 = vld [vmem:[%s527 + $0x8] sm:$0xff]
        %928 = vset.pattern.permute.xlu0 0
        %929 = vperm.xlu0 %928, %v923
        %v930 = vpop.permute.xlu0 %929
        %933 = vset.pattern.permute.xlu0 0
        %934 = vperm.xlu0 %933, %v924
        %v935 = vpop.permute.xlu0 %934
        %v937 = vmul.f32 %v877, %v930
        %v938 = vmul.f32 %v919, %v930
        %v939 = vmul.f32 %v879, %v935
        %v940 = vmul.f32 %v921, %v935
        %942 = vset.pattern.permute.xlu0 0
        %943 = vperm.xlu0 %942, %v925
        %v944 = vpop.permute.xlu0 %943
        %947 = vset.pattern.permute.xlu0 0
        %948 = vperm.xlu0 %947, %v926
        %v949 = vpop.permute.xlu0 %948
        %v951 = vadd.f32 %v937, %v944
        %v952 = vadd.f32 %v938, %v944
        %v953 = vadd.f32 %v939, %v949
        %v954 = vadd.f32 %v940, %v949
        %v955 = vtanh.pop %v951
        %v956 = vtanh.pop %v952
        %v957 = vtanh.pop %v953
        %v958 = vtanh.pop %v954
        %959 = vst [vmem:[%s502] sm:$0xff] %v955
        %960 = vst [vmem:[%s502 + $0x8] sm:$0xff] %v956
        %961 = vst [vmem:[%s502 + $0x10] sm:$0xff] %v957
        %962 = vst [vmem:[%s502 + $0x18] sm:$0xff] %v958
        %s963 = sand.u32 %s152, 1
        %s964 = sand.u32 %s152, 1
        %s965 = smul.addr %s964, 32
        %s966 = scalar_lea.vmem [#allocation3], %s965
        // Predicated region
        $region75: #{_lambda_.7} parent=69 // pred_check
          %p967 = pneg %p162
        $region76: #{_lambda_.7} parent=69 // pred_check_branch
          %969 = sbr.rel (%p967) target = $region78
        $region77: #{_lambda_.7} parent=69 // pred_region
          %s970 = smul.u32 2, %s20
          %s971 = smul.u32 2, %s21
          %s972 = smul.addr %s970, 4
          %s973 = sadd.s32 %s971, %s972
          %s974 = smul.addr %s973, 8
          %s975 = scalar_lea.vmem %s4, %s974
          // Predicated region
          $region79: #{_lambda_.7} parent=77 // pred_check
            _
          $region80: #{_lambda_.7} parent=77 // pred_check_branch
            %977 = sbr.rel (0) target = $region82
          $region81: #{_lambda_.7} parent=77 // pred_region
            // Predicated region
            $region83: #{_lambda_.7} parent=81 // pred_check
              _
            $region84: #{_lambda_.7} parent=81 // pred_check_branch
              %979 = sbr.rel (0) target = $region86
            $region85: #{_lambda_.7} parent=81 // pred_region
              loop: start=0, step=1, limit=1
              $region87: #{_lambda_.7} parent=85 // loop_pre_header
                _
              $region88: #{_lambda_.7} parent=85 // loop_header
                %s981 = sphi 0, %s985
                %p982 = scmp.ge.s32.totalorder %s981, 1
                %s986 = sphi %s966, %s966
                %s987 = sphi %s975, %s975
              $region89: #{_lambda_.7} parent=85 // loop_header_branch
                %984 = sbr.rel (%p982) target = $region93
              $region90: #{_lambda_.7} parent=85 // loop_body
                %v988 = vld [vmem:[%s986] sm:$0xff]
                %989 = vst [vmem:[%s987] sm:$0xff] %v988
                %v990 = vld [vmem:[%s986 + $0x8] sm:$0xff]
                %991 = vst [vmem:[%s987 + $0x8] sm:$0xff] %v990
                %v992 = vld [vmem:[%s986 + $0x10] sm:$0xff]
                %993 = vst [vmem:[%s987 + $0x20] sm:$0xff] %v992
                %v994 = vld [vmem:[%s986 + $0x18] sm:$0xff]
                %995 = vst [vmem:[%s987 + $0x28] sm:$0xff] %v994
              $region91: #{_lambda_.7} parent=85 // loop_footer
                %s985 = sadd.s32 1, %s981
              $region92: #{_lambda_.7} parent=85 // loop_footer_branch
                %980 = sbr.rel target = $region88
              $region93: #{_lambda_.7} parent=85 // loop_exit
                _
            $region86: #{_lambda_.7} parent=81 // pred_fallthru
              _
            // Predicated region
            $region94: #{_lambda_.7} parent=81 // pred_check
              _
            $region95: #{_lambda_.7} parent=81 // pred_check_branch
              %997 = sbr.rel target = $region97
            $region96: #{_lambda_.7} parent=81 // pred_region
              _
            $region97: #{_lambda_.7} parent=81 // pred_fallthru
              _
          $region82: #{_lambda_.7} parent=77 // pred_fallthru
            _
          %998 = vnop
        $region78: #{_lambda_.7} parent=69 // pred_fallthru
          _
      $region70: #{_lambda_.7} parent=5 // pred_fallthru
        _
      %p999 = scmp.le.s32.totalorder 2, %s10
      // Predicated region
      $region98: #{_lambda_.7} parent=5 // pred_check
        %p1000 = pneg %p999
      $region99: #{_lambda_.7} parent=5 // pred_check_branch
        %1002 = sbr.rel (%p1000) target = $region101
      $region100: #{_lambda_.7} parent=5 // pred_region
        %s1003 = ssub.s32 %s10, 2
        // Predicated region
        $region102: #{_lambda_.7} parent=100 // pred_check
          %p1004 = pneg %p168
        $region103: #{_lambda_.7} parent=100 // pred_check_branch
          %1006 = sbr.rel (%p1004) target = $region105
        $region104: #{_lambda_.7} parent=100 // pred_region
          %s1007 = sand.u32 %s153, 1
          %s1008 = sand.u32 %s153, 1
          %s1009 = smul.addr %s1008, 32
          %s1010 = scalar_lea.vmem [#allocation3], %s1009
        $region105: #{_lambda_.7} parent=100 // pred_fallthru
          _
      $region101: #{_lambda_.7} parent=5 // pred_fallthru
        _
    $region6: #{_lambda_.7} parent=1 // loop_footer
      %s14 = sadd.s32 1, %s10
    $region7: #{_lambda_.7} parent=1 // loop_footer_branch
      %9 = sbr.rel target = $region3
    $region8: #{_lambda_.7} parent=1 // loop_exit
      _

</llo_original>
